<compile_context>
chip_gen: v5e
topology: v5e:2x2
jax: 0.10.0
libtpu: 0.0.40
codegen_flags: <defaults>
</compile_context>

<pallas_src>
import functools

import jax
import jax.numpy as jnp
from jax import lax
from jax.experimental import pallas as pl
from jax.experimental.pallas import tpu as pltpu


def _round_up(v, m):
    return ((v + m - 1) // m) * m


# -----------------------------------------------------------------------------
# Fused per-direction CPC kernel: encoder matmul -> causal AR context ->
# stacked W_k projections -> InfoNCE (score-matrix formulation).  Only the
# per-direction loss (lane-broadcast to 128) is written back to HBM.
# -----------------------------------------------------------------------------
def _cpc_direction_kernel(xp_ref, wenc_ref, benc_ref, war_ref, bar_ref,
                          wk_ref, idx_ref, loss_ref, *,
                          B, Gy, Gx, CP, pred_steps, neg_samples, skip_step):
    BG = B * Gx                     # rows per grid-row y (y-major row layout)
    M = Gy * BG

    # --- encoder: patchified conv == one bf16 MXU matmul + bias + relu --------
    enc = jnp.dot(xp_ref[0], wenc_ref[...],
                  preferred_element_type=jnp.float32)
    enc = jnp.maximum(enc + benc_ref[...], 0.0)                # [M, CP] f32
    enc_bf = enc.astype(jnp.bfloat16)

    # --- AR context net: causal running mean over grid rows.  Rows are y-major,
    #     so each y is a contiguous BG-row slab: running sum + scale, no [M, M]
    #     aggregation matrix and no transposes. ---------------------------------
    run = enc[0:BG, :]
    pieces = [run]
    for y in range(1, Gy):
        run = run + enc[y * BG:(y + 1) * BG, :]
        pieces.append(run * (1.0 / (y + 1)))
    agg = jnp.concatenate(pieces, axis=0)                      # [M, CP] f32
    ctx = jnp.dot(agg.astype(jnp.bfloat16), war_ref[...],
                  preferred_element_type=jnp.float32)
    ctx = jnp.maximum(ctx + bar_ref[...], 0.0)                 # [M, CP] f32
    ctx_bf = ctx.astype(jnp.bfloat16)

    # --- all pred_steps W_k (1x1 convs) stacked into ONE wide MXU matmul ------
    ztwk = jnp.dot(enc_bf, wk_ref[0],
                   preferred_element_type=jnp.float32)         # [M, S*CP] f32
    ztwk_bf = ztwk.astype(jnp.bfloat16)

    idx_all = idx_ref[0]                                       # [M, S*nneg] i32
    neg_big = jnp.float32(-1e30)
    total = jnp.zeros((1, 1), jnp.float32)
    for k in range(1, pred_steps + 1):                         # static unroll
        shift = (k + skip_step) * BG
        L = M - shift          # with y-major rows, every remaining row is valid

        zk = ztwk[shift:, (k - 1) * CP:k * CP]                 # [L, CP] f32
        ck = ctx[:L, :]                                        # [L, CP] f32

        # positive scores <c_t, W_k z_{t+k+skip}>  (f32 on the VPU)
        pos = jnp.sum(ck * zk, axis=1, keepdims=True)          # [L, 1]

        # full score matrix, once per k:  S[l, j] = <c_l, W_k z_fut_j>
        smat = lax.dot_general(
            ctx_bf[:L, :], ztwk_bf[shift:, (k - 1) * CP:k * CP],
            (((1,), (1,)), ((), ())),
            preferred_element_type=jnp.float32)                # [L, L] f32

        # negative selection counts from host-drawn indices (VPU one-hot adds)
        colid = lax.broadcasted_iota(jnp.int32, (L, L), 1)
        cnt = jnp.zeros((L, L), jnp.float32)
        for n in range(neg_samples):
            j = (k - 1) * neg_samples + n
            sel = idx_all[:L, j:j + 1]                         # [L, 1] i32
            cnt = cnt + (colid == sel).astype(jnp.float32)

        # (1 + neg_samples)-way softmax CE, positive is class 0 (fused logsumexp)
        masked = jnp.where(cnt > 0, smat, neg_big)
        m = jnp.maximum(pos, jnp.max(masked, axis=1, keepdims=True))
        e = jnp.exp(jnp.where(cnt > 0, smat - m, neg_big))
        denom = jnp.exp(pos - m) + jnp.sum(cnt * e, axis=1, keepdims=True)
        per_loc = m + jnp.log(denom) - pos                     # [L, 1]
        total = total + jnp.sum(per_loc, axis=0, keepdims=True) * (1.0 / L)

    # single lane-dense store of the per-direction loss
    loss_ref[...] = jnp.broadcast_to(total * (1.0 / pred_steps), (1, 1, 128))


# -----------------------------------------------------------------------------
# Eval-path encoder kernel (reference returns encodings.permute(0, 3, 1, 2)),
# tiled over rows so it pipelines and stays within VMEM at any batch size.
# -----------------------------------------------------------------------------
def _encoder_kernel(xp_ref, w_ref, b_ref, o_ref):
    acc = jnp.dot(xp_ref[...], w_ref[...], preferred_element_type=jnp.float32)
    o_ref[...] = jnp.maximum(acc + b_ref[...], 0.0)


# -----------------------------------------------------------------------------
# Wrapper: layout / padding / RNG glue in jnp, all hot compute inside kernels
# -----------------------------------------------------------------------------
@functools.partial(
    jax.jit,
    static_argnames=("patch", "pred_directions", "pred_steps", "neg_samples",
                     "skip_step", "is_eval"))
def cpc_forward(x, params, key, *, patch, pred_directions, pred_steps,
                neg_samples, skip_step=1, is_eval=False):
    B, Cin, H, W = x.shape
    Gy, Gx = H // patch, W // patch
    Kin = Cin * patch * patch
    Cenc = params["w_enc"].shape[1]
    KP = _round_up(Kin, 128)
    CP = _round_up(Cenc, 128)
    M = B * Gy * Gx
    BG = B * Gx

    # patchify NCHW -> [B, Gy, Gx, Cin*patch*patch]  (pure layout bookkeeping)
    xp = x.reshape(B, Cin, Gy, patch, Gx, patch)
    xp = jnp.transpose(xp, (0, 2, 4, 1, 3, 5)).reshape(B, Gy, Gx, Kin)

    # zero-padded, bf16 MXU weights; padded channels stay exactly zero
    w_enc_p = jnp.zeros((KP, CP), jnp.float32).at[:Kin, :Cenc].set(
        params["w_enc"]).astype(jnp.bfloat16)
    b_enc_p = jnp.zeros((1, CP), jnp.float32).at[0, :Cenc].set(params["b_enc"])

    if is_eval:
        TM = min(512, _round_up(M, 8))
        Mp = pl.cdiv(M, TM) * TM
        xp_pad = jnp.zeros((Mp, KP), jnp.bfloat16).at[:M, :Kin].set(
            xp.reshape(M, Kin).astype(jnp.bfloat16))
        enc = pl.pallas_call(
            _encoder_kernel,
            out_shape=jax.ShapeDtypeStruct((Mp, CP), jnp.float32),
            grid=(Mp // TM,),
            in_specs=[pl.BlockSpec((TM, KP), lambda i: (i, 0)),
                      pl.BlockSpec((KP, CP), lambda i: (0, 0)),
                      pl.BlockSpec((1, CP), lambda i: (0, 0))],
            out_specs=pl.BlockSpec((TM, CP), lambda i: (i, 0)),
            compiler_params=pltpu.CompilerParams(
                dimension_semantics=("parallel",),
                vmem_limit_bytes=32 * 1024 * 1024),
        )(xp_pad, w_enc_p, b_enc_p)
        enc = enc[:M, :Cenc].reshape(B, Gy, Gx, Cenc)
        return jnp.transpose(enc, (0, 3, 1, 2))      # == permute(0, 3, 1, 2)

    assert 1 <= pred_directions <= 4
    if pred_directions > 1:
        assert Gy == Gx, "multiple prediction directions require a square grid"
    assert Gy - (pred_steps + skip_step) >= 1, "grid too small for pred_steps"

    # reference rotates the NCHW encodings per direction (transpose(2,3).flip(3));
    # the encoder acts per patch cell, so rotating the patch grid first is identical.
    grids = [xp]
    for _ in range(1, pred_directions):
        grids.append(jnp.flip(jnp.swapaxes(grids[-1], 1, 2), axis=2))
    # y-major row order (y, b, x): causal aggregation and the k-step future shift
    # both become contiguous row-block ops in the kernel (no [M,M] matrix, no
    # per-batch concatenates, no gathers).
    xp_all = jnp.stack(
        [jnp.transpose(g, (1, 0, 2, 3)).reshape(M, Kin) for g in grids], axis=0)
    xp_all = jnp.pad(xp_all, ((0, 0), (0, 0), (0, KP - Kin))).astype(jnp.bfloat16)

    w_ar_p = jnp.zeros((CP, CP), jnp.float32).at[:Cenc, :Cenc].set(
        params["w_ar"]).astype(jnp.bfloat16)
    b_ar_p = jnp.zeros((1, CP), jnp.float32).at[0, :Cenc].set(params["b_ar"])

    # stack all W_k (1x1 convs, no bias) into one [CP, pred_steps*CP] bf16 weight
    w_k = params["w_k"]                           # [D, pred_steps, Cenc, Cenc]
    w_k_pad = jnp.zeros((pred_directions, pred_steps, CP, CP),
                        jnp.float32).at[:, :, :Cenc, :Cenc].set(w_k)
    w_k_all = jnp.transpose(w_k_pad, (0, 2, 1, 3)).reshape(
        pred_directions, CP, pred_steps * CP).astype(jnp.bfloat16)

    # host-side negative sampling (uniform over the flattened future set, with
    # replacement — same semantics as torch.randint in the reference InfoNCE)
    SN = pred_steps * neg_samples
    neg_idx = jnp.zeros((pred_directions, M, SN), jnp.int32)
    keys = jax.random.split(key, pred_directions * pred_steps)
    ki = 0
    for d in range(pred_directions):
        for k in range(1, pred_steps + 1):
            L = M - (k + skip_step) * BG
            draw = jax.random.randint(keys[ki], (L, neg_samples), 0, L,
                                      dtype=jnp.int32)
            neg_idx = neg_idx.at[
                d, :L, (k - 1) * neg_samples:k * neg_samples].set(draw)
            ki += 1

    # scoped-VMEM budget: actual operand + working-set bytes with headroom,
    # clamped so it is valid on v5e / v6e / v7x.
    Lmax = M - (1 + skip_step) * BG
    in_bytes = (M * KP * 2 + KP * CP * 2 + CP * 8 + CP * CP * 2
                + CP * pred_steps * CP * 2 + M * SN * 4 + 512)
    work_bytes = (M * CP * (3 * 4 + 2 * 2) + M * pred_steps * CP * 6
                  + 3 * Lmax * Lmax * 4 + Lmax * (8 * CP + 64))
    vmem_limit = int(min(max(2 * in_bytes + work_bytes + (8 << 20), 32 << 20),
                         64 << 20))

    kernel = functools.partial(
        _cpc_direction_kernel, B=B, Gy=Gy, Gx=Gx, CP=CP,
        pred_steps=pred_steps, neg_samples=neg_samples, skip_step=skip_step)

    per_dir = pl.pallas_call(
        kernel,
        out_shape=jax.ShapeDtypeStruct((pred_directions, 1, 128), jnp.float32),
        grid=(pred_directions,),
        in_specs=[
            pl.BlockSpec((1, M, KP), lambda d: (d, 0, 0)),                 # xp_all
            pl.BlockSpec((KP, CP), lambda d: (0, 0)),                      # w_enc
            pl.BlockSpec((1, CP), lambda d: (0, 0)),                       # b_enc
            pl.BlockSpec((CP, CP), lambda d: (0, 0)),                      # w_ar
            pl.BlockSpec((1, CP), lambda d: (0, 0)),                       # b_ar
            pl.BlockSpec((1, CP, pred_steps * CP), lambda d: (d, 0, 0)),   # w_k
            pl.BlockSpec((1, M, SN), lambda d: (d, 0, 0)),                 # neg idx
        ],
        out_specs=pl.BlockSpec((1, 1, 128), lambda d: (d, 0, 0)),
        compiler_params=pltpu.CompilerParams(
            dimension_semantics=("parallel",),
            vmem_limit_bytes=vmem_limit),
    )(xp_all, w_enc_p, b_enc_p, w_ar_p, b_ar_p, w_k_all, neg_idx)

    return jnp.mean(per_dir[:, 0, 0])


# -----------------------------------------------------------------------------
if __name__ == "__main__":
    key = jax.random.PRNGKey(0)
    B, Cin, H, W = 2, 4, 16, 16
    patch = 2                      # -> 8x8 grid of patch encodings
    Cenc = 32                      # encoderNet.encoding_size
    pred_directions, pred_steps, neg_samples = 2, 3, 4

    k1, k2, k3, k4, k5, kx, kn = jax.random.split(key, 7)
    params = {
        "w_enc": 0.1 * jax.random.normal(k1, (Cin * patch * patch, Cenc), jnp.float32),
        "b_enc": 0.1 * jax.random.normal(k2, (Cenc,), jnp.float32),
        "w_ar": 0.1 * jax.random.normal(k3, (Cenc, Cenc), jnp.float32),
        "b_ar": 0.1 * jax.random.normal(k4, (Cenc,), jnp.float32),
        "w_k": 0.1 * jax.random.normal(
            k5, (pred_directions, pred_steps, Cenc, Cenc), jnp.float32),
    }
    x = jax.random.normal(kx, (B, Cin, H, W), jnp.float32)

    # TODO(synk): load_state_dict_imagenet (torch.load of a .pth checkpoint) has no
    # Pallas equivalent; weights above are deterministic synthetic initializations.
    loss = cpc_forward(x, params, kn, patch=patch,
                       pred_directions=pred_directions, pred_steps=pred_steps,
                       neg_samples=neg_samples)
    loss = jax.block_until_ready(loss)
    assert bool(jnp.isfinite(loss))

    enc_eval = cpc_forward(x, params, kn, patch=patch,
                           pred_directions=pred_directions, pred_steps=pred_steps,
                           neg_samples=neg_samples, is_eval=True)
    enc_eval = jax.block_until_ready(enc_eval)
    assert enc_eval.shape == (B, Cenc, H // patch, W // patch)
    assert bool(jnp.all(jnp.isfinite(enc_eval)))

    print("KERNEL_OK")
</pallas_src>

<mosaic_0001>
module attributes {stable_mosaic.version = 11 : i64} {
  func.func @_cpc_direction_kernel(%arg0: i32, %arg1: memref<1x128x128xbf16, #tpu.memory_space<vmem>>, %arg2: memref<128x128xbf16, #tpu.memory_space<vmem>>, %arg3: memref<1x128xf32, #tpu.memory_space<vmem>>, %arg4: memref<128x128xbf16, #tpu.memory_space<vmem>>, %arg5: memref<1x128xf32, #tpu.memory_space<vmem>>, %arg6: memref<1x128x384xbf16, #tpu.memory_space<vmem>>, %arg7: memref<1x128x12xi32, #tpu.memory_space<vmem>>, %arg8: memref<1x1x128xf32, #tpu.memory_space<vmem>>) attributes {dimension_semantics = [#tpu.dimension_semantics<parallel>], iteration_bounds = array<i64: 2>, scalar_prefetch = 0 : i64, scratch_operands = 0 : i64, tpu.core_type = #tpu.core_type<tc>, window_params = [{transform_indices = @transform_0, window_bounds = array<i64: 1, 128, 128>}, {pipeline_mode = #tpu.pipeline_mode<synchronous>, transform_indices = @transform_1, window_bounds = array<i64: 128, 128>}, {pipeline_mode = #tpu.pipeline_mode<synchronous>, transform_indices = @transform_2, window_bounds = array<i64: 1, 128>}, {pipeline_mode = #tpu.pipeline_mode<synchronous>, transform_indices = @transform_3, window_bounds = array<i64: 128, 128>}, {pipeline_mode = #tpu.pipeline_mode<synchronous>, transform_indices = @transform_4, window_bounds = array<i64: 1, 128>}, {transform_indices = @transform_5, window_bounds = array<i64: 1, 128, 384>}, {transform_indices = @transform_6, window_bounds = array<i64: 1, 128, 12>}, {transform_indices = @transform_7, window_bounds = array<i64: 1, 1, 128>}]} {
    %c0 = arith.constant 0 : index
    %c0_0 = arith.constant 0 : index
    %c0_1 = arith.constant 0 : index
    %0 = vector.load %arg1[%c0, %c0_0, %c0_1] : memref<1x128x128xbf16, #tpu.memory_space<vmem>>, vector<1x128x128xbf16>
    %1 = vector.shape_cast %0 : vector<1x128x128xbf16> to vector<128x128xbf16>
    %c0_2 = arith.constant 0 : index
    %c0_3 = arith.constant 0 : index
    %2 = vector.load %arg2[%c0_2, %c0_3] : memref<128x128xbf16, #tpu.memory_space<vmem>>, vector<128x128xbf16>
    %cst = arith.constant dense<0.000000e+00> : vector<128x128xf32>
    %3 = tpu.matmul %1, %2, %cst {dimension_numbers = #tpu.dot_dimension_numbers<[1], [0], [0], [1], [0, 0, 1, 1], [], []>} : vector<128x128xbf16>, vector<128x128xbf16>, vector<128x128xf32> -> vector<128x128xf32>
    %c0_4 = arith.constant 0 : index
    %c0_5 = arith.constant 0 : index
    %4 = vector.load %arg3[%c0_4, %c0_5] : memref<1x128xf32, #tpu.memory_space<vmem>>, vector<1x128xf32>
    %5 = vector.broadcast %4 : vector<1x128xf32> to vector<128x128xf32>
    %6 = arith.addf %3, %5 : vector<128x128xf32>
    %cst_6 = arith.constant 0.000000e+00 : f32
    %7 = vector.broadcast %cst_6 : f32 to vector<128x128xf32>
    %8 = arith.maximumf %6, %7 : vector<128x128xf32>
    %9 = arith.truncf %8 : vector<128x128xf32> to vector<128x128xbf16>
    %10 = vector.extract_strided_slice %8 {offsets = [0, 0], sizes = [16, 128], strides = [1, 1]} : vector<128x128xf32> to vector<16x128xf32>
    %11 = vector.extract_strided_slice %8 {offsets = [16, 0], sizes = [16, 128], strides = [1, 1]} : vector<128x128xf32> to vector<16x128xf32>
    %12 = arith.addf %10, %11 : vector<16x128xf32>
    %cst_7 = arith.constant 5.000000e-01 : f32
    %13 = vector.broadcast %cst_7 : f32 to vector<16x128xf32>
    %14 = arith.mulf %12, %13 : vector<16x128xf32>
    %15 = vector.extract_strided_slice %8 {offsets = [32, 0], sizes = [16, 128], strides = [1, 1]} : vector<128x128xf32> to vector<16x128xf32>
    %16 = arith.addf %12, %15 : vector<16x128xf32>
    %cst_8 = arith.constant 0.333333343 : f32
    %17 = vector.broadcast %cst_8 : f32 to vector<16x128xf32>
    %18 = arith.mulf %16, %17 : vector<16x128xf32>
    %19 = vector.extract_strided_slice %8 {offsets = [48, 0], sizes = [16, 128], strides = [1, 1]} : vector<128x128xf32> to vector<16x128xf32>
    %20 = arith.addf %16, %19 : vector<16x128xf32>
    %cst_9 = arith.constant 2.500000e-01 : f32
    %21 = vector.broadcast %cst_9 : f32 to vector<16x128xf32>
    %22 = arith.mulf %20, %21 : vector<16x128xf32>
    %23 = vector.extract_strided_slice %8 {offsets = [64, 0], sizes = [16, 128], strides = [1, 1]} : vector<128x128xf32> to vector<16x128xf32>
    %24 = arith.addf %20, %23 : vector<16x128xf32>
    %cst_10 = arith.constant 2.000000e-01 : f32
    %25 = vector.broadcast %cst_10 : f32 to vector<16x128xf32>
    %26 = arith.mulf %24, %25 : vector<16x128xf32>
    %27 = vector.extract_strided_slice %8 {offsets = [80, 0], sizes = [16, 128], strides = [1, 1]} : vector<128x128xf32> to vector<16x128xf32>
    %28 = arith.addf %24, %27 : vector<16x128xf32>
    %cst_11 = arith.constant 0.166666672 : f32
    %29 = vector.broadcast %cst_11 : f32 to vector<16x128xf32>
    %30 = arith.mulf %28, %29 : vector<16x128xf32>
    %31 = vector.extract_strided_slice %8 {offsets = [96, 0], sizes = [16, 128], strides = [1, 1]} : vector<128x128xf32> to vector<16x128xf32>
    %32 = arith.addf %28, %31 : vector<16x128xf32>
    %cst_12 = arith.constant 0.142857149 : f32
    %33 = vector.broadcast %cst_12 : f32 to vector<16x128xf32>
    %34 = arith.mulf %32, %33 : vector<16x128xf32>
    %35 = vector.extract_strided_slice %8 {offsets = [112, 0], sizes = [16, 128], strides = [1, 1]} : vector<128x128xf32> to vector<16x128xf32>
    %36 = arith.addf %32, %35 : vector<16x128xf32>
    %cst_13 = arith.constant 1.250000e-01 : f32
    %37 = vector.broadcast %cst_13 : f32 to vector<16x128xf32>
    %38 = arith.mulf %36, %37 : vector<16x128xf32>
    %39 = tpu.concatenate %10, %14, %18, %22, %26, %30, %34, %38 in 0 : vector<16x128xf32>, vector<16x128xf32>, vector<16x128xf32>, vector<16x128xf32>, vector<16x128xf32>, vector<16x128xf32>, vector<16x128xf32>, vector<16x128xf32> -> vector<128x128xf32>
    %40 = arith.truncf %39 : vector<128x128xf32> to vector<128x128xbf16>
    %c0_14 = arith.constant 0 : index
    %c0_15 = arith.constant 0 : index
    %41 = vector.load %arg4[%c0_14, %c0_15] : memref<128x128xbf16, #tpu.memory_space<vmem>>, vector<128x128xbf16>
    %cst_16 = arith.constant dense<0.000000e+00> : vector<128x128xf32>
    %42 = tpu.matmul %40, %41, %cst_16 {dimension_numbers = #tpu.dot_dimension_numbers<[1], [0], [0], [1], [0, 0, 1, 1], [], []>} : vector<128x128xbf16>, vector<128x128xbf16>, vector<128x128xf32> -> vector<128x128xf32>
    %c0_17 = arith.constant 0 : index
    %c0_18 = arith.constant 0 : index
    %43 = vector.load %arg5[%c0_17, %c0_18] : memref<1x128xf32, #tpu.memory_space<vmem>>, vector<1x128xf32>
    %44 = vector.broadcast %43 : vector<1x128xf32> to vector<128x128xf32>
    %45 = arith.addf %42, %44 : vector<128x128xf32>
    %cst_19 = arith.constant 0.000000e+00 : f32
    %46 = vector.broadcast %cst_19 : f32 to vector<128x128xf32>
    %47 = arith.maximumf %45, %46 : vector<128x128xf32>
    %48 = arith.truncf %47 : vector<128x128xf32> to vector<128x128xbf16>
    %c0_20 = arith.constant 0 : index
    %c0_21 = arith.constant 0 : index
    %c0_22 = arith.constant 0 : index
    %49 = vector.load %arg6[%c0_20, %c0_21, %c0_22] : memref<1x128x384xbf16, #tpu.memory_space<vmem>>, vector<1x128x384xbf16>
    %50 = vector.shape_cast %49 : vector<1x128x384xbf16> to vector<128x384xbf16>
    %cst_23 = arith.constant dense<0.000000e+00> : vector<128x384xf32>
    %51 = tpu.matmul %9, %50, %cst_23 {dimension_numbers = #tpu.dot_dimension_numbers<[1], [0], [0], [1], [0, 0, 1, 1], [], []>} : vector<128x128xbf16>, vector<128x384xbf16>, vector<128x384xf32> -> vector<128x384xf32>
    %52 = arith.truncf %51 : vector<128x384xf32> to vector<128x384xbf16>
    %c0_24 = arith.constant 0 : index
    %c0_25 = arith.constant 0 : index
    %c0_26 = arith.constant 0 : index
    %53 = vector.load %arg7[%c0_24, %c0_25, %c0_26] : memref<1x128x12xi32, #tpu.memory_space<vmem>>, vector<1x128x12xi32>
    %54 = vector.shape_cast %53 : vector<1x128x12xi32> to vector<128x12xi32>
    %cst_27 = arith.constant 0.000000e+00 : f32
    %55 = vector.broadcast %cst_27 : f32 to vector<1x1xf32>
    %56 = vector.extract_strided_slice %51 {offsets = [32, 0], sizes = [96, 128], strides = [1, 1]} : vector<128x384xf32> to vector<96x128xf32>
    %57 = vector.extract_strided_slice %47 {offsets = [0, 0], sizes = [96, 128], strides = [1, 1]} : vector<128x128xf32> to vector<96x128xf32>
    %58 = arith.mulf %57, %56 : vector<96x128xf32>
    %cst_28 = arith.constant dense<0.000000e+00> : vector<96xf32>
    %59 = vector.multi_reduction <add>, %58, %cst_28 [1] : vector<96x128xf32> to vector<96xf32>
    %60 = vector.shape_cast %59 : vector<96xf32> to vector<96x1xf32>
    %61 = vector.extract_strided_slice %48 {offsets = [0, 0], sizes = [96, 128], strides = [1, 1]} : vector<128x128xbf16> to vector<96x128xbf16>
    %62 = vector.extract_strided_slice %52 {offsets = [32, 0], sizes = [96, 128], strides = [1, 1]} : vector<128x384xbf16> to vector<96x128xbf16>
    %cst_29 = arith.constant dense<0.000000e+00> : vector<96x96xf32>
    %63 = tpu.matmul %61, %62, %cst_29 {dimension_numbers = #tpu.dot_dimension_numbers<[1], [1], [0], [0], [0, 0, 1, 0], [], []>} : vector<96x128xbf16>, vector<96x128xbf16>, vector<96x96xf32> -> vector<96x96xf32>
    %64 = tpu.iota {dimensions = array<i32: 1>} : vector<96x96xi32>
    %cst_30 = arith.constant 0.000000e+00 : f32
    %65 = vector.broadcast %cst_30 : f32 to vector<96x96xf32>
    %66 = vector.extract_strided_slice %54 {offsets = [0, 0], sizes = [96, 1], strides = [1, 1]} : vector<128x12xi32> to vector<96x1xi32>
    %67 = vector.broadcast %66 : vector<96x1xi32> to vector<96x96xi32>
    %68 = arith.cmpi eq, %64, %67 : vector<96x96xi32>
    %69 = arith.extui %68 : vector<96x96xi1> to vector<96x96xi32>
    %70 = arith.sitofp %69 : vector<96x96xi32> to vector<96x96xf32>
    %71 = arith.addf %65, %70 : vector<96x96xf32>
    %72 = vector.extract_strided_slice %54 {offsets = [0, 1], sizes = [96, 1], strides = [1, 1]} : vector<128x12xi32> to vector<96x1xi32>
    %73 = vector.broadcast %72 : vector<96x1xi32> to vector<96x96xi32>
    %74 = arith.cmpi eq, %64, %73 : vector<96x96xi32>
    %75 = arith.extui %74 : vector<96x96xi1> to vector<96x96xi32>
    %76 = arith.sitofp %75 : vector<96x96xi32> to vector<96x96xf32>
    %77 = arith.addf %71, %76 : vector<96x96xf32>
    %78 = vector.extract_strided_slice %54 {offsets = [0, 2], sizes = [96, 1], strides = [1, 1]} : vector<128x12xi32> to vector<96x1xi32>
    %79 = vector.broadcast %78 : vector<96x1xi32> to vector<96x96xi32>
    %80 = arith.cmpi eq, %64, %79 : vector<96x96xi32>
    %81 = arith.extui %80 : vector<96x96xi1> to vector<96x96xi32>
    %82 = arith.sitofp %81 : vector<96x96xi32> to vector<96x96xf32>
    %83 = arith.addf %77, %82 : vector<96x96xf32>
    %84 = vector.extract_strided_slice %54 {offsets = [0, 3], sizes = [96, 1], strides = [1, 1]} : vector<128x12xi32> to vector<96x1xi32>
    %85 = vector.broadcast %84 : vector<96x1xi32> to vector<96x96xi32>
    %86 = arith.cmpi eq, %64, %85 : vector<96x96xi32>
    %87 = arith.extui %86 : vector<96x96xi1> to vector<96x96xi32>
    %88 = arith.sitofp %87 : vector<96x96xi32> to vector<96x96xf32>
    %89 = arith.addf %83, %88 : vector<96x96xf32>
    %cst_31 = arith.constant 0.000000e+00 : f32
    %90 = vector.broadcast %cst_31 : f32 to vector<96x96xf32>
    %91 = arith.cmpf ogt, %89, %90 : vector<96x96xf32>
    %cst_32 = arith.constant -1.000000e+30 : f32
    %92 = vector.broadcast %cst_32 : f32 to vector<96x96xf32>
    %93 = arith.select %91, %63, %92 : vector<96x96xi1>, vector<96x96xf32>
    %cst_33 = arith.constant dense<0xFF800000> : vector<96xf32>
    %94 = vector.multi_reduction <maximumf>, %93, %cst_33 [1] : vector<96x96xf32> to vector<96xf32>
    %95 = vector.shape_cast %94 : vector<96xf32> to vector<96x1xf32>
    %96 = arith.maximumf %60, %95 : vector<96x1xf32>
    %cst_34 = arith.constant 0.000000e+00 : f32
    %97 = vector.broadcast %cst_34 : f32 to vector<96x96xf32>
    %98 = arith.cmpf ogt, %89, %97 : vector<96x96xf32>
    %99 = vector.broadcast %96 : vector<96x1xf32> to vector<96x96xf32>
    %100 = arith.subf %63, %99 : vector<96x96xf32>
    %cst_35 = arith.constant -1.000000e+30 : f32
    %101 = vector.broadcast %cst_35 : f32 to vector<96x96xf32>
    %102 = arith.select %98, %100, %101 : vector<96x96xi1>, vector<96x96xf32>
    %103 = math.exp %102 : vector<96x96xf32>
    %104 = arith.subf %60, %96 : vector<96x1xf32>
    %105 = math.exp %104 : vector<96x1xf32>
    %106 = arith.mulf %89, %103 : vector<96x96xf32>
    %cst_36 = arith.constant dense<0.000000e+00> : vector<96xf32>
    %107 = vector.multi_reduction <add>, %106, %cst_36 [1] : vector<96x96xf32> to vector<96xf32>
    %108 = vector.shape_cast %107 : vector<96xf32> to vector<96x1xf32>
    %109 = arith.addf %105, %108 : vector<96x1xf32>
    %110 = math.log %109 : vector<96x1xf32>
    %111 = arith.addf %96, %110 : vector<96x1xf32>
    %112 = arith.subf %111, %60 : vector<96x1xf32>
    %cst_37 = arith.constant dense<0.000000e+00> : vector<1xf32>
    %113 = vector.multi_reduction <add>, %112, %cst_37 [0] : vector<96x1xf32> to vector<1xf32>
    %114 = vector.shape_cast %113 : vector<1xf32> to vector<1x1xf32>
    %cst_38 = arith.constant 0.010416667 : f32
    %115 = vector.broadcast %cst_38 : f32 to vector<1x1xf32>
    %116 = arith.mulf %114, %115 : vector<1x1xf32>
    %117 = arith.addf %55, %116 : vector<1x1xf32>
    %118 = vector.extract_strided_slice %51 {offsets = [48, 128], sizes = [80, 128], strides = [1, 1]} : vector<128x384xf32> to vector<80x128xf32>
    %119 = vector.extract_strided_slice %47 {offsets = [0, 0], sizes = [80, 128], strides = [1, 1]} : vector<128x128xf32> to vector<80x128xf32>
    %120 = arith.mulf %119, %118 : vector<80x128xf32>
    %cst_39 = arith.constant dense<0.000000e+00> : vector<80xf32>
    %121 = vector.multi_reduction <add>, %120, %cst_39 [1] : vector<80x128xf32> to vector<80xf32>
    %122 = vector.shape_cast %121 : vector<80xf32> to vector<80x1xf32>
    %123 = vector.extract_strided_slice %48 {offsets = [0, 0], sizes = [80, 128], strides = [1, 1]} : vector<128x128xbf16> to vector<80x128xbf16>
    %124 = vector.extract_strided_slice %52 {offsets = [48, 128], sizes = [80, 128], strides = [1, 1]} : vector<128x384xbf16> to vector<80x128xbf16>
    %cst_40 = arith.constant dense<0.000000e+00> : vector<80x80xf32>
    %125 = tpu.matmul %123, %124, %cst_40 {dimension_numbers = #tpu.dot_dimension_numbers<[1], [1], [0], [0], [0, 0, 1, 0], [], []>} : vector<80x128xbf16>, vector<80x128xbf16>, vector<80x80xf32> -> vector<80x80xf32>
    %126 = tpu.iota {dimensions = array<i32: 1>} : vector<80x80xi32>
    %cst_41 = arith.constant 0.000000e+00 : f32
    %127 = vector.broadcast %cst_41 : f32 to vector<80x80xf32>
    %128 = vector.extract_strided_slice %54 {offsets = [0, 4], sizes = [80, 1], strides = [1, 1]} : vector<128x12xi32> to vector<80x1xi32>
    %129 = vector.broadcast %128 : vector<80x1xi32> to vector<80x80xi32>
    %130 = arith.cmpi eq, %126, %129 : vector<80x80xi32>
    %131 = arith.extui %130 : vector<80x80xi1> to vector<80x80xi32>
    %132 = arith.sitofp %131 : vector<80x80xi32> to vector<80x80xf32>
    %133 = arith.addf %127, %132 : vector<80x80xf32>
    %134 = vector.extract_strided_slice %54 {offsets = [0, 5], sizes = [80, 1], strides = [1, 1]} : vector<128x12xi32> to vector<80x1xi32>
    %135 = vector.broadcast %134 : vector<80x1xi32> to vector<80x80xi32>
    %136 = arith.cmpi eq, %126, %135 : vector<80x80xi32>
    %137 = arith.extui %136 : vector<80x80xi1> to vector<80x80xi32>
    %138 = arith.sitofp %137 : vector<80x80xi32> to vector<80x80xf32>
    %139 = arith.addf %133, %138 : vector<80x80xf32>
    %140 = vector.extract_strided_slice %54 {offsets = [0, 6], sizes = [80, 1], strides = [1, 1]} : vector<128x12xi32> to vector<80x1xi32>
    %141 = vector.broadcast %140 : vector<80x1xi32> to vector<80x80xi32>
    %142 = arith.cmpi eq, %126, %141 : vector<80x80xi32>
    %143 = arith.extui %142 : vector<80x80xi1> to vector<80x80xi32>
    %144 = arith.sitofp %143 : vector<80x80xi32> to vector<80x80xf32>
    %145 = arith.addf %139, %144 : vector<80x80xf32>
    %146 = vector.extract_strided_slice %54 {offsets = [0, 7], sizes = [80, 1], strides = [1, 1]} : vector<128x12xi32> to vector<80x1xi32>
    %147 = vector.broadcast %146 : vector<80x1xi32> to vector<80x80xi32>
    %148 = arith.cmpi eq, %126, %147 : vector<80x80xi32>
    %149 = arith.extui %148 : vector<80x80xi1> to vector<80x80xi32>
    %150 = arith.sitofp %149 : vector<80x80xi32> to vector<80x80xf32>
    %151 = arith.addf %145, %150 : vector<80x80xf32>
    %cst_42 = arith.constant 0.000000e+00 : f32
    %152 = vector.broadcast %cst_42 : f32 to vector<80x80xf32>
    %153 = arith.cmpf ogt, %151, %152 : vector<80x80xf32>
    %cst_43 = arith.constant -1.000000e+30 : f32
    %154 = vector.broadcast %cst_43 : f32 to vector<80x80xf32>
    %155 = arith.select %153, %125, %154 : vector<80x80xi1>, vector<80x80xf32>
    %cst_44 = arith.constant dense<0xFF800000> : vector<80xf32>
    %156 = vector.multi_reduction <maximumf>, %155, %cst_44 [1] : vector<80x80xf32> to vector<80xf32>
    %157 = vector.shape_cast %156 : vector<80xf32> to vector<80x1xf32>
    %158 = arith.maximumf %122, %157 : vector<80x1xf32>
    %cst_45 = arith.constant 0.000000e+00 : f32
    %159 = vector.broadcast %cst_45 : f32 to vector<80x80xf32>
    %160 = arith.cmpf ogt, %151, %159 : vector<80x80xf32>
    %161 = vector.broadcast %158 : vector<80x1xf32> to vector<80x80xf32>
    %162 = arith.subf %125, %161 : vector<80x80xf32>
    %cst_46 = arith.constant -1.000000e+30 : f32
    %163 = vector.broadcast %cst_46 : f32 to vector<80x80xf32>
    %164 = arith.select %160, %162, %163 : vector<80x80xi1>, vector<80x80xf32>
    %165 = math.exp %164 : vector<80x80xf32>
    %166 = arith.subf %122, %158 : vector<80x1xf32>
    %167 = math.exp %166 : vector<80x1xf32>
    %168 = arith.mulf %151, %165 : vector<80x80xf32>
    %cst_47 = arith.constant dense<0.000000e+00> : vector<80xf32>
    %169 = vector.multi_reduction <add>, %168, %cst_47 [1] : vector<80x80xf32> to vector<80xf32>
    %170 = vector.shape_cast %169 : vector<80xf32> to vector<80x1xf32>
    %171 = arith.addf %167, %170 : vector<80x1xf32>
    %172 = math.log %171 : vector<80x1xf32>
    %173 = arith.addf %158, %172 : vector<80x1xf32>
    %174 = arith.subf %173, %122 : vector<80x1xf32>
    %cst_48 = arith.constant dense<0.000000e+00> : vector<1xf32>
    %175 = vector.multi_reduction <add>, %174, %cst_48 [0] : vector<80x1xf32> to vector<1xf32>
    %176 = vector.shape_cast %175 : vector<1xf32> to vector<1x1xf32>
    %cst_49 = arith.constant 1.250000e-02 : f32
    %177 = vector.broadcast %cst_49 : f32 to vector<1x1xf32>
    %178 = arith.mulf %176, %177 : vector<1x1xf32>
    %179 = arith.addf %117, %178 : vector<1x1xf32>
    %180 = vector.extract_strided_slice %51 {offsets = [64, 256], sizes = [64, 128], strides = [1, 1]} : vector<128x384xf32> to vector<64x128xf32>
    %181 = vector.extract_strided_slice %47 {offsets = [0, 0], sizes = [64, 128], strides = [1, 1]} : vector<128x128xf32> to vector<64x128xf32>
    %182 = arith.mulf %181, %180 : vector<64x128xf32>
    %cst_50 = arith.constant dense<0.000000e+00> : vector<64xf32>
    %183 = vector.multi_reduction <add>, %182, %cst_50 [1] : vector<64x128xf32> to vector<64xf32>
    %184 = vector.shape_cast %183 : vector<64xf32> to vector<64x1xf32>
    %185 = vector.extract_strided_slice %48 {offsets = [0, 0], sizes = [64, 128], strides = [1, 1]} : vector<128x128xbf16> to vector<64x128xbf16>
    %186 = vector.extract_strided_slice %52 {offsets = [64, 256], sizes = [64, 128], strides = [1, 1]} : vector<128x384xbf16> to vector<64x128xbf16>
    %cst_51 = arith.constant dense<0.000000e+00> : vector<64x64xf32>
    %187 = tpu.matmul %185, %186, %cst_51 {dimension_numbers = #tpu.dot_dimension_numbers<[1], [1], [0], [0], [0, 0, 1, 0], [], []>} : vector<64x128xbf16>, vector<64x128xbf16>, vector<64x64xf32> -> vector<64x64xf32>
    %188 = tpu.iota {dimensions = array<i32: 1>} : vector<64x64xi32>
    %cst_52 = arith.constant 0.000000e+00 : f32
    %189 = vector.broadcast %cst_52 : f32 to vector<64x64xf32>
    %190 = vector.extract_strided_slice %54 {offsets = [0, 8], sizes = [64, 1], strides = [1, 1]} : vector<128x12xi32> to vector<64x1xi32>
    %191 = vector.broadcast %190 : vector<64x1xi32> to vector<64x64xi32>
    %192 = arith.cmpi eq, %188, %191 : vector<64x64xi32>
    %193 = arith.extui %192 : vector<64x64xi1> to vector<64x64xi32>
    %194 = arith.sitofp %193 : vector<64x64xi32> to vector<64x64xf32>
    %195 = arith.addf %189, %194 : vector<64x64xf32>
    %196 = vector.extract_strided_slice %54 {offsets = [0, 9], sizes = [64, 1], strides = [1, 1]} : vector<128x12xi32> to vector<64x1xi32>
    %197 = vector.broadcast %196 : vector<64x1xi32> to vector<64x64xi32>
    %198 = arith.cmpi eq, %188, %197 : vector<64x64xi32>
    %199 = arith.extui %198 : vector<64x64xi1> to vector<64x64xi32>
    %200 = arith.sitofp %199 : vector<64x64xi32> to vector<64x64xf32>
    %201 = arith.addf %195, %200 : vector<64x64xf32>
    %202 = vector.extract_strided_slice %54 {offsets = [0, 10], sizes = [64, 1], strides = [1, 1]} : vector<128x12xi32> to vector<64x1xi32>
    %203 = vector.broadcast %202 : vector<64x1xi32> to vector<64x64xi32>
    %204 = arith.cmpi eq, %188, %203 : vector<64x64xi32>
    %205 = arith.extui %204 : vector<64x64xi1> to vector<64x64xi32>
    %206 = arith.sitofp %205 : vector<64x64xi32> to vector<64x64xf32>
    %207 = arith.addf %201, %206 : vector<64x64xf32>
    %208 = vector.extract_strided_slice %54 {offsets = [0, 11], sizes = [64, 1], strides = [1, 1]} : vector<128x12xi32> to vector<64x1xi32>
    %209 = vector.broadcast %208 : vector<64x1xi32> to vector<64x64xi32>
    %210 = arith.cmpi eq, %188, %209 : vector<64x64xi32>
    %211 = arith.extui %210 : vector<64x64xi1> to vector<64x64xi32>
    %212 = arith.sitofp %211 : vector<64x64xi32> to vector<64x64xf32>
    %213 = arith.addf %207, %212 : vector<64x64xf32>
    %cst_53 = arith.constant 0.000000e+00 : f32
    %214 = vector.broadcast %cst_53 : f32 to vector<64x64xf32>
    %215 = arith.cmpf ogt, %213, %214 : vector<64x64xf32>
    %cst_54 = arith.constant -1.000000e+30 : f32
    %216 = vector.broadcast %cst_54 : f32 to vector<64x64xf32>
    %217 = arith.select %215, %187, %216 : vector<64x64xi1>, vector<64x64xf32>
    %cst_55 = arith.constant dense<0xFF800000> : vector<64xf32>
    %218 = vector.multi_reduction <maximumf>, %217, %cst_55 [1] : vector<64x64xf32> to vector<64xf32>
    %219 = vector.shape_cast %218 : vector<64xf32> to vector<64x1xf32>
    %220 = arith.maximumf %184, %219 : vector<64x1xf32>
    %cst_56 = arith.constant 0.000000e+00 : f32
    %221 = vector.broadcast %cst_56 : f32 to vector<64x64xf32>
    %222 = arith.cmpf ogt, %213, %221 : vector<64x64xf32>
    %223 = vector.broadcast %220 : vector<64x1xf32> to vector<64x64xf32>
    %224 = arith.subf %187, %223 : vector<64x64xf32>
    %cst_57 = arith.constant -1.000000e+30 : f32
    %225 = vector.broadcast %cst_57 : f32 to vector<64x64xf32>
    %226 = arith.select %222, %224, %225 : vector<64x64xi1>, vector<64x64xf32>
    %227 = math.exp %226 : vector<64x64xf32>
    %228 = arith.subf %184, %220 : vector<64x1xf32>
    %229 = math.exp %228 : vector<64x1xf32>
    %230 = arith.mulf %213, %227 : vector<64x64xf32>
    %cst_58 = arith.constant dense<0.000000e+00> : vector<64xf32>
    %231 = vector.multi_reduction <add>, %230, %cst_58 [1] : vector<64x64xf32> to vector<64xf32>
    %232 = vector.shape_cast %231 : vector<64xf32> to vector<64x1xf32>
    %233 = arith.addf %229, %232 : vector<64x1xf32>
    %234 = math.log %233 : vector<64x1xf32>
    %235 = arith.addf %220, %234 : vector<64x1xf32>
    %236 = arith.subf %235, %184 : vector<64x1xf32>
    %cst_59 = arith.constant dense<0.000000e+00> : vector<1xf32>
    %237 = vector.multi_reduction <add>, %236, %cst_59 [0] : vector<64x1xf32> to vector<1xf32>
    %238 = vector.shape_cast %237 : vector<1xf32> to vector<1x1xf32>
    %cst_60 = arith.constant 1.562500e-02 : f32
    %239 = vector.broadcast %cst_60 : f32 to vector<1x1xf32>
    %240 = arith.mulf %238, %239 : vector<1x1xf32>
    %241 = arith.addf %179, %240 : vector<1x1xf32>
    %cst_61 = arith.constant 0.333333343 : f32
    %242 = vector.broadcast %cst_61 : f32 to vector<1x1xf32>
    %243 = arith.mulf %241, %242 : vector<1x1xf32>
    %244 = vector.shape_cast %243 : vector<1x1xf32> to vector<1x1x1xf32>
    %245 = vector.broadcast %244 : vector<1x1x1xf32> to vector<1x1x128xf32>
    %c0_62 = arith.constant 0 : index
    %c0_63 = arith.constant 0 : index
    %c0_64 = arith.constant 0 : index
    %246 = vector.load %arg8[%c0_62, %c0_63, %c0_64] : memref<1x1x128xf32, #tpu.memory_space<vmem>>, vector<1x1x128xf32>
    tpu.vector_store %arg8[%c0_62, %c0_63, %c0_64], %245 {strides = array<i32>} : memref<1x1x128xf32, #tpu.memory_space<vmem>>, vector<1x1x128xf32>,
    return
  }
  func.func @transform_0(%arg0: i32) -> (i32, i32, i32) {
    %c0_i32 = arith.constant 0 : i32
    %c0_i32_0 = arith.constant 0 : i32
    %c0_i32_1 = arith.constant 0 : i32
    return %arg0, %c0_i32, %c0_i32_0 : i32, i32, i32
  }
  func.func @transform_1(%arg0: i32) -> (i32, i32) {
    %c0_i32 = arith.constant 0 : i32
    %c0_i32_0 = arith.constant 0 : i32
    %c0_i32_1 = arith.constant 0 : i32
    return %c0_i32, %c0_i32_0 : i32, i32
  }
  func.func @transform_2(%arg0: i32) -> (i32, i32) {
    %c0_i32 = arith.constant 0 : i32
    %c0_i32_0 = arith.constant 0 : i32
    %c0_i32_1 = arith.constant 0 : i32
    return %c0_i32, %c0_i32_0 : i32, i32
  }
  func.func @transform_3(%arg0: i32) -> (i32, i32) {
    %c0_i32 = arith.constant 0 : i32
    %c0_i32_0 = arith.constant 0 : i32
    %c0_i32_1 = arith.constant 0 : i32
    return %c0_i32, %c0_i32_0 : i32, i32
  }
  func.func @transform_4(%arg0: i32) -> (i32, i32) {
    %c0_i32 = arith.constant 0 : i32
    %c0_i32_0 = arith.constant 0 : i32
    %c0_i32_1 = arith.constant 0 : i32
    return %c0_i32, %c0_i32_0 : i32, i32
  }
  func.func @transform_5(%arg0: i32) -> (i32, i32, i32) {
    %c0_i32 = arith.constant 0 : i32
    %c0_i32_0 = arith.constant 0 : i32
    %c0_i32_1 = arith.constant 0 : i32
    return %arg0, %c0_i32, %c0_i32_0 : i32, i32, i32
  }
  func.func @transform_6(%arg0: i32) -> (i32, i32, i32) {
    %c0_i32 = arith.constant 0 : i32
    %c0_i32_0 = arith.constant 0 : i32
    %c0_i32_1 = arith.constant 0 : i32
    return %arg0, %c0_i32, %c0_i32_0 : i32, i32, i32
  }
  func.func @transform_7(%arg0: i32) -> (i32, i32, i32) {
    %c0_i32 = arith.constant 0 : i32
    %c0_i32_0 = arith.constant 0 : i32
    %c0_i32_1 = arith.constant 0 : i32
    return %arg0, %c0_i32, %c0_i32_0 : i32, i32, i32
  }
}

</mosaic_0001>

<llo_original>
// kernel: cpc_forward.3
$region0: #{cpc_forward.3}
  #allocation0 [shape = 'u32[]', space=smem, size = 0x4, offset = 0x4, fixed_abs, tag = 'smem constant byte address 0x4 - core index']
  #allocation1 [shape = 'u32[72,128]{1,0:T(1,128)}', space=vmem, size = 0x9000, scoped, tag = 'internal scratch']
  %s0 = inlined_call_operand.vmem [shape: bf16[2,128,128], index: 0, kind: input, shape index: {}]
  %s1 = inlined_call_operand.vmem [shape: bf16[128,128], index: 1, kind: input, shape index: {}]
  %s2 = inlined_call_operand.vmem [shape: f32[1,128], index: 2, kind: input, shape index: {}]
  %s3 = inlined_call_operand.vmem [shape: bf16[128,128], index: 3, kind: input, shape index: {}]
  %s4 = inlined_call_operand.vmem [shape: f32[1,128], index: 4, kind: input, shape index: {}]
  %s5 = inlined_call_operand.vmem [shape: bf16[2,128,384], index: 5, kind: input, shape index: {}]
  %s6 = inlined_call_operand.vmem [shape: s32[2,128,12], index: 6, kind: input, shape index: {}]
  %s7 = inlined_call_operand.vmem [shape: f32[2,1,128], index: 7, kind: output, shape index: {}]
  %s8 = sld [smem:[#allocation0]]
  $region61: #{cpc_forward.3} parent=0
    _
  %s10 = ssub.s32 1, %s8
  %s11 = scalar_select 0, %s10, %s8
  loop: start=0, step=1, limit=4
  $region2: #{cpc_forward.3} parent=0 // loop_pre_header
    _
  $region3: #{cpc_forward.3} parent=0 // loop_header
    %s13 = sphi 0, %s17
    %p14 = scmp.ge.s32.totalorder %s13, 4
    %s23 = sphi 0, %s25
    %s26 = sphi 0, %s23
    %s27 = sphi 0, %s26
    %s43 = sphi 0, %s27
    %s47 = sphi 0, %s47
    %s49 = sphi 0, %s47
    %s50 = sphi 0, %s49
    %s64 = sphi 0, %s50
    %s68 = sphi 0, %s68
    %s70 = sphi 0, %s68
    %s71 = sphi 0, %s70
    %s85 = sphi 0, %s71
    %s89 = sphi 0, %s89
    %s91 = sphi 0, %s89
    %s92 = sphi 0, %s91
    %s106 = sphi 0, %s92
    %s110 = sphi 0, %s110
    %s112 = sphi 0, %s110
    %s113 = sphi 0, %s112
    %s127 = sphi 0, %s113
    %s133 = sphi 0, %s135
    %s136 = sphi 0, %s133
    %s137 = sphi 0, %s136
    %s153 = sphi 0, %s137
    %s159 = sphi 0, %s161
    %s162 = sphi 0, %s159
    %s163 = sphi 0, %s162
    %s179 = sphi 0, %s163
    %s185 = sphi 0, %s187
    %s188 = sphi 0, %s185
    %s189 = sphi 0, %s188
    %s205 = sphi 0, %s189
  $region4: #{cpc_forward.3} parent=0 // loop_header_branch
    %16 = sbr.rel (%p14) target = $region8
  $region5: #{cpc_forward.3} parent=0 // loop_body
    %s18 = ssub.s32 %s13, 1
    %s19 = ssub.s32 %s13, 2
    %s20 = sadd.s32 %s13, 1
    %s21 = ssub.s32 %s13, %s20
    %p22 = scmp.eq.s32.totalorder %s21, 0
    %s24 = sadd.s32 %s23, 1
    %s25 = scalar_select %p22, %s23, %s24
    %p28 = pneg %p22
    %p29 = scmp.eq.s32.totalorder %s13, 1
    %p30 = por %p28, %p29
    %p31 = scmp.ne.s32.totalorder %s23, %s26
    %p32 = scmp.eq.s32.totalorder %s13, 0
    %p33 = por %p31, %p32
    %p34 = scmp.ne.s32.totalorder %s23, %s26
    %p35 = scmp.eq.s32.totalorder %s18, 1
    %p36 = por %p34, %p35
    %p37 = scmp.ne.s32.totalorder %s26, %s27
    %p38 = scmp.eq.s32.totalorder %s18, 0
    %p39 = por %p37, %p38
    %p40 = scmp.ne.s32.totalorder %s26, %s27
    %p41 = scmp.eq.s32.totalorder %s19, 1
    %p42 = por %p40, %p41
    %p44 = scmp.ne.s32.totalorder %s27, %s43
    %p45 = scmp.eq.s32.totalorder %s19, 0
    %p46 = por %p44, %p45
    %s48 = sadd.s32 %s47, 1
    %p51 = scmp.eq.s32.totalorder %s13, 1
    %p52 = scmp.ne.s32.totalorder %s47, %s49
    %p53 = scmp.eq.s32.totalorder %s13, 0
    %p54 = por %p52, %p53
    %p55 = scmp.ne.s32.totalorder %s47, %s49
    %p56 = scmp.eq.s32.totalorder %s18, 1
    %p57 = por %p55, %p56
    %p58 = scmp.ne.s32.totalorder %s49, %s50
    %p59 = scmp.eq.s32.totalorder %s18, 0
    %p60 = por %p58, %p59
    %p61 = scmp.ne.s32.totalorder %s49, %s50
    %p62 = scmp.eq.s32.totalorder %s19, 1
    %p63 = por %p61, %p62
    %p65 = scmp.ne.s32.totalorder %s50, %s64
    %p66 = scmp.eq.s32.totalorder %s19, 0
    %p67 = por %p65, %p66
    %s69 = sadd.s32 %s68, 1
    %p72 = scmp.eq.s32.totalorder %s13, 1
    %p73 = scmp.ne.s32.totalorder %s68, %s70
    %p74 = scmp.eq.s32.totalorder %s13, 0
    %p75 = por %p73, %p74
    %p76 = scmp.ne.s32.totalorder %s68, %s70
    %p77 = scmp.eq.s32.totalorder %s18, 1
    %p78 = por %p76, %p77
    %p79 = scmp.ne.s32.totalorder %s70, %s71
    %p80 = scmp.eq.s32.totalorder %s18, 0
    %p81 = por %p79, %p80
    %p82 = scmp.ne.s32.totalorder %s70, %s71
    %p83 = scmp.eq.s32.totalorder %s19, 1
    %p84 = por %p82, %p83
    %p86 = scmp.ne.s32.totalorder %s71, %s85
    %p87 = scmp.eq.s32.totalorder %s19, 0
    %p88 = por %p86, %p87
    %s90 = sadd.s32 %s89, 1
    %p93 = scmp.eq.s32.totalorder %s13, 1
    %p94 = scmp.ne.s32.totalorder %s89, %s91
    %p95 = scmp.eq.s32.totalorder %s13, 0
    %p96 = por %p94, %p95
    %p97 = scmp.ne.s32.totalorder %s89, %s91
    %p98 = scmp.eq.s32.totalorder %s18, 1
    %p99 = por %p97, %p98
    %p100 = scmp.ne.s32.totalorder %s91, %s92
    %p101 = scmp.eq.s32.totalorder %s18, 0
    %p102 = por %p100, %p101
    %p103 = scmp.ne.s32.totalorder %s91, %s92
    %p104 = scmp.eq.s32.totalorder %s19, 1
    %p105 = por %p103, %p104
    %p107 = scmp.ne.s32.totalorder %s92, %s106
    %p108 = scmp.eq.s32.totalorder %s19, 0
    %p109 = por %p107, %p108
    %s111 = sadd.s32 %s110, 1
    %p114 = scmp.eq.s32.totalorder %s13, 1
    %p115 = scmp.ne.s32.totalorder %s110, %s112
    %p116 = scmp.eq.s32.totalorder %s13, 0
    %p117 = por %p115, %p116
    %p118 = scmp.ne.s32.totalorder %s110, %s112
    %p119 = scmp.eq.s32.totalorder %s18, 1
    %p120 = por %p118, %p119
    %p121 = scmp.ne.s32.totalorder %s112, %s113
    %p122 = scmp.eq.s32.totalorder %s18, 0
    %p123 = por %p121, %p122
    %p124 = scmp.ne.s32.totalorder %s112, %s113
    %p125 = scmp.eq.s32.totalorder %s19, 1
    %p126 = por %p124, %p125
    %p128 = scmp.ne.s32.totalorder %s113, %s127
    %p129 = scmp.eq.s32.totalorder %s19, 0
    %p130 = por %p128, %p129
    %s131 = ssub.s32 %s13, %s20
    %p132 = scmp.eq.s32.totalorder %s131, 0
    %s134 = sadd.s32 %s133, 1
    %s135 = scalar_select %p132, %s133, %s134
    %p138 = pneg %p132
    %p139 = scmp.eq.s32.totalorder %s13, 1
    %p140 = por %p138, %p139
    %p141 = scmp.ne.s32.totalorder %s133, %s136
    %p142 = scmp.eq.s32.totalorder %s13, 0
    %p143 = por %p141, %p142
    %p144 = scmp.ne.s32.totalorder %s133, %s136
    %p145 = scmp.eq.s32.totalorder %s18, 1
    %p146 = por %p144, %p145
    %p147 = scmp.ne.s32.totalorder %s136, %s137
    %p148 = scmp.eq.s32.totalorder %s18, 0
    %p149 = por %p147, %p148
    %p150 = scmp.ne.s32.totalorder %s136, %s137
    %p151 = scmp.eq.s32.totalorder %s19, 1
    %p152 = por %p150, %p151
    %p154 = scmp.ne.s32.totalorder %s137, %s153
    %p155 = scmp.eq.s32.totalorder %s19, 0
    %p156 = por %p154, %p155
    %s157 = ssub.s32 %s13, %s20
    %p158 = scmp.eq.s32.totalorder %s157, 0
    %s160 = sadd.s32 %s159, 1
    %s161 = scalar_select %p158, %s159, %s160
    %p164 = pneg %p158
    %p165 = scmp.eq.s32.totalorder %s13, 1
    %p166 = por %p164, %p165
    %p167 = scmp.ne.s32.totalorder %s159, %s162
    %p168 = scmp.eq.s32.totalorder %s13, 0
    %p169 = por %p167, %p168
    %p170 = scmp.ne.s32.totalorder %s159, %s162
    %p171 = scmp.eq.s32.totalorder %s18, 1
    %p172 = por %p170, %p171
    %p173 = scmp.ne.s32.totalorder %s162, %s163
    %p174 = scmp.eq.s32.totalorder %s18, 0
    %p175 = por %p173, %p174
    %p176 = scmp.ne.s32.totalorder %s162, %s163
    %p177 = scmp.eq.s32.totalorder %s19, 1
    %p178 = por %p176, %p177
    %p180 = scmp.ne.s32.totalorder %s163, %s179
    %p181 = scmp.eq.s32.totalorder %s19, 0
    %p182 = por %p180, %p181
    %s183 = ssub.s32 %s13, %s20
    %p184 = scmp.eq.s32.totalorder %s183, 0
    %s186 = sadd.s32 %s185, 1
    %s187 = scalar_select %p184, %s185, %s186
    %p190 = pneg %p184
    %p191 = scmp.eq.s32.totalorder %s13, 1
    %p192 = por %p190, %p191
    %p193 = scmp.ne.s32.totalorder %s185, %s188
    %p194 = scmp.eq.s32.totalorder %s13, 0
    %p195 = por %p193, %p194
    %p196 = scmp.ne.s32.totalorder %s185, %s188
    %p197 = scmp.eq.s32.totalorder %s18, 1
    %p198 = por %p196, %p197
    %p199 = scmp.ne.s32.totalorder %s188, %s189
    %p200 = scmp.eq.s32.totalorder %s18, 0
    %p201 = por %p199, %p200
    %p202 = scmp.ne.s32.totalorder %s188, %s189
    %p203 = scmp.eq.s32.totalorder %s19, 1
    %p204 = por %p202, %p203
    %p206 = scmp.ne.s32.totalorder %s189, %s205
    %p207 = scmp.eq.s32.totalorder %s19, 0
    %p208 = por %p206, %p207
    %p209 = scmp.le.s32.totalorder 1, %s13
    %p210 = scmp.lt.s32.totalorder %s13, 3
    %p211 = pnand %p209, %p210
    %p212 = pneg %p211
    // Predicated region
    $region9: #{cpc_forward.3} parent=5 // pred_check
      _
    $region10: #{cpc_forward.3} parent=5 // pred_check_branch
      %214 = sbr.rel (%p211) target = $region12
    $region11: #{cpc_forward.3} parent=5 // pred_region
      %s215 = ssub.s32 %s13, 1
      // Predicated region
      $region13: #{cpc_forward.3} parent=11 // pred_check
        %p216 = pneg %p60
      $region14: #{cpc_forward.3} parent=11 // pred_check_branch
        %218 = sbr.rel (%p216) target = $region16
      $region15: #{cpc_forward.3} parent=11 // pred_region
        _
      $region16: #{cpc_forward.3} parent=11 // pred_fallthru
        _
      // Predicated region
      $region17: #{cpc_forward.3} parent=11 // pred_check
        %p219 = pneg %p81
      $region18: #{cpc_forward.3} parent=11 // pred_check_branch
        %221 = sbr.rel (%p219) target = $region20
      $region19: #{cpc_forward.3} parent=11 // pred_region
        _
      $region20: #{cpc_forward.3} parent=11 // pred_fallthru
        _
      // Predicated region
      $region21: #{cpc_forward.3} parent=11 // pred_check
        %p222 = pneg %p102
      $region22: #{cpc_forward.3} parent=11 // pred_check_branch
        %224 = sbr.rel (%p222) target = $region24
      $region23: #{cpc_forward.3} parent=11 // pred_region
        _
      $region24: #{cpc_forward.3} parent=11 // pred_fallthru
        _
      // Predicated region
      $region25: #{cpc_forward.3} parent=11 // pred_check
        %p225 = pneg %p123
      $region26: #{cpc_forward.3} parent=11 // pred_check_branch
        %227 = sbr.rel (%p225) target = $region28
      $region27: #{cpc_forward.3} parent=11 // pred_region
        _
      $region28: #{cpc_forward.3} parent=11 // pred_fallthru
        _
    $region12: #{cpc_forward.3} parent=5 // pred_fallthru
      _
    %p228 = scmp.lt.s32.totalorder %s13, 2
    // Predicated region
    $region29: #{cpc_forward.3} parent=5 // pred_check
      %p229 = pneg %p228
    $region30: #{cpc_forward.3} parent=5 // pred_check_branch
      %231 = sbr.rel (%p229) target = $region32
    $region31: #{cpc_forward.3} parent=5 // pred_region
      // Predicated region
      $region33: #{cpc_forward.3} parent=31 // pred_check
        %p232 = pneg %p33
      $region34: #{cpc_forward.3} parent=31 // pred_check_branch
        %234 = sbr.rel (%p232) target = $region36
      $region35: #{cpc_forward.3} parent=31 // pred_region
        %p235 = scmp.lt.s32.totalorder %s13, 1
        %s236 = scalar_select %p235, %s13, 1
        %s237 = smul.addr %s236, 16
        %s238 = smul.addr %s237, 4
        %s239 = scalar_lea.vmem %s0, %s238
      $region36: #{cpc_forward.3} parent=31 // pred_fallthru
        _
      // Predicated region
      $region37: #{cpc_forward.3} parent=31 // pred_check
        %p240 = pneg %p143
      $region38: #{cpc_forward.3} parent=31 // pred_check_branch
        %242 = sbr.rel (%p240) target = $region40
      $region39: #{cpc_forward.3} parent=31 // pred_region
        %p243 = scmp.lt.s32.totalorder %s13, 1
        %s244 = scalar_select %p243, %s13, 1
        %s245 = smul.addr %s244, 48
        %s246 = smul.addr %s245, 4
        %s247 = scalar_lea.vmem %s5, %s246
      $region40: #{cpc_forward.3} parent=31 // pred_fallthru
        _
      // Predicated region
      $region41: #{cpc_forward.3} parent=31 // pred_check
        %p248 = pneg %p169
      $region42: #{cpc_forward.3} parent=31 // pred_check_branch
        %250 = sbr.rel (%p248) target = $region44
      $region43: #{cpc_forward.3} parent=31 // pred_region
        %p251 = scmp.lt.s32.totalorder %s13, 1
        %s252 = scalar_select %p251, %s13, 1
        %s253 = smul.addr %s252, 16
        %s254 = smul.addr %s253, 8
        %s255 = scalar_lea.vmem %s6, %s254
      $region44: #{cpc_forward.3} parent=31 // pred_fallthru
        _
    $region32: #{cpc_forward.3} parent=5 // pred_fallthru
      _
    %p256 = scmp.le.s32.totalorder 1, %s13
    %p257 = scmp.lt.s32.totalorder %s13, 3
    %p258 = pnand %p256, %p257
    %p259 = pneg %p258
    // Predicated region
    $region45: #{cpc_forward.3} parent=5 // pred_check
      _
    $region46: #{cpc_forward.3} parent=5 // pred_check_branch
      %261 = sbr.rel (%p258) target = $region48
    $region47: #{cpc_forward.3} parent=5 // pred_region
      %s262 = ssub.s32 %s13, 1
      %p263 = scmp.lt.s32.totalorder %s18, 1
      %s264 = scalar_select %p263, %s18, 1
      %s265 = smul.addr %s264, 16
      %s266 = smul.addr %s265, 4
      %s267 = scalar_lea.vmem %s0, %s266
      %p268 = pneg %p39
      %p269 = pneg %p36
      %p270 = pneg %p60
      %p271 = pneg %p57
      %p272 = pneg %p81
      %p273 = pneg %p78
      %p274 = pneg %p102
      %p275 = pneg %p99
      %p276 = pneg %p123
      %p277 = pneg %p120
      %p278 = scmp.lt.s32.totalorder %s18, 1
      %s279 = scalar_select %p278, %s18, 1
      %s280 = smul.addr %s279, 48
      %s281 = smul.addr %s280, 4
      %s282 = scalar_lea.vmem %s5, %s281
      %p283 = pneg %p149
      %p284 = pneg %p146
      %p285 = scmp.lt.s32.totalorder %s18, 1
      %s286 = scalar_select %p285, %s18, 1
      %s287 = smul.addr %s286, 16
      %s288 = smul.addr %s287, 8
      %s289 = scalar_lea.vmem %s6, %s288
      %p290 = pneg %p175
      %p291 = pneg %p172
      %p292 = pneg %p201
      %p293 = pneg %p198
      %p294 = scmp.lt.s32.totalorder %s18, 1
      %s295 = scalar_select %p294, %s18, 1
      %s296 = scalar_lea.vmem %s7, %s295
      %p297 = scmp.lt.s32.totalorder %s18, 1
      %s298 = scalar_select %p297, %s18, 1
      %s299 = smul.addr %s298, 16
      %s300 = smul.addr %s299, 4
      %s301 = scalar_lea.vmem %s0, %s300
      %p302 = scmp.lt.s32.totalorder %s18, 1
      %s303 = scalar_select %p302, %s18, 1
      %s304 = smul.addr %s303, 48
      %s305 = smul.addr %s304, 4
      %s306 = scalar_lea.vmem %s5, %s305
      %p307 = scmp.lt.s32.totalorder %s18, 1
      %s308 = scalar_select %p307, %s18, 1
      %s309 = smul.addr %s308, 16
      %s310 = smul.addr %s309, 8
      %s311 = scalar_lea.vmem %s6, %s310
      %p312 = scmp.lt.s32.totalorder %s18, 1
      %s313 = scalar_select %p312, %s18, 1
      %s314 = scalar_lea.vmem %s7, %s313
      %v316 = vld [vmem:[%s301] sm:$0xf]
      %v317 = vld [vmem:[%s301 + $0x4] sm:$0xf]
      %v318 = vld [vmem:[%s301 + $0x8] sm:$0xf]
      %v319 = vld [vmem:[%s301 + $0xc] sm:$0xf]
      %v320 = vld [vmem:[%s301 + $0x10] sm:$0xf]
      %v321 = vld [vmem:[%s301 + $0x14] sm:$0xf]
      %v322 = vld [vmem:[%s301 + $0x18] sm:$0xf]
      %v323 = vld [vmem:[%s301 + $0x1c] sm:$0xf]
      %v324 = vld [vmem:[%s301 + $0x20] sm:$0xf]
      %v325 = vld [vmem:[%s301 + $0x24] sm:$0xf]
      %v326 = vld [vmem:[%s301 + $0x28] sm:$0xf]
      %v327 = vld [vmem:[%s301 + $0x2c] sm:$0xf]
      %v328 = vld [vmem:[%s301 + $0x30] sm:$0xf]
      %v329 = vld [vmem:[%s301 + $0x34] sm:$0xf]
      %v330 = vld [vmem:[%s301 + $0x38] sm:$0xf]
      %v331 = vld [vmem:[%s301 + $0x3c] sm:$0xf]
      %v332 = vld [vmem:[%s1] sm:$0xf]
      %v333 = vld [vmem:[%s1 + $0x4] sm:$0xf]
      %v334 = vld [vmem:[%s1 + $0x8] sm:$0xf]
      %v335 = vld [vmem:[%s1 + $0xc] sm:$0xf]
      %v336 = vld [vmem:[%s1 + $0x10] sm:$0xf]
      %v337 = vld [vmem:[%s1 + $0x14] sm:$0xf]
      %v338 = vld [vmem:[%s1 + $0x18] sm:$0xf]
      %v339 = vld [vmem:[%s1 + $0x1c] sm:$0xf]
      %v340 = vld [vmem:[%s1 + $0x20] sm:$0xf]
      %v341 = vld [vmem:[%s1 + $0x24] sm:$0xf]
      %v342 = vld [vmem:[%s1 + $0x28] sm:$0xf]
      %v343 = vld [vmem:[%s1 + $0x2c] sm:$0xf]
      %v344 = vld [vmem:[%s1 + $0x30] sm:$0xf]
      %v345 = vld [vmem:[%s1 + $0x34] sm:$0xf]
      %v346 = vld [vmem:[%s1 + $0x38] sm:$0xf]
      %v347 = vld [vmem:[%s1 + $0x3c] sm:$0xf]
      %v348 = vld [vmem:[%s2] sm:$0x1]
      %v350 = vperm.slane %v348, 0
      %v368 = vunpack.c.l.b16 %v316
      %v369 = vunpack.c.l.b16 %v317
      %v370 = vunpack.c.l.b16 %v318
      %v371 = vunpack.c.l.b16 %v319
      %v372 = vunpack.c.l.b16 %v320
      %v373 = vunpack.c.l.b16 %v321
      %v374 = vunpack.c.l.b16 %v322
      %v375 = vunpack.c.l.b16 %v323
      %v376 = vunpack.c.l.b16 %v324
      %v377 = vunpack.c.l.b16 %v325
      %v378 = vunpack.c.l.b16 %v326
      %v379 = vunpack.c.l.b16 %v327
      %v380 = vunpack.c.l.b16 %v328
      %v381 = vunpack.c.l.b16 %v329
      %v382 = vunpack.c.l.b16 %v330
      %v383 = vunpack.c.l.b16 %v331
      %v384 = vpack.c.b16 %v369, %v368
      %v385 = vpack.c.b16 %v371, %v370
      %v386 = vpack.c.b16 %v373, %v372
      %v387 = vpack.c.b16 %v375, %v374
      %v388 = vpack.c.b16 %v377, %v376
      %v389 = vpack.c.b16 %v379, %v378
      %v390 = vpack.c.b16 %v381, %v380
      %v391 = vpack.c.b16 %v383, %v382
      %v416 = vunpack.c.l.b16 %v332
      %v417 = vunpack.c.l.b16 %v333
      %v418 = vunpack.c.l.b16 %v334
      %v419 = vunpack.c.l.b16 %v335
      %v420 = vunpack.c.l.b16 %v336
      %v421 = vunpack.c.l.b16 %v337
      %v422 = vunpack.c.l.b16 %v338
      %v423 = vunpack.c.l.b16 %v339
      %v424 = vunpack.c.l.b16 %v340
      %v425 = vunpack.c.l.b16 %v341
      %v426 = vunpack.c.l.b16 %v342
      %v427 = vunpack.c.l.b16 %v343
      %v428 = vunpack.c.l.b16 %v344
      %v429 = vunpack.c.l.b16 %v345
      %v430 = vunpack.c.l.b16 %v346
      %v431 = vunpack.c.l.b16 %v347
      %v432 = vpack.c.b16 %v417, %v416
      %v433 = vpack.c.b16 %v419, %v418
      %v434 = vpack.c.b16 %v421, %v420
      %v435 = vpack.c.b16 %v423, %v422
      %v436 = vpack.c.b16 %v425, %v424
      %v437 = vpack.c.b16 %v427, %v426
      %v438 = vpack.c.b16 %v429, %v428
      %v439 = vpack.c.b16 %v431, %v430
      %448 = vmatpush.bf16.msra.mxu0 %v439
      %449 = vmatpush.bf16.msra.mxu0 %v438
      %450 = vmatpush.bf16.msra.mxu0 %v437
      %451 = vmatpush.bf16.msra.mxu0 %v436
      %452 = vmatpush.bf16.msra.mxu0 %v435
      %453 = vmatpush.bf16.msra.mxu0 %v434
      %454 = vmatpush.bf16.msra.mxu0 %v433
      %455 = vmatpush.bf16.msra.mxu0 %v432
      %456 = vmatmul.bf16.gmra.mxu0 %v384
      %v457 = vpop.f32.mrf.mxu0
      %v458 = vadd.f32 %v350, %v457
      %v459 = vpop.f32.mrf.mxu0
      %v460 = vadd.f32 %v350, %v459
      %461 = vmatmul.bf16.gmra.mxu0 %v385
      %v462 = vpop.f32.mrf.mxu0
      %v463 = vadd.f32 %v350, %v462
      %v464 = vpop.f32.mrf.mxu0
      %v465 = vadd.f32 %v350, %v464
      %466 = vmatmul.bf16.gmra.mxu0 %v386
      %v467 = vpop.f32.mrf.mxu0
      %v468 = vadd.f32 %v350, %v467
      %v469 = vpop.f32.mrf.mxu0
      %v470 = vadd.f32 %v350, %v469
      %471 = vmatmul.bf16.gmra.mxu0 %v387
      %v472 = vpop.f32.mrf.mxu0
      %v473 = vadd.f32 %v350, %v472
      %v474 = vpop.f32.mrf.mxu0
      %v475 = vadd.f32 %v350, %v474
      %476 = vmatmul.bf16.gmra.mxu0 %v388
      %v477 = vpop.f32.mrf.mxu0
      %v478 = vadd.f32 %v350, %v477
      %v479 = vpop.f32.mrf.mxu0
      %v480 = vadd.f32 %v350, %v479
      %481 = vmatmul.bf16.gmra.mxu0 %v389
      %v482 = vpop.f32.mrf.mxu0
      %v483 = vadd.f32 %v350, %v482
      %v484 = vpop.f32.mrf.mxu0
      %v485 = vadd.f32 %v350, %v484
      %486 = vmatmul.bf16.gmra.mxu0 %v390
      %v487 = vpop.f32.mrf.mxu0
      %v488 = vadd.f32 %v350, %v487
      %v489 = vpop.f32.mrf.mxu0
      %v490 = vadd.f32 %v350, %v489
      %491 = vmatmul.bf16.gmra.mxu0 %v391
      %v492 = vpop.f32.mrf.mxu0
      %v493 = vadd.f32 %v350, %v492
      %v494 = vpop.f32.mrf.mxu0
      %v495 = vadd.f32 %v350, %v494
      %496 = vdwg.mxu0
      %v497 = vmax.f32 %v458, 0.0
      %v498 = vmax.f32 %v460, 0.0
      %v499 = vmax.f32 %v463, 0.0
      %v500 = vmax.f32 %v465, 0.0
      %v501 = vmax.f32 %v468, 0.0
      %v502 = vmax.f32 %v470, 0.0
      %v503 = vmax.f32 %v473, 0.0
      %v504 = vmax.f32 %v475, 0.0
      %v505 = vmax.f32 %v478, 0.0
      %v506 = vmax.f32 %v480, 0.0
      %v507 = vmax.f32 %v483, 0.0
      %v508 = vmax.f32 %v485, 0.0
      %v509 = vmax.f32 %v488, 0.0
      %v510 = vmax.f32 %v490, 0.0
      %v511 = vmax.f32 %v493, 0.0
      %v512 = vmax.f32 %v495, 0.0
      %v513 = vpack.c.bf16 %v498, %v497
      %v514 = vpack.c.bf16 %v500, %v499
      %v515 = vpack.c.bf16 %v502, %v501
      %v516 = vpack.c.bf16 %v504, %v503
      %v517 = vpack.c.bf16 %v506, %v505
      %v518 = vpack.c.bf16 %v508, %v507
      %v519 = vpack.c.bf16 %v510, %v509
      %v520 = vpack.c.bf16 %v512, %v511
      %v521 = vadd.f32 %v497, %v499
      %v522 = vadd.f32 %v498, %v500
      %v523 = vmul.f32 %v521, 0.5
      %v524 = vmul.f32 %v522, 0.5
      %v525 = vadd.f32 %v521, %v501
      %v526 = vadd.f32 %v522, %v502
      %v527 = vmul.f32 %v525, 0.33333334
      %v528 = vmul.f32 %v526, 0.33333334
      %v529 = vadd.f32 %v525, %v503
      %v530 = vadd.f32 %v526, %v504
      %v531 = vmul.f32 %v529, 0.25
      %v532 = vmul.f32 %v530, 0.25
      %v533 = vadd.f32 %v529, %v505
      %v534 = vadd.f32 %v530, %v506
      %v535 = vmul.f32 %v533, 0.2
      %v536 = vmul.f32 %v534, 0.2
      %v537 = vadd.f32 %v533, %v507
      %v538 = vadd.f32 %v534, %v508
      %v539 = vmul.f32 %v537, 0.16666667
      %v540 = vmul.f32 %v538, 0.16666667
      %v541 = vadd.f32 %v537, %v509
      %v542 = vadd.f32 %v538, %v510
      %v543 = vmul.f32 %v541, 0.14285715
      %v544 = vmul.f32 %v542, 0.14285715
      %v545 = vadd.f32 %v541, %v511
      %v546 = vadd.f32 %v542, %v512
      %v547 = vmul.f32 %v545, 0.125
      %v548 = vmul.f32 %v546, 0.125
      %v549 = vpack.c.bf16 %v524, %v523
      %v550 = vpack.c.bf16 %v528, %v527
      %v551 = vpack.c.bf16 %v532, %v531
      %v552 = vpack.c.bf16 %v536, %v535
      %v553 = vpack.c.bf16 %v540, %v539
      %v554 = vpack.c.bf16 %v544, %v543
      %v555 = vpack.c.bf16 %v548, %v547
      %v556 = vld [vmem:[%s3] sm:$0xf]
      %v557 = vld [vmem:[%s3 + $0x4] sm:$0xf]
      %v558 = vld [vmem:[%s3 + $0x8] sm:$0xf]
      %v559 = vld [vmem:[%s3 + $0xc] sm:$0xf]
      %v560 = vld [vmem:[%s3 + $0x10] sm:$0xf]
      %v561 = vld [vmem:[%s3 + $0x14] sm:$0xf]
      %v562 = vld [vmem:[%s3 + $0x18] sm:$0xf]
      %v563 = vld [vmem:[%s3 + $0x1c] sm:$0xf]
      %v564 = vld [vmem:[%s3 + $0x20] sm:$0xf]
      %v565 = vld [vmem:[%s3 + $0x24] sm:$0xf]
      %v566 = vld [vmem:[%s3 + $0x28] sm:$0xf]
      %v567 = vld [vmem:[%s3 + $0x2c] sm:$0xf]
      %v568 = vld [vmem:[%s3 + $0x30] sm:$0xf]
      %v569 = vld [vmem:[%s3 + $0x34] sm:$0xf]
      %v570 = vld [vmem:[%s3 + $0x38] sm:$0xf]
      %v571 = vld [vmem:[%s3 + $0x3c] sm:$0xf]
      %v572 = vld [vmem:[%s4] sm:$0x1]
      %v574 = vperm.slane %v572, 0
      %v592 = vunpack.c.l.b16 %v556
      %v593 = vunpack.c.l.b16 %v557
      %v594 = vunpack.c.l.b16 %v558
      %v595 = vunpack.c.l.b16 %v559
      %v596 = vunpack.c.l.b16 %v560
      %v597 = vunpack.c.l.b16 %v561
      %v598 = vunpack.c.l.b16 %v562
      %v599 = vunpack.c.l.b16 %v563
      %v600 = vunpack.c.l.b16 %v564
      %v601 = vunpack.c.l.b16 %v565
      %v602 = vunpack.c.l.b16 %v566
      %v603 = vunpack.c.l.b16 %v567
      %v604 = vunpack.c.l.b16 %v568
      %v605 = vunpack.c.l.b16 %v569
      %v606 = vunpack.c.l.b16 %v570
      %v607 = vunpack.c.l.b16 %v571
      %v608 = vpack.c.b16 %v593, %v592
      %v609 = vpack.c.b16 %v595, %v594
      %v610 = vpack.c.b16 %v597, %v596
      %v611 = vpack.c.b16 %v599, %v598
      %v612 = vpack.c.b16 %v601, %v600
      %v613 = vpack.c.b16 %v603, %v602
      %v614 = vpack.c.b16 %v605, %v604
      %v615 = vpack.c.b16 %v607, %v606
      %624 = vmatpush.bf16.msra.mxu0 %v615
      %625 = vmatpush.bf16.msra.mxu0 %v614
      %626 = vmatpush.bf16.msra.mxu0 %v613
      %627 = vmatpush.bf16.msra.mxu0 %v612
      %628 = vmatpush.bf16.msra.mxu0 %v611
      %629 = vmatpush.bf16.msra.mxu0 %v610
      %630 = vmatpush.bf16.msra.mxu0 %v609
      %631 = vmatpush.bf16.msra.mxu0 %v608
      %632 = vmatmul.bf16.gmra.mxu0 %v513
      %v633 = vpop.f32.mrf.mxu0
      %v634 = vadd.f32 %v574, %v633
      %v635 = vpop.f32.mrf.mxu0
      %v636 = vadd.f32 %v574, %v635
      %637 = vmatmul.bf16.gmra.mxu0 %v549
      %v638 = vpop.f32.mrf.mxu0
      %v639 = vadd.f32 %v574, %v638
      %v640 = vpop.f32.mrf.mxu0
      %v641 = vadd.f32 %v574, %v640
      %642 = vmatmul.bf16.gmra.mxu0 %v550
      %v643 = vpop.f32.mrf.mxu0
      %v644 = vadd.f32 %v574, %v643
      %v645 = vpop.f32.mrf.mxu0
      %v646 = vadd.f32 %v574, %v645
      %647 = vmatmul.bf16.gmra.mxu0 %v551
      %v648 = vpop.f32.mrf.mxu0
      %v649 = vadd.f32 %v574, %v648
      %v650 = vpop.f32.mrf.mxu0
      %v651 = vadd.f32 %v574, %v650
      %652 = vmatmul.bf16.gmra.mxu0 %v552
      %v653 = vpop.f32.mrf.mxu0
      %v654 = vadd.f32 %v574, %v653
      %v655 = vpop.f32.mrf.mxu0
      %v656 = vadd.f32 %v574, %v655
      %657 = vmatmul.bf16.gmra.mxu0 %v553
      %v658 = vpop.f32.mrf.mxu0
      %v659 = vadd.f32 %v574, %v658
      %v660 = vpop.f32.mrf.mxu0
      %v661 = vadd.f32 %v574, %v660
      %662 = vmatmul.bf16.gmra.mxu0 %v554
      %v663 = vpop.f32.mrf.mxu0
      %v664 = vpop.f32.mrf.mxu0
      %665 = vmatmul.bf16.gmra.mxu0 %v555
      %v666 = vpop.f32.mrf.mxu0
      %v667 = vpop.f32.mrf.mxu0
      %668 = vdwg.mxu0
      %v669 = vmax.f32 %v634, 0.0
      %v670 = vmax.f32 %v636, 0.0
      %v671 = vmax.f32 %v639, 0.0
      %v672 = vmax.f32 %v641, 0.0
      %v673 = vmax.f32 %v644, 0.0
      %v674 = vmax.f32 %v646, 0.0
      %v675 = vmax.f32 %v649, 0.0
      %v676 = vmax.f32 %v651, 0.0
      %v677 = vmax.f32 %v654, 0.0
      %v678 = vmax.f32 %v656, 0.0
      %v679 = vmax.f32 %v659, 0.0
      %v680 = vmax.f32 %v661, 0.0
      %v681 = vpack.c.bf16 %v669, %v669
      %v682 = vpack.c.bf16 %v670, %v670
      %v683 = vpack.c.bf16 %v671, %v671
      %v684 = vpack.c.bf16 %v672, %v672
      %v685 = vpack.c.bf16 %v673, %v673
      %v686 = vpack.c.bf16 %v674, %v674
      %v687 = vpack.c.bf16 %v675, %v675
      %v688 = vpack.c.bf16 %v676, %v676
      %v689 = vpack.c.bf16 %v677, %v677
      %v690 = vpack.c.bf16 %v678, %v678
      %v691 = vpack.c.bf16 %v679, %v679
      %v692 = vpack.c.bf16 %v680, %v680
      %v693 = vld [vmem:[%s306] sm:$0xff]
      %v694 = vld [vmem:[%s306 + $0x8] sm:$0xf]
      %v695 = vld [vmem:[%s306 + $0xc] sm:$0xff]
      %v696 = vld [vmem:[%s306 + $0x14] sm:$0xf]
      %v697 = vld [vmem:[%s306 + $0x18] sm:$0xff]
      %v698 = vld [vmem:[%s306 + $0x20] sm:$0xf]
      %v699 = vld [vmem:[%s306 + $0x24] sm:$0xff]
      %v700 = vld [vmem:[%s306 + $0x2c] sm:$0xf]
      %v701 = vld [vmem:[%s306 + $0x30] sm:$0xff]
      %v702 = vld [vmem:[%s306 + $0x38] sm:$0xf]
      %v703 = vld [vmem:[%s306 + $0x3c] sm:$0xff]
      %v704 = vld [vmem:[%s306 + $0x44] sm:$0xf]
      %v705 = vld [vmem:[%s306 + $0x48] sm:$0xff]
      %v706 = vld [vmem:[%s306 + $0x50] sm:$0xf]
      %v707 = vld [vmem:[%s306 + $0x54] sm:$0xff]
      %v708 = vld [vmem:[%s306 + $0x5c] sm:$0xf]
      %v709 = vld [vmem:[%s306 + $0x60] sm:$0xff]
      %v710 = vld [vmem:[%s306 + $0x68] sm:$0xf]
      %v711 = vld [vmem:[%s306 + $0x6c] sm:$0xff]
      %v712 = vld [vmem:[%s306 + $0x74] sm:$0xf]
      %v713 = vld [vmem:[%s306 + $0x78] sm:$0xff]
      %v714 = vld [vmem:[%s306 + $0x80] sm:$0xf]
      %v715 = vld [vmem:[%s306 + $0x84] sm:$0xff]
      %v716 = vld [vmem:[%s306 + $0x8c] sm:$0xf]
      %v717 = vld [vmem:[%s306 + $0x90] sm:$0xff]
      %v718 = vld [vmem:[%s306 + $0x98] sm:$0xf]
      %v719 = vld [vmem:[%s306 + $0x9c] sm:$0xff]
      %v720 = vld [vmem:[%s306 + $0xa4] sm:$0xf]
      %v721 = vld [vmem:[%s306 + $0xa8] sm:$0xff]
      %v722 = vld [vmem:[%s306 + $0xb0] sm:$0xf]
      %v723 = vld [vmem:[%s306 + $0xb4] sm:$0xff]
      %v724 = vld [vmem:[%s306 + $0xbc] sm:$0xf]
      %v757 = vunpack.c.l.b16 %v693
      %v758 = vunpack.c.h.b16 %v693
      %v759 = vunpack.c.l.b16 %v694
      %v760 = vunpack.c.l.b16 %v695
      %v761 = vunpack.c.h.b16 %v695
      %v762 = vunpack.c.l.b16 %v696
      %v763 = vunpack.c.l.b16 %v697
      %v764 = vunpack.c.h.b16 %v697
      %v765 = vunpack.c.l.b16 %v698
      %v766 = vunpack.c.l.b16 %v699
      %v767 = vunpack.c.h.b16 %v699
      %v768 = vunpack.c.l.b16 %v700
      %v769 = vunpack.c.l.b16 %v701
      %v770 = vunpack.c.h.b16 %v701
      %v771 = vunpack.c.l.b16 %v702
      %v772 = vunpack.c.l.b16 %v703
      %v773 = vunpack.c.h.b16 %v703
      %v774 = vunpack.c.l.b16 %v704
      %v775 = vunpack.c.l.b16 %v705
      %v776 = vunpack.c.h.b16 %v705
      %v777 = vunpack.c.l.b16 %v706
      %v778 = vunpack.c.l.b16 %v707
      %v779 = vunpack.c.h.b16 %v707
      %v780 = vunpack.c.l.b16 %v708
      %v781 = vunpack.c.l.b16 %v709
      %v782 = vunpack.c.h.b16 %v709
      %v783 = vunpack.c.l.b16 %v710
      %v784 = vunpack.c.l.b16 %v711
      %v785 = vunpack.c.h.b16 %v711
      %v786 = vunpack.c.l.b16 %v712
      %v787 = vunpack.c.l.b16 %v713
      %v788 = vunpack.c.h.b16 %v713
      %v789 = vunpack.c.l.b16 %v714
      %v790 = vunpack.c.l.b16 %v715
      %v791 = vunpack.c.h.b16 %v715
      %v792 = vunpack.c.l.b16 %v716
      %v793 = vunpack.c.l.b16 %v717
      %v794 = vunpack.c.h.b16 %v717
      %v795 = vunpack.c.l.b16 %v718
      %v796 = vunpack.c.l.b16 %v719
      %v797 = vunpack.c.h.b16 %v719
      %v798 = vunpack.c.l.b16 %v720
      %v799 = vunpack.c.l.b16 %v721
      %v800 = vunpack.c.h.b16 %v721
      %v801 = vunpack.c.l.b16 %v722
      %v802 = vunpack.c.l.b16 %v723
      %v803 = vunpack.c.h.b16 %v723
      %v804 = vunpack.c.l.b16 %v724
      %v805 = vpack.c.b16 %v760, %v757
      %v806 = vpack.c.b16 %v761, %v758
      %v807 = vpack.c.b16 %v762, %v759
      %v808 = vpack.c.b16 %v766, %v763
      %v809 = vpack.c.b16 %v767, %v764
      %v810 = vpack.c.b16 %v768, %v765
      %v811 = vpack.c.b16 %v772, %v769
      %v812 = vpack.c.b16 %v773, %v770
      %v813 = vpack.c.b16 %v774, %v771
      %v814 = vpack.c.b16 %v778, %v775
      %v815 = vpack.c.b16 %v779, %v776
      %v816 = vpack.c.b16 %v780, %v777
      %v817 = vpack.c.b16 %v784, %v781
      %v818 = vpack.c.b16 %v785, %v782
      %v819 = vpack.c.b16 %v786, %v783
      %v820 = vpack.c.b16 %v790, %v787
      %v821 = vpack.c.b16 %v791, %v788
      %v822 = vpack.c.b16 %v792, %v789
      %v823 = vpack.c.b16 %v796, %v793
      %v824 = vpack.c.b16 %v797, %v794
      %v825 = vpack.c.b16 %v798, %v795
      %v826 = vpack.c.b16 %v802, %v799
      %v827 = vpack.c.b16 %v803, %v800
      %v828 = vpack.c.b16 %v804, %v801
      %853 = vmatpush.bf16.msra.mxu0 %v826
      %854 = vmatpush.bf16.msra.mxu0 %v823
      %855 = vmatpush.bf16.msra.mxu0 %v820
      %856 = vmatpush.bf16.msra.mxu0 %v817
      %857 = vmatpush.bf16.msra.mxu0 %v814
      %858 = vmatpush.bf16.msra.mxu0 %v811
      %859 = vmatpush.bf16.msra.mxu0 %v808
      %860 = vmatpush.bf16.msra.mxu0 %v805
      %861 = vmatmul.bf16.gmra.mxu0 %v513
      %v862 = vpop.f32.mrf.mxu0
      %v863 = vpop.f32.mrf.mxu0
      %864 = vmatmul.bf16.gmra.mxu0 %v514
      %v865 = vpop.f32.mrf.mxu0
      %v866 = vpop.f32.mrf.mxu0
      %867 = vmatmul.bf16.gmra.mxu0 %v515
      %v868 = vpop.f32.mrf.mxu0
      %v869 = vadd.f32 0.0, %v868
      %v870 = vpop.f32.mrf.mxu0
      %v871 = vadd.f32 0.0, %v870
      %872 = vmatmul.bf16.gmra.mxu0 %v516
      %v873 = vpop.f32.mrf.mxu0
      %v874 = vadd.f32 0.0, %v873
      %v875 = vpop.f32.mrf.mxu0
      %v876 = vadd.f32 0.0, %v875
      %877 = vmatmul.bf16.gmra.mxu0 %v517
      %v878 = vpop.f32.mrf.mxu0
      %v879 = vadd.f32 0.0, %v878
      %v880 = vpop.f32.mrf.mxu0
      %v881 = vadd.f32 0.0, %v880
      %882 = vmatmul.bf16.gmra.mxu0 %v518
      %v883 = vpop.f32.mrf.mxu0
      %v884 = vadd.f32 0.0, %v883
      %v885 = vpop.f32.mrf.mxu0
      %v886 = vadd.f32 0.0, %v885
      %887 = vmatmul.bf16.gmra.mxu0 %v519
      %v888 = vpop.f32.mrf.mxu0
      %v889 = vadd.f32 0.0, %v888
      %v890 = vpop.f32.mrf.mxu0
      %v891 = vadd.f32 0.0, %v890
      %892 = vmatmul.bf16.gmra.mxu0 %v520
      %v893 = vpop.f32.mrf.mxu0
      %v894 = vadd.f32 0.0, %v893
      %v895 = vpop.f32.mrf.mxu0
      %v896 = vadd.f32 0.0, %v895
      %897 = vdwg.mxu0
      %898 = vmatpush.bf16.msra.mxu0 %v827
      %899 = vmatpush.bf16.msra.mxu0 %v824
      %900 = vmatpush.bf16.msra.mxu0 %v821
      %901 = vmatpush.bf16.msra.mxu0 %v818
      %902 = vmatpush.bf16.msra.mxu0 %v815
      %903 = vmatpush.bf16.msra.mxu0 %v812
      %904 = vmatpush.bf16.msra.mxu0 %v809
      %905 = vmatpush.bf16.msra.mxu0 %v806
      %906 = vmatmul.bf16.gmra.mxu0 %v513
      %v907 = vpop.f32.mrf.mxu0
      %v908 = vpop.f32.mrf.mxu0
      %909 = vmatmul.bf16.gmra.mxu0 %v514
      %v910 = vpop.f32.mrf.mxu0
      %v911 = vpop.f32.mrf.mxu0
      %912 = vmatmul.bf16.gmra.mxu0 %v515
      %v913 = vpop.f32.mrf.mxu0
      %v914 = vadd.f32 0.0, %v913
      %v915 = vpop.f32.mrf.mxu0
      %v916 = vadd.f32 0.0, %v915
      %917 = vmatmul.bf16.gmra.mxu0 %v516
      %v918 = vpop.f32.mrf.mxu0
      %v919 = vadd.f32 0.0, %v918
      %v920 = vpop.f32.mrf.mxu0
      %v921 = vadd.f32 0.0, %v920
      %922 = vmatmul.bf16.gmra.mxu0 %v517
      %v923 = vpop.f32.mrf.mxu0
      %v924 = vadd.f32 0.0, %v923
      %v925 = vpop.f32.mrf.mxu0
      %v926 = vadd.f32 0.0, %v925
      %927 = vmatmul.bf16.gmra.mxu0 %v518
      %v928 = vpop.f32.mrf.mxu0
      %v929 = vadd.f32 0.0, %v928
      %v930 = vpop.f32.mrf.mxu0
      %v931 = vadd.f32 0.0, %v930
      %932 = vmatmul.bf16.gmra.mxu0 %v519
      %v933 = vpop.f32.mrf.mxu0
      %v934 = vadd.f32 0.0, %v933
      %v935 = vpop.f32.mrf.mxu0
      %v936 = vadd.f32 0.0, %v935
      %937 = vmatmul.bf16.gmra.mxu0 %v520
      %v938 = vpop.f32.mrf.mxu0
      %v939 = vadd.f32 0.0, %v938
      %v940 = vpop.f32.mrf.mxu0
      %v941 = vadd.f32 0.0, %v940
      %942 = vdwg.mxu0
      %943 = vmatpush.bf16.msra.mxu0 %v828
      %944 = vmatpush.bf16.msra.mxu0 %v825
      %945 = vmatpush.bf16.msra.mxu0 %v822
      %946 = vmatpush.bf16.msra.mxu0 %v819
      %947 = vmatpush.bf16.msra.mxu0 %v816
      %948 = vmatpush.bf16.msra.mxu0 %v813
      %949 = vmatpush.bf16.msra.mxu0 %v810
      %950 = vmatpush.bf16.msra.mxu0 %v807
      %951 = vmatmul.bf16.gmra.mxu0 %v513
      %v952 = vpop.f32.mrf.mxu0
      %v953 = vpop.f32.mrf.mxu0
      %954 = vmatmul.bf16.gmra.mxu0 %v514
      %v955 = vpop.f32.mrf.mxu0
      %v956 = vpop.f32.mrf.mxu0
      %957 = vmatmul.bf16.gmra.mxu0 %v515
      %v958 = vpop.f32.mrf.mxu0
      %v959 = vpop.f32.mrf.mxu0
      %960 = vmatmul.bf16.gmra.mxu0 %v516
      %v961 = vpop.f32.mrf.mxu0
      %v962 = vpop.f32.mrf.mxu0
      %963 = vmatmul.bf16.gmra.mxu0 %v517
      %v964 = vpop.f32.mrf.mxu0
      %v965 = vadd.f32 0.0, %v964
      %v966 = vpop.f32.mrf.mxu0
      %v967 = vadd.f32 0.0, %v966
      %968 = vmatmul.bf16.gmra.mxu0 %v518
      %v969 = vpop.f32.mrf.mxu0
      %v970 = vadd.f32 0.0, %v969
      %v971 = vpop.f32.mrf.mxu0
      %v972 = vadd.f32 0.0, %v971
      %973 = vmatmul.bf16.gmra.mxu0 %v519
      %v974 = vpop.f32.mrf.mxu0
      %v975 = vadd.f32 0.0, %v974
      %v976 = vpop.f32.mrf.mxu0
      %v977 = vadd.f32 0.0, %v976
      %978 = vmatmul.bf16.gmra.mxu0 %v520
      %v979 = vpop.f32.mrf.mxu0
      %v980 = vadd.f32 0.0, %v979
      %v981 = vpop.f32.mrf.mxu0
      %v982 = vadd.f32 0.0, %v981
      %983 = vdwg.mxu0
      %v984 = vpack.c.bf16 %v914, %v869
      %v985 = vpack.c.bf16 %v916, %v871
      %v986 = vpack.c.bf16 %v919, %v874
      %v987 = vpack.c.bf16 %v921, %v876
      %v988 = vpack.c.bf16 %v924, %v879
      %v989 = vpack.c.bf16 %v965, %v965
      %v990 = vpack.c.bf16 %v926, %v881
      %v991 = vpack.c.bf16 %v967, %v967
      %v992 = vpack.c.bf16 %v929, %v884
      %v993 = vpack.c.bf16 %v970, %v970
      %v994 = vpack.c.bf16 %v931, %v886
      %v995 = vpack.c.bf16 %v972, %v972
      %v996 = vpack.c.bf16 %v934, %v889
      %v997 = vpack.c.bf16 %v975, %v975
      %v998 = vpack.c.bf16 %v936, %v891
      %v999 = vpack.c.bf16 %v977, %v977
      %v1000 = vpack.c.bf16 %v939, %v894
      %v1001 = vpack.c.bf16 %v980, %v980
      %v1002 = vpack.c.bf16 %v941, %v896
      %v1003 = vpack.c.bf16 %v982, %v982
      %v1004 = vld [vmem:[%s311] sm:$0xff]
      %v1005 = vld [vmem:[%s311 + $0x8] sm:$0xff]
      %v1006 = vld [vmem:[%s311 + $0x10] sm:$0xff]
      %v1007 = vld [vmem:[%s311 + $0x18] sm:$0xff]
      %v1008 = vld [vmem:[%s311 + $0x20] sm:$0xff]
      %v1009 = vld [vmem:[%s311 + $0x28] sm:$0xff]
      %v1010 = vld [vmem:[%s311 + $0x30] sm:$0xff]
      %v1011 = vld [vmem:[%s311 + $0x38] sm:$0xff]
      %v1012 = vld [vmem:[%s311 + $0x40] sm:$0xff]
      %v1013 = vld [vmem:[%s311 + $0x48] sm:$0xff]
      %v1014 = vld [vmem:[%s311 + $0x50] sm:$0xff]
      %v1015 = vld [vmem:[%s311 + $0x58] sm:$0xff]
      %v1016 = vmul.f32 %v669, %v869
      %v1017 = vmul.f32 %v670, %v871
      %v1018 = vmul.f32 %v671, %v874
      %v1019 = vmul.f32 %v672, %v876
      %v1020 = vmul.f32 %v673, %v879
      %v1021 = vmul.f32 %v674, %v881
      %v1022 = vmul.f32 %v675, %v884
      %v1023 = vmul.f32 %v676, %v886
      %v1024 = vmul.f32 %v677, %v889
      %v1025 = vmul.f32 %v678, %v891
      %v1026 = vmul.f32 %v679, %v894
      %v1027 = vmul.f32 %v680, %v896
      %1028 = vadd.xlane.f32.xlu0 %v1016
      %v1029 = vpop.xlane.xlu0 %1028
      %1030 = vadd.xlane.f32.xlu0 %v1017
      %v1031 = vpop.xlane.xlu0 %1030
      %1032 = vadd.xlane.f32.xlu0 %v1018
      %v1033 = vpop.xlane.xlu0 %1032
      %1034 = vadd.xlane.f32.xlu0 %v1019
      %v1035 = vpop.xlane.xlu0 %1034
      %1036 = vadd.xlane.f32.xlu0 %v1020
      %v1037 = vpop.xlane.xlu0 %1036
      %1038 = vadd.xlane.f32.xlu0 %v1021
      %v1039 = vpop.xlane.xlu0 %1038
      %1040 = vadd.xlane.f32.xlu0 %v1022
      %v1041 = vpop.xlane.xlu0 %1040
      %1042 = vadd.xlane.f32.xlu0 %v1023
      %v1043 = vpop.xlane.xlu0 %1042
      %1044 = vadd.xlane.f32.xlu0 %v1024
      %v1045 = vpop.xlane.xlu0 %1044
      %1046 = vadd.xlane.f32.xlu0 %v1025
      %v1047 = vpop.xlane.xlu0 %1046
      %1048 = vadd.xlane.f32.xlu0 %v1026
      %v1049 = vpop.xlane.xlu0 %1048
      %1050 = vadd.xlane.f32.xlu0 %v1027
      %v1051 = vpop.xlane.xlu0 %1050
      %v1064 = vunpack.c.l.b16 %v681
      %v1065 = vunpack.c.l.b16 %v682
      %v1066 = vunpack.c.l.b16 %v683
      %v1067 = vunpack.c.l.b16 %v684
      %v1068 = vunpack.c.l.b16 %v685
      %v1069 = vunpack.c.l.b16 %v686
      %v1070 = vunpack.c.l.b16 %v687
      %v1071 = vunpack.c.l.b16 %v688
      %v1072 = vunpack.c.l.b16 %v689
      %v1073 = vunpack.c.l.b16 %v690
      %v1074 = vunpack.c.l.b16 %v691
      %v1075 = vunpack.c.l.b16 %v692
      %v1076 = vpack.c.b16 %v1065, %v1064
      %v1077 = vpack.c.b16 %v1067, %v1066
      %v1078 = vpack.c.b16 %v1069, %v1068
      %v1079 = vpack.c.b16 %v1071, %v1070
      %v1080 = vpack.c.b16 %v1073, %v1072
      %v1081 = vpack.c.b16 %v1075, %v1074
      %v1100 = vunpack.c.l.b16 %v984
      %v1101 = vunpack.c.l.b16 %v985
      %v1102 = vunpack.c.l.b16 %v986
      %v1103 = vunpack.c.l.b16 %v987
      %v1104 = vunpack.c.l.b16 %v988
      %v1105 = vunpack.c.l.b16 %v990
      %v1106 = vunpack.c.l.b16 %v992
      %v1107 = vunpack.c.l.b16 %v994
      %v1108 = vunpack.c.l.b16 %v996
      %v1109 = vunpack.c.l.b16 %v998
      %v1110 = vunpack.c.l.b16 %v1000
      %v1111 = vunpack.c.l.b16 %v1002
      %v1112 = vpack.c.b16 %v1101, %v1100
      %v1113 = vpack.c.b16 %v1103, %v1102
      %v1114 = vpack.c.b16 %v1105, %v1104
      %v1115 = vpack.c.b16 %v1107, %v1106
      %v1116 = vpack.c.b16 %v1109, %v1108
      %v1117 = vpack.c.b16 %v1111, %v1110
      %1124 = vmatpush.bf16.xpose.msra.mxu0 0
      %1125 = vmatpush.bf16.xpose.msra.mxu0 0
      %1126 = vmatpush.bf16.xpose.msra.mxu0 %v1117
      %1127 = vmatpush.bf16.xpose.msra.mxu0 %v1116
      %1128 = vmatpush.bf16.xpose.msra.mxu0 %v1115
      %1129 = vmatpush.bf16.xpose.msra.mxu0 %v1114
      %1130 = vmatpush.bf16.xpose.msra.mxu0 %v1113
      %1131 = vmatpush.bf16.xpose.msra.mxu0 %v1112
      %1132 = vmatmul.bf16.gmra.mxu0 %v1076
      %v1133 = vpop.f32.mrf.mxu0
      %v1134 = vadd.f32 0.0, %v1133
      %v1135 = vpop.f32.mrf.mxu0
      %v1136 = vadd.f32 0.0, %v1135
      %1137 = vmatmul.bf16.gmra.mxu0 %v1077
      %v1138 = vpop.f32.mrf.mxu0
      %v1139 = vadd.f32 0.0, %v1138
      %v1140 = vpop.f32.mrf.mxu0
      %v1141 = vadd.f32 0.0, %v1140
      %1142 = vmatmul.bf16.gmra.mxu0 %v1078
      %v1143 = vpop.f32.mrf.mxu0
      %v1144 = vadd.f32 0.0, %v1143
      %v1145 = vpop.f32.mrf.mxu0
      %v1146 = vadd.f32 0.0, %v1145
      %1147 = vmatmul.bf16.gmra.mxu0 %v1079
      %v1148 = vpop.f32.mrf.mxu0
      %v1149 = vadd.f32 0.0, %v1148
      %v1150 = vpop.f32.mrf.mxu0
      %v1151 = vadd.f32 0.0, %v1150
      %1152 = vmatmul.bf16.gmra.mxu0 %v1080
      %v1153 = vpop.f32.mrf.mxu0
      %v1154 = vadd.f32 0.0, %v1153
      %v1155 = vpop.f32.mrf.mxu0
      %v1156 = vadd.f32 0.0, %v1155
      %1157 = vmatmul.bf16.gmra.mxu0 %v1081
      %v1158 = vpop.f32.mrf.mxu0
      %v1159 = vadd.f32 0.0, %v1158
      %v1160 = vpop.f32.mrf.mxu0
      %v1161 = vadd.f32 0.0, %v1160
      %1162 = vdwg.mxu0
      %v1163 = vlaneseq
      %v1164 = vand.u32 %v1163, 127
      %1165 = vset.pattern.permute.xlu0 0
      %1166 = vperm.xlu0 %1165, %v1004
      %v1167 = vpop.permute.xlu0 %1166
      %1168 = vset.pattern.permute.xlu0 0
      %1169 = vperm.xlu0 %1168, %v1005
      %v1170 = vpop.permute.xlu0 %1169
      %1171 = vset.pattern.permute.xlu0 0
      %1172 = vperm.xlu0 %1171, %v1006
      %v1173 = vpop.permute.xlu0 %1172
      %1174 = vset.pattern.permute.xlu0 0
      %1175 = vperm.xlu0 %1174, %v1007
      %v1176 = vpop.permute.xlu0 %1175
      %1177 = vset.pattern.permute.xlu0 0
      %1178 = vperm.xlu0 %1177, %v1008
      %v1179 = vpop.permute.xlu0 %1178
      %1180 = vset.pattern.permute.xlu0 0
      %1181 = vperm.xlu0 %1180, %v1009
      %v1182 = vpop.permute.xlu0 %1181
      %1183 = vset.pattern.permute.xlu0 0
      %1184 = vperm.xlu0 %1183, %v1010
      %v1185 = vpop.permute.xlu0 %1184
      %1186 = vset.pattern.permute.xlu0 0
      %1187 = vperm.xlu0 %1186, %v1011
      %v1188 = vpop.permute.xlu0 %1187
      %1189 = vset.pattern.permute.xlu0 0
      %1190 = vperm.xlu0 %1189, %v1012
      %v1191 = vpop.permute.xlu0 %1190
      %1192 = vset.pattern.permute.xlu0 0
      %1193 = vperm.xlu0 %1192, %v1013
      %v1194 = vpop.permute.xlu0 %1193
      %1195 = vset.pattern.permute.xlu0 0
      %1196 = vperm.xlu0 %1195, %v1014
      %v1197 = vpop.permute.xlu0 %1196
      %1198 = vset.pattern.permute.xlu0 0
      %1199 = vperm.xlu0 %1198, %v1015
      %v1200 = vpop.permute.xlu0 %1199
      %vm1201 = vcmp.eq.s32.totalorder %v1164, %v1167
      %vm1202 = vcmp.eq.s32.totalorder %v1164, %v1170
      %vm1203 = vcmp.eq.s32.totalorder %v1164, %v1173
      %vm1204 = vcmp.eq.s32.totalorder %v1164, %v1176
      %vm1205 = vcmp.eq.s32.totalorder %v1164, %v1179
      %vm1206 = vcmp.eq.s32.totalorder %v1164, %v1182
      %vm1207 = vcmp.eq.s32.totalorder %v1164, %v1185
      %vm1208 = vcmp.eq.s32.totalorder %v1164, %v1188
      %vm1209 = vcmp.eq.s32.totalorder %v1164, %v1191
      %vm1210 = vcmp.eq.s32.totalorder %v1164, %v1194
      %vm1211 = vcmp.eq.s32.totalorder %v1164, %v1197
      %vm1212 = vcmp.eq.s32.totalorder %v1164, %v1200
      %v1213 = vsel %vm1201, 1, 0
      %v1214 = vsel %vm1202, 1, 0
      %v1215 = vsel %vm1203, 1, 0
      %v1216 = vsel %vm1204, 1, 0
      %v1217 = vsel %vm1205, 1, 0
      %v1218 = vsel %vm1206, 1, 0
      %v1219 = vsel %vm1207, 1, 0
      %v1220 = vsel %vm1208, 1, 0
      %v1221 = vsel %vm1209, 1, 0
      %v1222 = vsel %vm1210, 1, 0
      %v1223 = vsel %vm1211, 1, 0
      %v1224 = vsel %vm1212, 1, 0
      %v1225 = vcvt.s32.f32 %v1213
      %v1226 = vcvt.s32.f32 %v1214
      %v1227 = vcvt.s32.f32 %v1215
      %v1228 = vcvt.s32.f32 %v1216
      %v1229 = vcvt.s32.f32 %v1217
      %v1230 = vcvt.s32.f32 %v1218
      %v1231 = vcvt.s32.f32 %v1219
      %v1232 = vcvt.s32.f32 %v1220
      %v1233 = vcvt.s32.f32 %v1221
      %v1234 = vcvt.s32.f32 %v1222
      %v1235 = vcvt.s32.f32 %v1223
      %v1236 = vcvt.s32.f32 %v1224
      %v1237 = vadd.f32 %v1225, 0.0
      %v1238 = vadd.f32 %v1226, 0.0
      %v1239 = vadd.f32 %v1227, 0.0
      %v1240 = vadd.f32 %v1228, 0.0
      %v1241 = vadd.f32 %v1229, 0.0
      %v1242 = vadd.f32 %v1230, 0.0
      %v1243 = vadd.f32 %v1231, 0.0
      %v1244 = vadd.f32 %v1232, 0.0
      %v1245 = vadd.f32 %v1233, 0.0
      %v1246 = vadd.f32 %v1234, 0.0
      %v1247 = vadd.f32 %v1235, 0.0
      %v1248 = vadd.f32 %v1236, 0.0
      %1249 = vset.pattern.permute.xlu0 1
      %1250 = vperm.xlu0 %1249, %v1004
      %v1251 = vpop.permute.xlu0 %1250
      %1252 = vset.pattern.permute.xlu0 1
      %1253 = vperm.xlu0 %1252, %v1005
      %v1254 = vpop.permute.xlu0 %1253
      %1255 = vset.pattern.permute.xlu0 1
      %1256 = vperm.xlu0 %1255, %v1006
      %v1257 = vpop.permute.xlu0 %1256
      %1258 = vset.pattern.permute.xlu0 1
      %1259 = vperm.xlu0 %1258, %v1007
      %v1260 = vpop.permute.xlu0 %1259
      %1261 = vset.pattern.permute.xlu0 1
      %1262 = vperm.xlu0 %1261, %v1008
      %v1263 = vpop.permute.xlu0 %1262
      %1264 = vset.pattern.permute.xlu0 1
      %1265 = vperm.xlu0 %1264, %v1009
      %v1266 = vpop.permute.xlu0 %1265
      %1267 = vset.pattern.permute.xlu0 1
      %1268 = vperm.xlu0 %1267, %v1010
      %v1269 = vpop.permute.xlu0 %1268
      %1270 = vset.pattern.permute.xlu0 1
      %1271 = vperm.xlu0 %1270, %v1011
      %v1272 = vpop.permute.xlu0 %1271
      %1273 = vset.pattern.permute.xlu0 1
      %1274 = vperm.xlu0 %1273, %v1012
      %v1275 = vpop.permute.xlu0 %1274
      %1276 = vset.pattern.permute.xlu0 1
      %1277 = vperm.xlu0 %1276, %v1013
      %v1278 = vpop.permute.xlu0 %1277
      %1279 = vset.pattern.permute.xlu0 1
      %1280 = vperm.xlu0 %1279, %v1014
      %v1281 = vpop.permute.xlu0 %1280
      %1282 = vset.pattern.permute.xlu0 1
      %1283 = vperm.xlu0 %1282, %v1015
      %v1284 = vpop.permute.xlu0 %1283
      %vm1285 = vcmp.eq.s32.totalorder %v1164, %v1251
      %vm1286 = vcmp.eq.s32.totalorder %v1164, %v1254
      %vm1287 = vcmp.eq.s32.totalorder %v1164, %v1257
      %vm1288 = vcmp.eq.s32.totalorder %v1164, %v1260
      %vm1289 = vcmp.eq.s32.totalorder %v1164, %v1263
      %vm1290 = vcmp.eq.s32.totalorder %v1164, %v1266
      %vm1291 = vcmp.eq.s32.totalorder %v1164, %v1269
      %vm1292 = vcmp.eq.s32.totalorder %v1164, %v1272
      %vm1293 = vcmp.eq.s32.totalorder %v1164, %v1275
      %vm1294 = vcmp.eq.s32.totalorder %v1164, %v1278
      %vm1295 = vcmp.eq.s32.totalorder %v1164, %v1281
      %vm1296 = vcmp.eq.s32.totalorder %v1164, %v1284
      %v1297 = vsel %vm1285, 1, 0
      %v1298 = vsel %vm1286, 1, 0
      %v1299 = vsel %vm1287, 1, 0
      %v1300 = vsel %vm1288, 1, 0
      %v1301 = vsel %vm1289, 1, 0
      %v1302 = vsel %vm1290, 1, 0
      %v1303 = vsel %vm1291, 1, 0
      %v1304 = vsel %vm1292, 1, 0
      %v1305 = vsel %vm1293, 1, 0
      %v1306 = vsel %vm1294, 1, 0
      %v1307 = vsel %vm1295, 1, 0
      %v1308 = vsel %vm1296, 1, 0
      %v1309 = vcvt.s32.f32 %v1297
      %v1310 = vcvt.s32.f32 %v1298
      %v1311 = vcvt.s32.f32 %v1299
      %v1312 = vcvt.s32.f32 %v1300
      %v1313 = vcvt.s32.f32 %v1301
      %v1314 = vcvt.s32.f32 %v1302
      %v1315 = vcvt.s32.f32 %v1303
      %v1316 = vcvt.s32.f32 %v1304
      %v1317 = vcvt.s32.f32 %v1305
      %v1318 = vcvt.s32.f32 %v1306
      %v1319 = vcvt.s32.f32 %v1307
      %v1320 = vcvt.s32.f32 %v1308
      %v1321 = vadd.f32 %v1237, %v1309
      %v1322 = vadd.f32 %v1238, %v1310
      %v1323 = vadd.f32 %v1239, %v1311
      %v1324 = vadd.f32 %v1240, %v1312
      %v1325 = vadd.f32 %v1241, %v1313
      %v1326 = vadd.f32 %v1242, %v1314
      %v1327 = vadd.f32 %v1243, %v1315
      %v1328 = vadd.f32 %v1244, %v1316
      %v1329 = vadd.f32 %v1245, %v1317
      %v1330 = vadd.f32 %v1246, %v1318
      %v1331 = vadd.f32 %v1247, %v1319
      %v1332 = vadd.f32 %v1248, %v1320
      %1333 = vset.pattern.permute.xlu0 2
      %1334 = vperm.xlu0 %1333, %v1004
      %v1335 = vpop.permute.xlu0 %1334
      %1336 = vset.pattern.permute.xlu0 2
      %1337 = vperm.xlu0 %1336, %v1005
      %v1338 = vpop.permute.xlu0 %1337
      %1339 = vset.pattern.permute.xlu0 2
      %1340 = vperm.xlu0 %1339, %v1006
      %v1341 = vpop.permute.xlu0 %1340
      %1342 = vset.pattern.permute.xlu0 2
      %1343 = vperm.xlu0 %1342, %v1007
      %v1344 = vpop.permute.xlu0 %1343
      %1345 = vset.pattern.permute.xlu0 2
      %1346 = vperm.xlu0 %1345, %v1008
      %v1347 = vpop.permute.xlu0 %1346
      %1348 = vset.pattern.permute.xlu0 2
      %1349 = vperm.xlu0 %1348, %v1009
      %v1350 = vpop.permute.xlu0 %1349
      %1351 = vset.pattern.permute.xlu0 2
      %1352 = vperm.xlu0 %1351, %v1010
      %v1353 = vpop.permute.xlu0 %1352
      %1354 = vset.pattern.permute.xlu0 2
      %1355 = vperm.xlu0 %1354, %v1011
      %v1356 = vpop.permute.xlu0 %1355
      %1357 = vset.pattern.permute.xlu0 2
      %1358 = vperm.xlu0 %1357, %v1012
      %v1359 = vpop.permute.xlu0 %1358
      %1360 = vset.pattern.permute.xlu0 2
      %1361 = vperm.xlu0 %1360, %v1013
      %v1362 = vpop.permute.xlu0 %1361
      %1363 = vset.pattern.permute.xlu0 2
      %1364 = vperm.xlu0 %1363, %v1014
      %v1365 = vpop.permute.xlu0 %1364
      %1366 = vset.pattern.permute.xlu0 2
      %1367 = vperm.xlu0 %1366, %v1015
      %v1368 = vpop.permute.xlu0 %1367
      %vm1369 = vcmp.eq.s32.totalorder %v1164, %v1335
      %vm1370 = vcmp.eq.s32.totalorder %v1164, %v1338
      %vm1371 = vcmp.eq.s32.totalorder %v1164, %v1341
      %vm1372 = vcmp.eq.s32.totalorder %v1164, %v1344
      %vm1373 = vcmp.eq.s32.totalorder %v1164, %v1347
      %vm1374 = vcmp.eq.s32.totalorder %v1164, %v1350
      %vm1375 = vcmp.eq.s32.totalorder %v1164, %v1353
      %vm1376 = vcmp.eq.s32.totalorder %v1164, %v1356
      %vm1377 = vcmp.eq.s32.totalorder %v1164, %v1359
      %vm1378 = vcmp.eq.s32.totalorder %v1164, %v1362
      %vm1379 = vcmp.eq.s32.totalorder %v1164, %v1365
      %vm1380 = vcmp.eq.s32.totalorder %v1164, %v1368
      %v1381 = vsel %vm1369, 1, 0
      %v1382 = vsel %vm1370, 1, 0
      %v1383 = vsel %vm1371, 1, 0
      %v1384 = vsel %vm1372, 1, 0
      %v1385 = vsel %vm1373, 1, 0
      %v1386 = vsel %vm1374, 1, 0
      %v1387 = vsel %vm1375, 1, 0
      %v1388 = vsel %vm1376, 1, 0
      %v1389 = vsel %vm1377, 1, 0
      %v1390 = vsel %vm1378, 1, 0
      %v1391 = vsel %vm1379, 1, 0
      %v1392 = vsel %vm1380, 1, 0
      %v1393 = vcvt.s32.f32 %v1381
      %v1394 = vcvt.s32.f32 %v1382
      %v1395 = vcvt.s32.f32 %v1383
      %v1396 = vcvt.s32.f32 %v1384
      %v1397 = vcvt.s32.f32 %v1385
      %v1398 = vcvt.s32.f32 %v1386
      %v1399 = vcvt.s32.f32 %v1387
      %v1400 = vcvt.s32.f32 %v1388
      %v1401 = vcvt.s32.f32 %v1389
      %v1402 = vcvt.s32.f32 %v1390
      %v1403 = vcvt.s32.f32 %v1391
      %v1404 = vcvt.s32.f32 %v1392
      %v1405 = vadd.f32 %v1321, %v1393
      %v1406 = vadd.f32 %v1322, %v1394
      %v1407 = vadd.f32 %v1323, %v1395
      %v1408 = vadd.f32 %v1324, %v1396
      %v1409 = vadd.f32 %v1325, %v1397
      %v1410 = vadd.f32 %v1326, %v1398
      %v1411 = vadd.f32 %v1327, %v1399
      %v1412 = vadd.f32 %v1328, %v1400
      %v1413 = vadd.f32 %v1329, %v1401
      %v1414 = vadd.f32 %v1330, %v1402
      %v1415 = vadd.f32 %v1331, %v1403
      %v1416 = vadd.f32 %v1332, %v1404
      %1417 = vset.pattern.permute.xlu0 3
      %1418 = vperm.xlu0 %1417, %v1004
      %v1419 = vpop.permute.xlu0 %1418
      %1420 = vset.pattern.permute.xlu0 3
      %1421 = vperm.xlu0 %1420, %v1005
      %v1422 = vpop.permute.xlu0 %1421
      %1423 = vset.pattern.permute.xlu0 3
      %1424 = vperm.xlu0 %1423, %v1006
      %v1425 = vpop.permute.xlu0 %1424
      %1426 = vset.pattern.permute.xlu0 3
      %1427 = vperm.xlu0 %1426, %v1007
      %v1428 = vpop.permute.xlu0 %1427
      %1429 = vset.pattern.permute.xlu0 3
      %1430 = vperm.xlu0 %1429, %v1008
      %v1431 = vpop.permute.xlu0 %1430
      %1432 = vset.pattern.permute.xlu0 3
      %1433 = vperm.xlu0 %1432, %v1009
      %v1434 = vpop.permute.xlu0 %1433
      %1435 = vset.pattern.permute.xlu0 3
      %1436 = vperm.xlu0 %1435, %v1010
      %v1437 = vpop.permute.xlu0 %1436
      %1438 = vset.pattern.permute.xlu0 3
      %1439 = vperm.xlu0 %1438, %v1011
      %v1440 = vpop.permute.xlu0 %1439
      %1441 = vset.pattern.permute.xlu0 3
      %1442 = vperm.xlu0 %1441, %v1012
      %v1443 = vpop.permute.xlu0 %1442
      %1444 = vset.pattern.permute.xlu0 3
      %1445 = vperm.xlu0 %1444, %v1013
      %v1446 = vpop.permute.xlu0 %1445
      %1447 = vset.pattern.permute.xlu0 3
      %1448 = vperm.xlu0 %1447, %v1014
      %v1449 = vpop.permute.xlu0 %1448
      %1450 = vset.pattern.permute.xlu0 3
      %1451 = vperm.xlu0 %1450, %v1015
      %v1452 = vpop.permute.xlu0 %1451
      %vm1453 = vcmp.eq.s32.totalorder %v1164, %v1419
      %vm1454 = vcmp.eq.s32.totalorder %v1164, %v1422
      %vm1455 = vcmp.eq.s32.totalorder %v1164, %v1425
      %vm1456 = vcmp.eq.s32.totalorder %v1164, %v1428
      %vm1457 = vcmp.eq.s32.totalorder %v1164, %v1431
      %vm1458 = vcmp.eq.s32.totalorder %v1164, %v1434
      %vm1459 = vcmp.eq.s32.totalorder %v1164, %v1437
      %vm1460 = vcmp.eq.s32.totalorder %v1164, %v1440
      %vm1461 = vcmp.eq.s32.totalorder %v1164, %v1443
      %vm1462 = vcmp.eq.s32.totalorder %v1164, %v1446
      %vm1463 = vcmp.eq.s32.totalorder %v1164, %v1449
      %vm1464 = vcmp.eq.s32.totalorder %v1164, %v1452
      %v1465 = vsel %vm1453, 1, 0
      %v1466 = vsel %vm1454, 1, 0
      %v1467 = vsel %vm1455, 1, 0
      %v1468 = vsel %vm1456, 1, 0
      %v1469 = vsel %vm1457, 1, 0
      %v1470 = vsel %vm1458, 1, 0
      %v1471 = vsel %vm1459, 1, 0
      %v1472 = vsel %vm1460, 1, 0
      %v1473 = vsel %vm1461, 1, 0
      %v1474 = vsel %vm1462, 1, 0
      %v1475 = vsel %vm1463, 1, 0
      %v1476 = vsel %vm1464, 1, 0
      %v1477 = vcvt.s32.f32 %v1465
      %v1478 = vcvt.s32.f32 %v1466
      %v1479 = vcvt.s32.f32 %v1467
      %v1480 = vcvt.s32.f32 %v1468
      %v1481 = vcvt.s32.f32 %v1469
      %v1482 = vcvt.s32.f32 %v1470
      %v1483 = vcvt.s32.f32 %v1471
      %v1484 = vcvt.s32.f32 %v1472
      %v1485 = vcvt.s32.f32 %v1473
      %v1486 = vcvt.s32.f32 %v1474
      %v1487 = vcvt.s32.f32 %v1475
      %v1488 = vcvt.s32.f32 %v1476
      %v1489 = vadd.f32 %v1405, %v1477
      %v1490 = vadd.f32 %v1406, %v1478
      %v1491 = vadd.f32 %v1407, %v1479
      %v1492 = vadd.f32 %v1408, %v1480
      %v1493 = vadd.f32 %v1409, %v1481
      %v1494 = vadd.f32 %v1410, %v1482
      %v1495 = vadd.f32 %v1411, %v1483
      %v1496 = vadd.f32 %v1412, %v1484
      %v1497 = vadd.f32 %v1413, %v1485
      %v1498 = vadd.f32 %v1414, %v1486
      %v1499 = vadd.f32 %v1415, %v1487
      %v1500 = vadd.f32 %v1416, %v1488
      %vm1501 = vcmp.gt.f32.partialorder %v1489, 0.0
      %vm1502 = vcmp.gt.f32.partialorder %v1490, 0.0
      %vm1503 = vcmp.gt.f32.partialorder %v1491, 0.0
      %vm1504 = vcmp.gt.f32.partialorder %v1492, 0.0
      %vm1505 = vcmp.gt.f32.partialorder %v1493, 0.0
      %vm1506 = vcmp.gt.f32.partialorder %v1494, 0.0
      %vm1507 = vcmp.gt.f32.partialorder %v1495, 0.0
      %vm1508 = vcmp.gt.f32.partialorder %v1496, 0.0
      %vm1509 = vcmp.gt.f32.partialorder %v1497, 0.0
      %vm1510 = vcmp.gt.f32.partialorder %v1498, 0.0
      %vm1511 = vcmp.gt.f32.partialorder %v1499, 0.0
      %vm1512 = vcmp.gt.f32.partialorder %v1500, 0.0
      %v1513 = vsel %vm1501, %v1134, -1e+30
      %v1514 = vsel %vm1502, %v1136, -1e+30
      %v1515 = vsel %vm1503, %v1139, -1e+30
      %v1516 = vsel %vm1504, %v1141, -1e+30
      %v1517 = vsel %vm1505, %v1144, -1e+30
      %v1518 = vsel %vm1506, %v1146, -1e+30
      %v1519 = vsel %vm1507, %v1149, -1e+30
      %v1520 = vsel %vm1508, %v1151, -1e+30
      %v1521 = vsel %vm1509, %v1154, -1e+30
      %v1522 = vsel %vm1510, %v1156, -1e+30
      %v1523 = vsel %vm1511, %v1159, -1e+30
      %v1524 = vsel %vm1512, %v1161, -1e+30
      %vm1525 = vcmask 785408
      %v1526 = vsel %vm1525, %v1513, -inf
      %1527 = vmax.xlane.f32.xlu0 %v1526
      %v1528 = vpop.xlane.xlu0 %1527
      %v1529 = vsel %vm1525, %v1514, -inf
      %1530 = vmax.xlane.f32.xlu0 %v1529
      %v1531 = vpop.xlane.xlu0 %1530
      %v1532 = vsel %vm1525, %v1515, -inf
      %1533 = vmax.xlane.f32.xlu0 %v1532
      %v1534 = vpop.xlane.xlu0 %1533
      %v1535 = vsel %vm1525, %v1516, -inf
      %1536 = vmax.xlane.f32.xlu0 %v1535
      %v1537 = vpop.xlane.xlu0 %1536
      %v1538 = vsel %vm1525, %v1517, -inf
      %1539 = vmax.xlane.f32.xlu0 %v1538
      %v1540 = vpop.xlane.xlu0 %1539
      %v1541 = vsel %vm1525, %v1518, -inf
      %1542 = vmax.xlane.f32.xlu0 %v1541
      %v1543 = vpop.xlane.xlu0 %1542
      %v1544 = vsel %vm1525, %v1519, -inf
      %1545 = vmax.xlane.f32.xlu0 %v1544
      %v1546 = vpop.xlane.xlu0 %1545
      %v1547 = vsel %vm1525, %v1520, -inf
      %1548 = vmax.xlane.f32.xlu0 %v1547
      %v1549 = vpop.xlane.xlu0 %1548
      %v1550 = vsel %vm1525, %v1521, -inf
      %1551 = vmax.xlane.f32.xlu0 %v1550
      %v1552 = vpop.xlane.xlu0 %1551
      %v1553 = vsel %vm1525, %v1522, -inf
      %1554 = vmax.xlane.f32.xlu0 %v1553
      %v1555 = vpop.xlane.xlu0 %1554
      %v1556 = vsel %vm1525, %v1523, -inf
      %1557 = vmax.xlane.f32.xlu0 %v1556
      %v1558 = vpop.xlane.xlu0 %1557
      %v1559 = vsel %vm1525, %v1524, -inf
      %1560 = vmax.xlane.f32.xlu0 %v1559
      %v1561 = vpop.xlane.xlu0 %1560
      %v1562 = vmax.f32 %v1029, %v1528
      %v1563 = vmax.f32 %v1031, %v1531
      %v1564 = vmax.f32 %v1033, %v1534
      %v1565 = vmax.f32 %v1035, %v1537
      %v1566 = vmax.f32 %v1037, %v1540
      %v1567 = vmax.f32 %v1039, %v1543
      %v1568 = vmax.f32 %v1041, %v1546
      %v1569 = vmax.f32 %v1043, %v1549
      %v1570 = vmax.f32 %v1045, %v1552
      %v1571 = vmax.f32 %v1047, %v1555
      %v1572 = vmax.f32 %v1049, %v1558
      %v1573 = vmax.f32 %v1051, %v1561
      %v1574 = vsub.f32 %v1134, %v1562
      %v1575 = vsub.f32 %v1136, %v1563
      %v1576 = vsub.f32 %v1139, %v1564
      %v1577 = vsub.f32 %v1141, %v1565
      %v1578 = vsub.f32 %v1144, %v1566
      %v1579 = vsub.f32 %v1146, %v1567
      %v1580 = vsub.f32 %v1149, %v1568
      %v1581 = vsub.f32 %v1151, %v1569
      %v1582 = vsub.f32 %v1154, %v1570
      %v1583 = vsub.f32 %v1156, %v1571
      %v1584 = vsub.f32 %v1159, %v1572
      %v1585 = vsub.f32 %v1161, %v1573
      %v1586 = vsel %vm1501, %v1574, -1e+30
      %v1587 = vsel %vm1502, %v1575, -1e+30
      %v1588 = vsel %vm1503, %v1576, -1e+30
      %v1589 = vsel %vm1504, %v1577, -1e+30
      %v1590 = vsel %vm1505, %v1578, -1e+30
      %v1591 = vsel %vm1506, %v1579, -1e+30
      %v1592 = vsel %vm1507, %v1580, -1e+30
      %v1593 = vsel %vm1508, %v1581, -1e+30
      %v1594 = vsel %vm1509, %v1582, -1e+30
      %v1595 = vsel %vm1510, %v1583, -1e+30
      %v1596 = vsel %vm1511, %v1584, -1e+30
      %v1597 = vsel %vm1512, %v1585, -1e+30
      %v1598 = vmul.f32 %v1586, 1.442695
      %v1599 = vpow.pop %v1598
      %v1600 = vmul.f32 %v1587, 1.442695
      %v1601 = vpow.pop %v1600
      %v1602 = vmul.f32 %v1588, 1.442695
      %v1603 = vpow.pop %v1602
      %v1604 = vmul.f32 %v1589, 1.442695
      %v1605 = vpow.pop %v1604
      %v1606 = vmul.f32 %v1590, 1.442695
      %v1607 = vpow.pop %v1606
      %v1608 = vmul.f32 %v1591, 1.442695
      %v1609 = vpow.pop %v1608
      %v1610 = vmul.f32 %v1592, 1.442695
      %v1611 = vpow.pop %v1610
      %v1612 = vmul.f32 %v1593, 1.442695
      %v1613 = vpow.pop %v1612
      %v1614 = vmul.f32 %v1594, 1.442695
      %v1615 = vpow.pop %v1614
      %v1616 = vmul.f32 %v1595, 1.442695
      %v1617 = vpow.pop %v1616
      %v1618 = vmul.f32 %v1596, 1.442695
      %v1619 = vpow.pop %v1618
      %v1620 = vmul.f32 %v1597, 1.442695
      %v1621 = vpow.pop %v1620
      %v1622 = vsub.f32 %v1029, %v1562
      %v1623 = vsub.f32 %v1031, %v1563
      %v1624 = vsub.f32 %v1033, %v1564
      %v1625 = vsub.f32 %v1035, %v1565
      %v1626 = vsub.f32 %v1037, %v1566
      %v1627 = vsub.f32 %v1039, %v1567
      %v1628 = vsub.f32 %v1041, %v1568
      %v1629 = vsub.f32 %v1043, %v1569
      %v1630 = vsub.f32 %v1045, %v1570
      %v1631 = vsub.f32 %v1047, %v1571
      %v1632 = vsub.f32 %v1049, %v1572
      %v1633 = vsub.f32 %v1051, %v1573
      %v1634 = vmul.f32 %v1622, 1.442695
      %v1635 = vpow.pop %v1634
      %v1636 = vmul.f32 %v1623, 1.442695
      %v1637 = vpow.pop %v1636
      %v1638 = vmul.f32 %v1624, 1.442695
      %v1639 = vpow.pop %v1638
      %v1640 = vmul.f32 %v1625, 1.442695
      %v1641 = vpow.pop %v1640
      %v1642 = vmul.f32 %v1626, 1.442695
      %v1643 = vpow.pop %v1642
      %v1644 = vmul.f32 %v1627, 1.442695
      %v1645 = vpow.pop %v1644
      %v1646 = vmul.f32 %v1628, 1.442695
      %v1647 = vpow.pop %v1646
      %v1648 = vmul.f32 %v1629, 1.442695
      %v1649 = vpow.pop %v1648
      %v1650 = vmul.f32 %v1630, 1.442695
      %v1651 = vpow.pop %v1650
      %v1652 = vmul.f32 %v1631, 1.442695
      %v1653 = vpow.pop %v1652
      %v1654 = vmul.f32 %v1632, 1.442695
      %v1655 = vpow.pop %v1654
      %v1656 = vmul.f32 %v1633, 1.442695
      %v1657 = vpow.pop %v1656
      %v1658 = vmul.f32 %v1489, %v1599
      %v1659 = vmul.f32 %v1490, %v1601
      %v1660 = vmul.f32 %v1491, %v1603
      %v1661 = vmul.f32 %v1492, %v1605
      %v1662 = vmul.f32 %v1493, %v1607
      %v1663 = vmul.f32 %v1494, %v1609
      %v1664 = vmul.f32 %v1495, %v1611
      %v1665 = vmul.f32 %v1496, %v1613
      %v1666 = vmul.f32 %v1497, %v1615
      %v1667 = vmul.f32 %v1498, %v1617
      %v1668 = vmul.f32 %v1499, %v1619
      %v1669 = vmul.f32 %v1500, %v1621
      %v1670 = vsel %vm1525, %v1658, 0.0
      %1671 = vadd.xlane.f32.xlu0 %v1670
      %v1672 = vpop.xlane.xlu0 %1671
      %v1673 = vsel %vm1525, %v1659, 0.0
      %1674 = vadd.xlane.f32.xlu0 %v1673
      %v1675 = vpop.xlane.xlu0 %1674
      %v1676 = vsel %vm1525, %v1660, 0.0
      %1677 = vadd.xlane.f32.xlu0 %v1676
      %v1678 = vpop.xlane.xlu0 %1677
      %v1679 = vsel %vm1525, %v1661, 0.0
      %1680 = vadd.xlane.f32.xlu0 %v1679
      %v1681 = vpop.xlane.xlu0 %1680
      %v1682 = vsel %vm1525, %v1662, 0.0
      %1683 = vadd.xlane.f32.xlu0 %v1682
      %v1684 = vpop.xlane.xlu0 %1683
      %v1685 = vsel %vm1525, %v1663, 0.0
      %1686 = vadd.xlane.f32.xlu0 %v1685
      %v1687 = vpop.xlane.xlu0 %1686
      %v1688 = vsel %vm1525, %v1664, 0.0
      %1689 = vadd.xlane.f32.xlu0 %v1688
      %v1690 = vpop.xlane.xlu0 %1689
      %v1691 = vsel %vm1525, %v1665, 0.0
      %1692 = vadd.xlane.f32.xlu0 %v1691
      %v1693 = vpop.xlane.xlu0 %1692
      %v1694 = vsel %vm1525, %v1666, 0.0
      %1695 = vadd.xlane.f32.xlu0 %v1694
      %v1696 = vpop.xlane.xlu0 %1695
      %v1697 = vsel %vm1525, %v1667, 0.0
      %1698 = vadd.xlane.f32.xlu0 %v1697
      %v1699 = vpop.xlane.xlu0 %1698
      %v1700 = vsel %vm1525, %v1668, 0.0
      %1701 = vadd.xlane.f32.xlu0 %v1700
      %v1702 = vpop.xlane.xlu0 %1701
      %v1703 = vsel %vm1525, %v1669, 0.0
      %1704 = vadd.xlane.f32.xlu0 %v1703
      %v1705 = vpop.xlane.xlu0 %1704
      %v1706 = vadd.f32 %v1635, %v1672
      %v1707 = vadd.f32 %v1637, %v1675
      %v1708 = vadd.f32 %v1639, %v1678
      %v1709 = vadd.f32 %v1641, %v1681
      %v1710 = vadd.f32 %v1643, %v1684
      %v1711 = vadd.f32 %v1645, %v1687
      %v1712 = vadd.f32 %v1647, %v1690
      %v1713 = vadd.f32 %v1649, %v1693
      %v1714 = vadd.f32 %v1651, %v1696
      %v1715 = vadd.f32 %v1653, %v1699
      %v1716 = vadd.f32 %v1655, %v1702
      %v1717 = vadd.f32 %v1657, %v1705
      %v1718 = vlog2.pop %v1706
      %v1719 = vmul.f32 %v1718, 0.6931472
      %v1720 = vlog2.pop %v1707
      %v1721 = vmul.f32 %v1720, 0.6931472
      %v1722 = vlog2.pop %v1708
      %v1723 = vmul.f32 %v1722, 0.6931472
      %v1724 = vlog2.pop %v1709
      %v1725 = vmul.f32 %v1724, 0.6931472
      %v1726 = vlog2.pop %v1710
      %v1727 = vmul.f32 %v1726, 0.6931472
      %v1728 = vlog2.pop %v1711
      %v1729 = vmul.f32 %v1728, 0.6931472
      %v1730 = vlog2.pop %v1712
      %v1731 = vmul.f32 %v1730, 0.6931472
      %v1732 = vlog2.pop %v1713
      %v1733 = vmul.f32 %v1732, 0.6931472
      %v1734 = vlog2.pop %v1714
      %v1735 = vmul.f32 %v1734, 0.6931472
      %v1736 = vlog2.pop %v1715
      %v1737 = vmul.f32 %v1736, 0.6931472
      %v1738 = vlog2.pop %v1716
      %v1739 = vmul.f32 %v1738, 0.6931472
      %v1740 = vlog2.pop %v1717
      %v1741 = vmul.f32 %v1740, 0.6931472
      %v1742 = vadd.f32 %v1562, %v1719
      %v1743 = vadd.f32 %v1563, %v1721
      %v1744 = vadd.f32 %v1564, %v1723
      %v1745 = vadd.f32 %v1565, %v1725
      %v1746 = vadd.f32 %v1566, %v1727
      %v1747 = vadd.f32 %v1567, %v1729
      %v1748 = vadd.f32 %v1568, %v1731
      %v1749 = vadd.f32 %v1569, %v1733
      %v1750 = vadd.f32 %v1570, %v1735
      %v1751 = vadd.f32 %v1571, %v1737
      %v1752 = vadd.f32 %v1572, %v1739
      %v1753 = vadd.f32 %v1573, %v1741
      %v1754 = vsub.f32 %v1742, %v1029
      %v1755 = vsub.f32 %v1743, %v1031
      %v1756 = vsub.f32 %v1744, %v1033
      %v1757 = vsub.f32 %v1745, %v1035
      %v1758 = vsub.f32 %v1746, %v1037
      %v1759 = vsub.f32 %v1747, %v1039
      %v1760 = vsub.f32 %v1748, %v1041
      %v1761 = vsub.f32 %v1749, %v1043
      %v1762 = vsub.f32 %v1750, %v1045
      %v1763 = vsub.f32 %v1751, %v1047
      %v1764 = vsub.f32 %v1752, %v1049
      %v1765 = vsub.f32 %v1753, %v1051
      %v1766 = vadd.f32 %v1754, %v1755
      %v1767 = vadd.f32 %v1766, %v1756
      %v1768 = vadd.f32 %v1767, %v1757
      %v1769 = vadd.f32 %v1768, %v1758
      %v1770 = vadd.f32 %v1769, %v1759
      %v1771 = vadd.f32 %v1770, %v1760
      %v1772 = vadd.f32 %v1771, %v1761
      %v1773 = vadd.f32 %v1772, %v1762
      %v1774 = vadd.f32 %v1773, %v1763
      %v1775 = vadd.f32 %v1774, %v1764
      %v1776 = vadd.f32 %v1775, %v1765
      %v1777 = vrot.slane %v1776, 4
      %v1778 = vadd.f32 %v1776, %v1777
      %v1779 = vrot.slane %v1778, 2
      %v1780 = vadd.f32 %v1778, %v1779
      %v1781 = vrot.slane %v1780, 1
      %v1782 = vadd.f32 %v1780, %v1781
      %v1783 = vmul.f32 %v1782, 0.010416667
      %v1784 = vadd.f32 %v1783, 0.0
      %v1785 = vmul.f32 %v669, %v919
      %v1786 = vmul.f32 %v670, %v921
      %v1787 = vmul.f32 %v671, %v924
      %v1788 = vmul.f32 %v672, %v926
      %v1789 = vmul.f32 %v673, %v929
      %v1790 = vmul.f32 %v674, %v931
      %v1791 = vmul.f32 %v675, %v934
      %v1792 = vmul.f32 %v676, %v936
      %v1793 = vmul.f32 %v677, %v939
      %v1794 = vmul.f32 %v678, %v941
      %1795 = vadd.xlane.f32.xlu0 %v1785
      %v1796 = vpop.xlane.xlu0 %1795
      %1797 = vadd.xlane.f32.xlu0 %v1786
      %v1798 = vpop.xlane.xlu0 %1797
      %1799 = vadd.xlane.f32.xlu0 %v1787
      %v1800 = vpop.xlane.xlu0 %1799
      %1801 = vadd.xlane.f32.xlu0 %v1788
      %v1802 = vpop.xlane.xlu0 %1801
      %1803 = vadd.xlane.f32.xlu0 %v1789
      %v1804 = vpop.xlane.xlu0 %1803
      %1805 = vadd.xlane.f32.xlu0 %v1790
      %v1806 = vpop.xlane.xlu0 %1805
      %1807 = vadd.xlane.f32.xlu0 %v1791
      %v1808 = vpop.xlane.xlu0 %1807
      %1809 = vadd.xlane.f32.xlu0 %v1792
      %v1810 = vpop.xlane.xlu0 %1809
      %1811 = vadd.xlane.f32.xlu0 %v1793
      %v1812 = vpop.xlane.xlu0 %1811
      %1813 = vadd.xlane.f32.xlu0 %v1794
      %v1814 = vpop.xlane.xlu0 %1813
      %v1815 = vunpack.c.h.b16 %v986
      %v1816 = vunpack.c.h.b16 %v987
      %v1817 = vunpack.c.h.b16 %v988
      %v1818 = vunpack.c.h.b16 %v990
      %v1819 = vunpack.c.h.b16 %v992
      %v1820 = vunpack.c.h.b16 %v994
      %v1821 = vunpack.c.h.b16 %v996
      %v1822 = vunpack.c.h.b16 %v998
      %v1823 = vunpack.c.h.b16 %v1000
      %v1824 = vunpack.c.h.b16 %v1002
      %v1825 = vpack.c.b16 %v1816, %v1815
      %v1826 = vpack.c.b16 %v1818, %v1817
      %v1827 = vpack.c.b16 %v1820, %v1819
      %v1828 = vpack.c.b16 %v1822, %v1821
      %v1829 = vpack.c.b16 %v1824, %v1823
      %1835 = vmatpush.bf16.xpose.msra.mxu0 0
      %1836 = vmatpush.bf16.xpose.msra.mxu0 0
      %1837 = vmatpush.bf16.xpose.msra.mxu0 0
      %1838 = vmatpush.bf16.xpose.msra.mxu0 %v1829
      %1839 = vmatpush.bf16.xpose.msra.mxu0 %v1828
      %1840 = vmatpush.bf16.xpose.msra.mxu0 %v1827
      %1841 = vmatpush.bf16.xpose.msra.mxu0 %v1826
      %1842 = vmatpush.bf16.xpose.msra.mxu0 %v1825
      %1843 = vmatmul.bf16.gmra.mxu0 %v1076
      %v1844 = vpop.f32.mrf.mxu0
      %v1845 = vadd.f32 0.0, %v1844
      %v1846 = vpop.f32.mrf.mxu0
      %v1847 = vadd.f32 0.0, %v1846
      %1848 = vmatmul.bf16.gmra.mxu0 %v1077
      %v1849 = vpop.f32.mrf.mxu0
      %v1850 = vadd.f32 0.0, %v1849
      %v1851 = vpop.f32.mrf.mxu0
      %v1852 = vadd.f32 0.0, %v1851
      %1853 = vmatmul.bf16.gmra.mxu0 %v1078
      %v1854 = vpop.f32.mrf.mxu0
      %v1855 = vadd.f32 0.0, %v1854
      %v1856 = vpop.f32.mrf.mxu0
      %v1857 = vadd.f32 0.0, %v1856
      %1858 = vmatmul.bf16.gmra.mxu0 %v1079
      %v1859 = vpop.f32.mrf.mxu0
      %v1860 = vadd.f32 0.0, %v1859
      %v1861 = vpop.f32.mrf.mxu0
      %v1862 = vadd.f32 0.0, %v1861
      %1863 = vmatmul.bf16.gmra.mxu0 %v1080
      %v1864 = vpop.f32.mrf.mxu0
      %v1865 = vadd.f32 0.0, %v1864
      %v1866 = vpop.f32.mrf.mxu0
      %v1867 = vadd.f32 0.0, %v1866
      %1868 = vdwg.mxu0
      %1869 = vset.pattern.permute.xlu0 4
      %1870 = vperm.xlu0 %1869, %v1004
      %v1871 = vpop.permute.xlu0 %1870
      %1872 = vset.pattern.permute.xlu0 4
      %1873 = vperm.xlu0 %1872, %v1005
      %v1874 = vpop.permute.xlu0 %1873
      %1875 = vset.pattern.permute.xlu0 4
      %1876 = vperm.xlu0 %1875, %v1006
      %v1877 = vpop.permute.xlu0 %1876
      %1878 = vset.pattern.permute.xlu0 4
      %1879 = vperm.xlu0 %1878, %v1007
      %v1880 = vpop.permute.xlu0 %1879
      %1881 = vset.pattern.permute.xlu0 4
      %1882 = vperm.xlu0 %1881, %v1008
      %v1883 = vpop.permute.xlu0 %1882
      %1884 = vset.pattern.permute.xlu0 4
      %1885 = vperm.xlu0 %1884, %v1009
      %v1886 = vpop.permute.xlu0 %1885
      %1887 = vset.pattern.permute.xlu0 4
      %1888 = vperm.xlu0 %1887, %v1010
      %v1889 = vpop.permute.xlu0 %1888
      %1890 = vset.pattern.permute.xlu0 4
      %1891 = vperm.xlu0 %1890, %v1011
      %v1892 = vpop.permute.xlu0 %1891
      %1893 = vset.pattern.permute.xlu0 4
      %1894 = vperm.xlu0 %1893, %v1012
      %v1895 = vpop.permute.xlu0 %1894
      %1896 = vset.pattern.permute.xlu0 4
      %1897 = vperm.xlu0 %1896, %v1013
      %v1898 = vpop.permute.xlu0 %1897
      %vm1899 = vcmp.eq.s32.totalorder %v1164, %v1871
      %vm1900 = vcmp.eq.s32.totalorder %v1164, %v1874
      %vm1901 = vcmp.eq.s32.totalorder %v1164, %v1877
      %vm1902 = vcmp.eq.s32.totalorder %v1164, %v1880
      %vm1903 = vcmp.eq.s32.totalorder %v1164, %v1883
      %vm1904 = vcmp.eq.s32.totalorder %v1164, %v1886
      %vm1905 = vcmp.eq.s32.totalorder %v1164, %v1889
      %vm1906 = vcmp.eq.s32.totalorder %v1164, %v1892
      %vm1907 = vcmp.eq.s32.totalorder %v1164, %v1895
      %vm1908 = vcmp.eq.s32.totalorder %v1164, %v1898
      %v1909 = vsel %vm1899, 1, 0
      %v1910 = vsel %vm1900, 1, 0
      %v1911 = vsel %vm1901, 1, 0
      %v1912 = vsel %vm1902, 1, 0
      %v1913 = vsel %vm1903, 1, 0
      %v1914 = vsel %vm1904, 1, 0
      %v1915 = vsel %vm1905, 1, 0
      %v1916 = vsel %vm1906, 1, 0
      %v1917 = vsel %vm1907, 1, 0
      %v1918 = vsel %vm1908, 1, 0
      %v1919 = vcvt.s32.f32 %v1909
      %v1920 = vcvt.s32.f32 %v1910
      %v1921 = vcvt.s32.f32 %v1911
      %v1922 = vcvt.s32.f32 %v1912
      %v1923 = vcvt.s32.f32 %v1913
      %v1924 = vcvt.s32.f32 %v1914
      %v1925 = vcvt.s32.f32 %v1915
      %v1926 = vcvt.s32.f32 %v1916
      %v1927 = vcvt.s32.f32 %v1917
      %v1928 = vcvt.s32.f32 %v1918
      %v1929 = vadd.f32 %v1919, 0.0
      %v1930 = vadd.f32 %v1920, 0.0
      %v1931 = vadd.f32 %v1921, 0.0
      %v1932 = vadd.f32 %v1922, 0.0
      %v1933 = vadd.f32 %v1923, 0.0
      %v1934 = vadd.f32 %v1924, 0.0
      %v1935 = vadd.f32 %v1925, 0.0
      %v1936 = vadd.f32 %v1926, 0.0
      %v1937 = vadd.f32 %v1927, 0.0
      %v1938 = vadd.f32 %v1928, 0.0
      %1939 = vset.pattern.permute.xlu0 5
      %1940 = vperm.xlu0 %1939, %v1004
      %v1941 = vpop.permute.xlu0 %1940
      %1942 = vset.pattern.permute.xlu0 5
      %1943 = vperm.xlu0 %1942, %v1005
      %v1944 = vpop.permute.xlu0 %1943
      %1945 = vset.pattern.permute.xlu0 5
      %1946 = vperm.xlu0 %1945, %v1006
      %v1947 = vpop.permute.xlu0 %1946
      %1948 = vset.pattern.permute.xlu0 5
      %1949 = vperm.xlu0 %1948, %v1007
      %v1950 = vpop.permute.xlu0 %1949
      %1951 = vset.pattern.permute.xlu0 5
      %1952 = vperm.xlu0 %1951, %v1008
      %v1953 = vpop.permute.xlu0 %1952
      %1954 = vset.pattern.permute.xlu0 5
      %1955 = vperm.xlu0 %1954, %v1009
      %v1956 = vpop.permute.xlu0 %1955
      %1957 = vset.pattern.permute.xlu0 5
      %1958 = vperm.xlu0 %1957, %v1010
      %v1959 = vpop.permute.xlu0 %1958
      %1960 = vset.pattern.permute.xlu0 5
      %1961 = vperm.xlu0 %1960, %v1011
      %v1962 = vpop.permute.xlu0 %1961
      %1963 = vset.pattern.permute.xlu0 5
      %1964 = vperm.xlu0 %1963, %v1012
      %v1965 = vpop.permute.xlu0 %1964
      %1966 = vset.pattern.permute.xlu0 5
      %1967 = vperm.xlu0 %1966, %v1013
      %v1968 = vpop.permute.xlu0 %1967
      %vm1969 = vcmp.eq.s32.totalorder %v1164, %v1941
      %vm1970 = vcmp.eq.s32.totalorder %v1164, %v1944
      %vm1971 = vcmp.eq.s32.totalorder %v1164, %v1947
      %vm1972 = vcmp.eq.s32.totalorder %v1164, %v1950
      %vm1973 = vcmp.eq.s32.totalorder %v1164, %v1953
      %vm1974 = vcmp.eq.s32.totalorder %v1164, %v1956
      %vm1975 = vcmp.eq.s32.totalorder %v1164, %v1959
      %vm1976 = vcmp.eq.s32.totalorder %v1164, %v1962
      %vm1977 = vcmp.eq.s32.totalorder %v1164, %v1965
      %vm1978 = vcmp.eq.s32.totalorder %v1164, %v1968
      %v1979 = vsel %vm1969, 1, 0
      %v1980 = vsel %vm1970, 1, 0
      %v1981 = vsel %vm1971, 1, 0
      %v1982 = vsel %vm1972, 1, 0
      %v1983 = vsel %vm1973, 1, 0
      %v1984 = vsel %vm1974, 1, 0
      %v1985 = vsel %vm1975, 1, 0
      %v1986 = vsel %vm1976, 1, 0
      %v1987 = vsel %vm1977, 1, 0
      %v1988 = vsel %vm1978, 1, 0
      %v1989 = vcvt.s32.f32 %v1979
      %v1990 = vcvt.s32.f32 %v1980
      %v1991 = vcvt.s32.f32 %v1981
      %v1992 = vcvt.s32.f32 %v1982
      %v1993 = vcvt.s32.f32 %v1983
      %v1994 = vcvt.s32.f32 %v1984
      %v1995 = vcvt.s32.f32 %v1985
      %v1996 = vcvt.s32.f32 %v1986
      %v1997 = vcvt.s32.f32 %v1987
      %v1998 = vcvt.s32.f32 %v1988
      %v1999 = vadd.f32 %v1929, %v1989
      %v2000 = vadd.f32 %v1930, %v1990
      %v2001 = vadd.f32 %v1931, %v1991
      %v2002 = vadd.f32 %v1932, %v1992
      %v2003 = vadd.f32 %v1933, %v1993
      %v2004 = vadd.f32 %v1934, %v1994
      %v2005 = vadd.f32 %v1935, %v1995
      %v2006 = vadd.f32 %v1936, %v1996
      %v2007 = vadd.f32 %v1937, %v1997
      %v2008 = vadd.f32 %v1938, %v1998
      %2009 = vset.pattern.permute.xlu0 6
      %2010 = vperm.xlu0 %2009, %v1004
      %v2011 = vpop.permute.xlu0 %2010
      %2012 = vset.pattern.permute.xlu0 6
      %2013 = vperm.xlu0 %2012, %v1005
      %v2014 = vpop.permute.xlu0 %2013
      %2015 = vset.pattern.permute.xlu0 6
      %2016 = vperm.xlu0 %2015, %v1006
      %v2017 = vpop.permute.xlu0 %2016
      %2018 = vset.pattern.permute.xlu0 6
      %2019 = vperm.xlu0 %2018, %v1007
      %v2020 = vpop.permute.xlu0 %2019
      %2021 = vset.pattern.permute.xlu0 6
      %2022 = vperm.xlu0 %2021, %v1008
      %v2023 = vpop.permute.xlu0 %2022
      %2024 = vset.pattern.permute.xlu0 6
      %2025 = vperm.xlu0 %2024, %v1009
      %v2026 = vpop.permute.xlu0 %2025
      %2027 = vset.pattern.permute.xlu0 6
      %2028 = vperm.xlu0 %2027, %v1010
      %v2029 = vpop.permute.xlu0 %2028
      %2030 = vset.pattern.permute.xlu0 6
      %2031 = vperm.xlu0 %2030, %v1011
      %v2032 = vpop.permute.xlu0 %2031
      %2033 = vset.pattern.permute.xlu0 6
      %2034 = vperm.xlu0 %2033, %v1012
      %v2035 = vpop.permute.xlu0 %2034
      %2036 = vset.pattern.permute.xlu0 6
      %2037 = vperm.xlu0 %2036, %v1013
      %v2038 = vpop.permute.xlu0 %2037
      %vm2039 = vcmp.eq.s32.totalorder %v1164, %v2011
      %vm2040 = vcmp.eq.s32.totalorder %v1164, %v2014
      %vm2041 = vcmp.eq.s32.totalorder %v1164, %v2017
      %vm2042 = vcmp.eq.s32.totalorder %v1164, %v2020
      %vm2043 = vcmp.eq.s32.totalorder %v1164, %v2023
      %vm2044 = vcmp.eq.s32.totalorder %v1164, %v2026
      %vm2045 = vcmp.eq.s32.totalorder %v1164, %v2029
      %vm2046 = vcmp.eq.s32.totalorder %v1164, %v2032
      %vm2047 = vcmp.eq.s32.totalorder %v1164, %v2035
      %vm2048 = vcmp.eq.s32.totalorder %v1164, %v2038
      %v2049 = vsel %vm2039, 1, 0
      %v2050 = vsel %vm2040, 1, 0
      %v2051 = vsel %vm2041, 1, 0
      %v2052 = vsel %vm2042, 1, 0
      %v2053 = vsel %vm2043, 1, 0
      %v2054 = vsel %vm2044, 1, 0
      %v2055 = vsel %vm2045, 1, 0
      %v2056 = vsel %vm2046, 1, 0
      %v2057 = vsel %vm2047, 1, 0
      %v2058 = vsel %vm2048, 1, 0
      %v2059 = vcvt.s32.f32 %v2049
      %v2060 = vcvt.s32.f32 %v2050
      %v2061 = vcvt.s32.f32 %v2051
      %v2062 = vcvt.s32.f32 %v2052
      %v2063 = vcvt.s32.f32 %v2053
      %v2064 = vcvt.s32.f32 %v2054
      %v2065 = vcvt.s32.f32 %v2055
      %v2066 = vcvt.s32.f32 %v2056
      %v2067 = vcvt.s32.f32 %v2057
      %v2068 = vcvt.s32.f32 %v2058
      %v2069 = vadd.f32 %v1999, %v2059
      %v2070 = vadd.f32 %v2000, %v2060
      %v2071 = vadd.f32 %v2001, %v2061
      %v2072 = vadd.f32 %v2002, %v2062
      %v2073 = vadd.f32 %v2003, %v2063
      %v2074 = vadd.f32 %v2004, %v2064
      %v2075 = vadd.f32 %v2005, %v2065
      %v2076 = vadd.f32 %v2006, %v2066
      %v2077 = vadd.f32 %v2007, %v2067
      %v2078 = vadd.f32 %v2008, %v2068
      %2079 = vset.pattern.permute.xlu0 7
      %2080 = vperm.xlu0 %2079, %v1004
      %v2081 = vpop.permute.xlu0 %2080
      %2082 = vset.pattern.permute.xlu0 7
      %2083 = vperm.xlu0 %2082, %v1005
      %v2084 = vpop.permute.xlu0 %2083
      %2085 = vset.pattern.permute.xlu0 7
      %2086 = vperm.xlu0 %2085, %v1006
      %v2087 = vpop.permute.xlu0 %2086
      %2088 = vset.pattern.permute.xlu0 7
      %2089 = vperm.xlu0 %2088, %v1007
      %v2090 = vpop.permute.xlu0 %2089
      %2091 = vset.pattern.permute.xlu0 7
      %2092 = vperm.xlu0 %2091, %v1008
      %v2093 = vpop.permute.xlu0 %2092
      %2094 = vset.pattern.permute.xlu0 7
      %2095 = vperm.xlu0 %2094, %v1009
      %v2096 = vpop.permute.xlu0 %2095
      %2097 = vset.pattern.permute.xlu0 7
      %2098 = vperm.xlu0 %2097, %v1010
      %v2099 = vpop.permute.xlu0 %2098
      %2100 = vset.pattern.permute.xlu0 7
      %2101 = vperm.xlu0 %2100, %v1011
      %v2102 = vpop.permute.xlu0 %2101
      %2103 = vset.pattern.permute.xlu0 7
      %2104 = vperm.xlu0 %2103, %v1012
      %v2105 = vpop.permute.xlu0 %2104
      %2106 = vset.pattern.permute.xlu0 7
      %2107 = vperm.xlu0 %2106, %v1013
      %v2108 = vpop.permute.xlu0 %2107
      %vm2109 = vcmp.eq.s32.totalorder %v1164, %v2081
      %vm2110 = vcmp.eq.s32.totalorder %v1164, %v2084
      %vm2111 = vcmp.eq.s32.totalorder %v1164, %v2087
      %vm2112 = vcmp.eq.s32.totalorder %v1164, %v2090
      %vm2113 = vcmp.eq.s32.totalorder %v1164, %v2093
      %vm2114 = vcmp.eq.s32.totalorder %v1164, %v2096
      %vm2115 = vcmp.eq.s32.totalorder %v1164, %v2099
      %vm2116 = vcmp.eq.s32.totalorder %v1164, %v2102
      %vm2117 = vcmp.eq.s32.totalorder %v1164, %v2105
      %vm2118 = vcmp.eq.s32.totalorder %v1164, %v2108
      %v2119 = vsel %vm2109, 1, 0
      %v2120 = vsel %vm2110, 1, 0
      %v2121 = vsel %vm2111, 1, 0
      %v2122 = vsel %vm2112, 1, 0
      %v2123 = vsel %vm2113, 1, 0
      %v2124 = vsel %vm2114, 1, 0
      %v2125 = vsel %vm2115, 1, 0
      %v2126 = vsel %vm2116, 1, 0
      %v2127 = vsel %vm2117, 1, 0
      %v2128 = vsel %vm2118, 1, 0
      %v2129 = vcvt.s32.f32 %v2119
      %v2130 = vcvt.s32.f32 %v2120
      %v2131 = vcvt.s32.f32 %v2121
      %v2132 = vcvt.s32.f32 %v2122
      %v2133 = vcvt.s32.f32 %v2123
      %v2134 = vcvt.s32.f32 %v2124
      %v2135 = vcvt.s32.f32 %v2125
      %v2136 = vcvt.s32.f32 %v2126
      %v2137 = vcvt.s32.f32 %v2127
      %v2138 = vcvt.s32.f32 %v2128
      %v2139 = vadd.f32 %v2069, %v2129
      %v2140 = vadd.f32 %v2070, %v2130
      %v2141 = vadd.f32 %v2071, %v2131
      %v2142 = vadd.f32 %v2072, %v2132
      %v2143 = vadd.f32 %v2073, %v2133
      %v2144 = vadd.f32 %v2074, %v2134
      %v2145 = vadd.f32 %v2075, %v2135
      %v2146 = vadd.f32 %v2076, %v2136
      %v2147 = vadd.f32 %v2077, %v2137
      %v2148 = vadd.f32 %v2078, %v2138
      %vm2149 = vcmp.gt.f32.partialorder %v2139, 0.0
      %vm2150 = vcmp.gt.f32.partialorder %v2140, 0.0
      %vm2151 = vcmp.gt.f32.partialorder %v2141, 0.0
      %vm2152 = vcmp.gt.f32.partialorder %v2142, 0.0
      %vm2153 = vcmp.gt.f32.partialorder %v2143, 0.0
      %vm2154 = vcmp.gt.f32.partialorder %v2144, 0.0
      %vm2155 = vcmp.gt.f32.partialorder %v2145, 0.0
      %vm2156 = vcmp.gt.f32.partialorder %v2146, 0.0
      %vm2157 = vcmp.gt.f32.partialorder %v2147, 0.0
      %vm2158 = vcmp.gt.f32.partialorder %v2148, 0.0
      %v2159 = vsel %vm2149, %v1845, -1e+30
      %v2160 = vsel %vm2150, %v1847, -1e+30
      %v2161 = vsel %vm2151, %v1850, -1e+30
      %v2162 = vsel %vm2152, %v1852, -1e+30
      %v2163 = vsel %vm2153, %v1855, -1e+30
      %v2164 = vsel %vm2154, %v1857, -1e+30
      %v2165 = vsel %vm2155, %v1860, -1e+30
      %v2166 = vsel %vm2156, %v1862, -1e+30
      %v2167 = vsel %vm2157, %v1865, -1e+30
      %v2168 = vsel %vm2158, %v1867, -1e+30
      %vm2169 = vcmask 654336
      %v2170 = vsel %vm2169, %v2159, -inf
      %2171 = vmax.xlane.f32.xlu0 %v2170
      %v2172 = vpop.xlane.xlu0 %2171
      %v2173 = vsel %vm2169, %v2160, -inf
      %2174 = vmax.xlane.f32.xlu0 %v2173
      %v2175 = vpop.xlane.xlu0 %2174
      %v2176 = vsel %vm2169, %v2161, -inf
      %2177 = vmax.xlane.f32.xlu0 %v2176
      %v2178 = vpop.xlane.xlu0 %2177
      %v2179 = vsel %vm2169, %v2162, -inf
      %2180 = vmax.xlane.f32.xlu0 %v2179
      %v2181 = vpop.xlane.xlu0 %2180
      %v2182 = vsel %vm2169, %v2163, -inf
      %2183 = vmax.xlane.f32.xlu0 %v2182
      %v2184 = vpop.xlane.xlu0 %2183
      %v2185 = vsel %vm2169, %v2164, -inf
      %2186 = vmax.xlane.f32.xlu0 %v2185
      %v2187 = vpop.xlane.xlu0 %2186
      %v2188 = vsel %vm2169, %v2165, -inf
      %2189 = vmax.xlane.f32.xlu0 %v2188
      %v2190 = vpop.xlane.xlu0 %2189
      %v2191 = vsel %vm2169, %v2166, -inf
      %2192 = vmax.xlane.f32.xlu0 %v2191
      %v2193 = vpop.xlane.xlu0 %2192
      %v2194 = vsel %vm2169, %v2167, -inf
      %2195 = vmax.xlane.f32.xlu0 %v2194
      %v2196 = vpop.xlane.xlu0 %2195
      %v2197 = vsel %vm2169, %v2168, -inf
      %2198 = vmax.xlane.f32.xlu0 %v2197
      %v2199 = vpop.xlane.xlu0 %2198
      %v2200 = vmax.f32 %v1796, %v2172
      %v2201 = vmax.f32 %v1798, %v2175
      %v2202 = vmax.f32 %v1800, %v2178
      %v2203 = vmax.f32 %v1802, %v2181
      %v2204 = vmax.f32 %v1804, %v2184
      %v2205 = vmax.f32 %v1806, %v2187
      %v2206 = vmax.f32 %v1808, %v2190
      %v2207 = vmax.f32 %v1810, %v2193
      %v2208 = vmax.f32 %v1812, %v2196
      %v2209 = vmax.f32 %v1814, %v2199
      %v2210 = vsub.f32 %v1845, %v2200
      %v2211 = vsub.f32 %v1847, %v2201
      %v2212 = vsub.f32 %v1850, %v2202
      %v2213 = vsub.f32 %v1852, %v2203
      %v2214 = vsub.f32 %v1855, %v2204
      %v2215 = vsub.f32 %v1857, %v2205
      %v2216 = vsub.f32 %v1860, %v2206
      %v2217 = vsub.f32 %v1862, %v2207
      %v2218 = vsub.f32 %v1865, %v2208
      %v2219 = vsub.f32 %v1867, %v2209
      %v2220 = vsel %vm2149, %v2210, -1e+30
      %v2221 = vsel %vm2150, %v2211, -1e+30
      %v2222 = vsel %vm2151, %v2212, -1e+30
      %v2223 = vsel %vm2152, %v2213, -1e+30
      %v2224 = vsel %vm2153, %v2214, -1e+30
      %v2225 = vsel %vm2154, %v2215, -1e+30
      %v2226 = vsel %vm2155, %v2216, -1e+30
      %v2227 = vsel %vm2156, %v2217, -1e+30
      %v2228 = vsel %vm2157, %v2218, -1e+30
      %v2229 = vsel %vm2158, %v2219, -1e+30
      %v2230 = vmul.f32 %v2220, 1.442695
      %v2231 = vpow.pop %v2230
      %v2232 = vmul.f32 %v2221, 1.442695
      %v2233 = vpow.pop %v2232
      %v2234 = vmul.f32 %v2222, 1.442695
      %v2235 = vpow.pop %v2234
      %v2236 = vmul.f32 %v2223, 1.442695
      %v2237 = vpow.pop %v2236
      %v2238 = vmul.f32 %v2224, 1.442695
      %v2239 = vpow.pop %v2238
      %v2240 = vmul.f32 %v2225, 1.442695
      %v2241 = vpow.pop %v2240
      %v2242 = vmul.f32 %v2226, 1.442695
      %v2243 = vpow.pop %v2242
      %v2244 = vmul.f32 %v2227, 1.442695
      %v2245 = vpow.pop %v2244
      %v2246 = vmul.f32 %v2228, 1.442695
      %v2247 = vpow.pop %v2246
      %v2248 = vmul.f32 %v2229, 1.442695
      %v2249 = vpow.pop %v2248
      %v2250 = vsub.f32 %v1796, %v2200
      %v2251 = vsub.f32 %v1798, %v2201
      %v2252 = vsub.f32 %v1800, %v2202
      %v2253 = vsub.f32 %v1802, %v2203
      %v2254 = vsub.f32 %v1804, %v2204
      %v2255 = vsub.f32 %v1806, %v2205
      %v2256 = vsub.f32 %v1808, %v2206
      %v2257 = vsub.f32 %v1810, %v2207
      %v2258 = vsub.f32 %v1812, %v2208
      %v2259 = vsub.f32 %v1814, %v2209
      %v2260 = vmul.f32 %v2250, 1.442695
      %v2261 = vpow.pop %v2260
      %v2262 = vmul.f32 %v2251, 1.442695
      %v2263 = vpow.pop %v2262
      %v2264 = vmul.f32 %v2252, 1.442695
      %v2265 = vpow.pop %v2264
      %v2266 = vmul.f32 %v2253, 1.442695
      %v2267 = vpow.pop %v2266
      %v2268 = vmul.f32 %v2254, 1.442695
      %v2269 = vpow.pop %v2268
      %v2270 = vmul.f32 %v2255, 1.442695
      %v2271 = vpow.pop %v2270
      %v2272 = vmul.f32 %v2256, 1.442695
      %v2273 = vpow.pop %v2272
      %v2274 = vmul.f32 %v2257, 1.442695
      %v2275 = vpow.pop %v2274
      %v2276 = vmul.f32 %v2258, 1.442695
      %v2277 = vpow.pop %v2276
      %v2278 = vmul.f32 %v2259, 1.442695
      %v2279 = vpow.pop %v2278
      %v2280 = vmul.f32 %v2139, %v2231
      %v2281 = vmul.f32 %v2140, %v2233
      %v2282 = vmul.f32 %v2141, %v2235
      %v2283 = vmul.f32 %v2142, %v2237
      %v2284 = vmul.f32 %v2143, %v2239
      %v2285 = vmul.f32 %v2144, %v2241
      %v2286 = vmul.f32 %v2145, %v2243
      %v2287 = vmul.f32 %v2146, %v2245
      %v2288 = vmul.f32 %v2147, %v2247
      %v2289 = vmul.f32 %v2148, %v2249
      %v2290 = vsel %vm2169, %v2280, 0.0
      %2291 = vadd.xlane.f32.xlu0 %v2290
      %v2292 = vpop.xlane.xlu0 %2291
      %v2293 = vsel %vm2169, %v2281, 0.0
      %2294 = vadd.xlane.f32.xlu0 %v2293
      %v2295 = vpop.xlane.xlu0 %2294
      %v2296 = vsel %vm2169, %v2282, 0.0
      %2297 = vadd.xlane.f32.xlu0 %v2296
      %v2298 = vpop.xlane.xlu0 %2297
      %v2299 = vsel %vm2169, %v2283, 0.0
      %2300 = vadd.xlane.f32.xlu0 %v2299
      %v2301 = vpop.xlane.xlu0 %2300
      %v2302 = vsel %vm2169, %v2284, 0.0
      %2303 = vadd.xlane.f32.xlu0 %v2302
      %v2304 = vpop.xlane.xlu0 %2303
      %v2305 = vsel %vm2169, %v2285, 0.0
      %2306 = vadd.xlane.f32.xlu0 %v2305
      %v2307 = vpop.xlane.xlu0 %2306
      %v2308 = vsel %vm2169, %v2286, 0.0
      %2309 = vadd.xlane.f32.xlu0 %v2308
      %v2310 = vpop.xlane.xlu0 %2309
      %v2311 = vsel %vm2169, %v2287, 0.0
      %2312 = vadd.xlane.f32.xlu0 %v2311
      %v2313 = vpop.xlane.xlu0 %2312
      %v2314 = vsel %vm2169, %v2288, 0.0
      %2315 = vadd.xlane.f32.xlu0 %v2314
      %v2316 = vpop.xlane.xlu0 %2315
      %v2317 = vsel %vm2169, %v2289, 0.0
      %2318 = vadd.xlane.f32.xlu0 %v2317
      %v2319 = vpop.xlane.xlu0 %2318
      %v2320 = vadd.f32 %v2261, %v2292
      %v2321 = vadd.f32 %v2263, %v2295
      %v2322 = vadd.f32 %v2265, %v2298
      %v2323 = vadd.f32 %v2267, %v2301
      %v2324 = vadd.f32 %v2269, %v2304
      %v2325 = vadd.f32 %v2271, %v2307
      %v2326 = vadd.f32 %v2273, %v2310
      %v2327 = vadd.f32 %v2275, %v2313
      %v2328 = vadd.f32 %v2277, %v2316
      %v2329 = vadd.f32 %v2279, %v2319
      %v2330 = vlog2.pop %v2320
      %v2331 = vmul.f32 %v2330, 0.6931472
      %v2332 = vlog2.pop %v2321
      %v2333 = vmul.f32 %v2332, 0.6931472
      %v2334 = vlog2.pop %v2322
      %v2335 = vmul.f32 %v2334, 0.6931472
      %v2336 = vlog2.pop %v2323
      %v2337 = vmul.f32 %v2336, 0.6931472
      %v2338 = vlog2.pop %v2324
      %v2339 = vmul.f32 %v2338, 0.6931472
      %v2340 = vlog2.pop %v2325
      %v2341 = vmul.f32 %v2340, 0.6931472
      %v2342 = vlog2.pop %v2326
      %v2343 = vmul.f32 %v2342, 0.6931472
      %v2344 = vlog2.pop %v2327
      %v2345 = vmul.f32 %v2344, 0.6931472
      %v2346 = vlog2.pop %v2328
      %v2347 = vmul.f32 %v2346, 0.6931472
      %v2348 = vlog2.pop %v2329
      %v2349 = vmul.f32 %v2348, 0.6931472
      %v2350 = vadd.f32 %v2200, %v2331
      %v2351 = vadd.f32 %v2201, %v2333
      %v2352 = vadd.f32 %v2202, %v2335
      %v2353 = vadd.f32 %v2203, %v2337
      %v2354 = vadd.f32 %v2204, %v2339
      %v2355 = vadd.f32 %v2205, %v2341
      %v2356 = vadd.f32 %v2206, %v2343
      %v2357 = vadd.f32 %v2207, %v2345
      %v2358 = vadd.f32 %v2208, %v2347
      %v2359 = vadd.f32 %v2209, %v2349
      %v2360 = vsub.f32 %v2350, %v1796
      %v2361 = vsub.f32 %v2351, %v1798
      %v2362 = vsub.f32 %v2352, %v1800
      %v2363 = vsub.f32 %v2353, %v1802
      %v2364 = vsub.f32 %v2354, %v1804
      %v2365 = vsub.f32 %v2355, %v1806
      %v2366 = vsub.f32 %v2356, %v1808
      %v2367 = vsub.f32 %v2357, %v1810
      %v2368 = vsub.f32 %v2358, %v1812
      %v2369 = vsub.f32 %v2359, %v1814
      %v2370 = vadd.f32 %v2360, %v2361
      %v2371 = vadd.f32 %v2370, %v2362
      %v2372 = vadd.f32 %v2371, %v2363
      %v2373 = vadd.f32 %v2372, %v2364
      %v2374 = vadd.f32 %v2373, %v2365
      %v2375 = vadd.f32 %v2374, %v2366
      %v2376 = vadd.f32 %v2375, %v2367
      %v2377 = vadd.f32 %v2376, %v2368
      %v2378 = vadd.f32 %v2377, %v2369
      %v2379 = vrot.slane %v2378, 4
      %v2380 = vadd.f32 %v2378, %v2379
      %v2381 = vrot.slane %v2380, 2
      %v2382 = vadd.f32 %v2380, %v2381
      %v2383 = vrot.slane %v2382, 1
      %v2384 = vadd.f32 %v2382, %v2383
      %v2385 = vmul.f32 %v2384, 0.0125
      %v2386 = vadd.f32 %v1784, %v2385
      %v2387 = vmul.f32 %v669, %v965
      %v2388 = vmul.f32 %v670, %v967
      %v2389 = vmul.f32 %v671, %v970
      %v2390 = vmul.f32 %v672, %v972
      %v2391 = vmul.f32 %v673, %v975
      %v2392 = vmul.f32 %v674, %v977
      %v2393 = vmul.f32 %v675, %v980
      %v2394 = vmul.f32 %v676, %v982
      %2395 = vadd.xlane.f32.xlu0 %v2387
      %v2396 = vpop.xlane.xlu0 %2395
      %2397 = vadd.xlane.f32.xlu0 %v2388
      %v2398 = vpop.xlane.xlu0 %2397
      %2399 = vadd.xlane.f32.xlu0 %v2389
      %v2400 = vpop.xlane.xlu0 %2399
      %2401 = vadd.xlane.f32.xlu0 %v2390
      %v2402 = vpop.xlane.xlu0 %2401
      %2403 = vadd.xlane.f32.xlu0 %v2391
      %v2404 = vpop.xlane.xlu0 %2403
      %2405 = vadd.xlane.f32.xlu0 %v2392
      %v2406 = vpop.xlane.xlu0 %2405
      %2407 = vadd.xlane.f32.xlu0 %v2393
      %v2408 = vpop.xlane.xlu0 %2407
      %2409 = vadd.xlane.f32.xlu0 %v2394
      %v2410 = vpop.xlane.xlu0 %2409
      %v2419 = vunpack.c.l.b16 %v989
      %v2420 = vunpack.c.l.b16 %v991
      %v2421 = vunpack.c.l.b16 %v993
      %v2422 = vunpack.c.l.b16 %v995
      %v2423 = vunpack.c.l.b16 %v997
      %v2424 = vunpack.c.l.b16 %v999
      %v2425 = vunpack.c.l.b16 %v1001
      %v2426 = vunpack.c.l.b16 %v1003
      %v2427 = vpack.c.b16 %v2420, %v2419
      %v2428 = vpack.c.b16 %v2422, %v2421
      %v2429 = vpack.c.b16 %v2424, %v2423
      %v2430 = vpack.c.b16 %v2426, %v2425
      %2435 = vmatpush.bf16.xpose.msra.mxu0 0
      %2436 = vmatpush.bf16.xpose.msra.mxu0 0
      %2437 = vmatpush.bf16.xpose.msra.mxu0 0
      %2438 = vmatpush.bf16.xpose.msra.mxu0 0
      %2439 = vmatpush.bf16.xpose.msra.mxu0 %v2430
      %2440 = vmatpush.bf16.xpose.msra.mxu0 %v2429
      %2441 = vmatpush.bf16.xpose.msra.mxu0 %v2428
      %2442 = vmatpush.bf16.xpose.msra.mxu0 %v2427
      %2443 = vmatmul.bf16.gmra.mxu0 %v1076
      %v2444 = vpop.f32.mrf.mxu0
      %v2445 = vadd.f32 0.0, %v2444
      %v2446 = vpop.f32.mrf.mxu0
      %v2447 = vadd.f32 0.0, %v2446
      %2448 = vmatmul.bf16.gmra.mxu0 %v1077
      %v2449 = vpop.f32.mrf.mxu0
      %v2450 = vadd.f32 0.0, %v2449
      %v2451 = vpop.f32.mrf.mxu0
      %v2452 = vadd.f32 0.0, %v2451
      %2453 = vmatmul.bf16.gmra.mxu0 %v1078
      %v2454 = vpop.f32.mrf.mxu0
      %v2455 = vadd.f32 0.0, %v2454
      %v2456 = vpop.f32.mrf.mxu0
      %v2457 = vadd.f32 0.0, %v2456
      %2458 = vmatmul.bf16.gmra.mxu0 %v1079
      %v2459 = vpop.f32.mrf.mxu0
      %v2460 = vadd.f32 0.0, %v2459
      %v2461 = vpop.f32.mrf.mxu0
      %v2462 = vadd.f32 0.0, %v2461
      %2463 = vdwg.mxu0
      %2464 = vset.pattern.permute.xlu0 8
      %2465 = vperm.xlu0 %2464, %v1004
      %v2466 = vpop.permute.xlu0 %2465
      %2467 = vset.pattern.permute.xlu0 8
      %2468 = vperm.xlu0 %2467, %v1005
      %v2469 = vpop.permute.xlu0 %2468
      %2470 = vset.pattern.permute.xlu0 8
      %2471 = vperm.xlu0 %2470, %v1006
      %v2472 = vpop.permute.xlu0 %2471
      %2473 = vset.pattern.permute.xlu0 8
      %2474 = vperm.xlu0 %2473, %v1007
      %v2475 = vpop.permute.xlu0 %2474
      %2476 = vset.pattern.permute.xlu0 8
      %2477 = vperm.xlu0 %2476, %v1008
      %v2478 = vpop.permute.xlu0 %2477
      %2479 = vset.pattern.permute.xlu0 8
      %2480 = vperm.xlu0 %2479, %v1009
      %v2481 = vpop.permute.xlu0 %2480
      %2482 = vset.pattern.permute.xlu0 8
      %2483 = vperm.xlu0 %2482, %v1010
      %v2484 = vpop.permute.xlu0 %2483
      %2485 = vset.pattern.permute.xlu0 8
      %2486 = vperm.xlu0 %2485, %v1011
      %v2487 = vpop.permute.xlu0 %2486
      %vm2488 = vcmp.eq.s32.totalorder %v1164, %v2466
      %vm2489 = vcmp.eq.s32.totalorder %v1164, %v2469
      %vm2490 = vcmp.eq.s32.totalorder %v1164, %v2472
      %vm2491 = vcmp.eq.s32.totalorder %v1164, %v2475
      %vm2492 = vcmp.eq.s32.totalorder %v1164, %v2478
      %vm2493 = vcmp.eq.s32.totalorder %v1164, %v2481
      %vm2494 = vcmp.eq.s32.totalorder %v1164, %v2484
      %vm2495 = vcmp.eq.s32.totalorder %v1164, %v2487
      %v2496 = vsel %vm2488, 1, 0
      %v2497 = vsel %vm2489, 1, 0
      %v2498 = vsel %vm2490, 1, 0
      %v2499 = vsel %vm2491, 1, 0
      %v2500 = vsel %vm2492, 1, 0
      %v2501 = vsel %vm2493, 1, 0
      %v2502 = vsel %vm2494, 1, 0
      %v2503 = vsel %vm2495, 1, 0
      %v2504 = vcvt.s32.f32 %v2496
      %v2505 = vcvt.s32.f32 %v2497
      %v2506 = vcvt.s32.f32 %v2498
      %v2507 = vcvt.s32.f32 %v2499
      %v2508 = vcvt.s32.f32 %v2500
      %v2509 = vcvt.s32.f32 %v2501
      %v2510 = vcvt.s32.f32 %v2502
      %v2511 = vcvt.s32.f32 %v2503
      %v2512 = vadd.f32 %v2504, 0.0
      %v2513 = vadd.f32 %v2505, 0.0
      %v2514 = vadd.f32 %v2506, 0.0
      %v2515 = vadd.f32 %v2507, 0.0
      %v2516 = vadd.f32 %v2508, 0.0
      %v2517 = vadd.f32 %v2509, 0.0
      %v2518 = vadd.f32 %v2510, 0.0
      %v2519 = vadd.f32 %v2511, 0.0
      %2520 = vset.pattern.permute.xlu0 9
      %2521 = vperm.xlu0 %2520, %v1004
      %v2522 = vpop.permute.xlu0 %2521
      %2523 = vset.pattern.permute.xlu0 9
      %2524 = vperm.xlu0 %2523, %v1005
      %v2525 = vpop.permute.xlu0 %2524
      %2526 = vset.pattern.permute.xlu0 9
      %2527 = vperm.xlu0 %2526, %v1006
      %v2528 = vpop.permute.xlu0 %2527
      %2529 = vset.pattern.permute.xlu0 9
      %2530 = vperm.xlu0 %2529, %v1007
      %v2531 = vpop.permute.xlu0 %2530
      %2532 = vset.pattern.permute.xlu0 9
      %2533 = vperm.xlu0 %2532, %v1008
      %v2534 = vpop.permute.xlu0 %2533
      %2535 = vset.pattern.permute.xlu0 9
      %2536 = vperm.xlu0 %2535, %v1009
      %v2537 = vpop.permute.xlu0 %2536
      %2538 = vset.pattern.permute.xlu0 9
      %2539 = vperm.xlu0 %2538, %v1010
      %v2540 = vpop.permute.xlu0 %2539
      %2541 = vset.pattern.permute.xlu0 9
      %2542 = vperm.xlu0 %2541, %v1011
      %v2543 = vpop.permute.xlu0 %2542
      %vm2544 = vcmp.eq.s32.totalorder %v1164, %v2522
      %vm2545 = vcmp.eq.s32.totalorder %v1164, %v2525
      %vm2546 = vcmp.eq.s32.totalorder %v1164, %v2528
      %vm2547 = vcmp.eq.s32.totalorder %v1164, %v2531
      %vm2548 = vcmp.eq.s32.totalorder %v1164, %v2534
      %vm2549 = vcmp.eq.s32.totalorder %v1164, %v2537
      %vm2550 = vcmp.eq.s32.totalorder %v1164, %v2540
      %vm2551 = vcmp.eq.s32.totalorder %v1164, %v2543
      %v2552 = vsel %vm2544, 1, 0
      %v2553 = vsel %vm2545, 1, 0
      %v2554 = vsel %vm2546, 1, 0
      %v2555 = vsel %vm2547, 1, 0
      %v2556 = vsel %vm2548, 1, 0
      %v2557 = vsel %vm2549, 1, 0
      %v2558 = vsel %vm2550, 1, 0
      %v2559 = vsel %vm2551, 1, 0
      %v2560 = vcvt.s32.f32 %v2552
      %v2561 = vcvt.s32.f32 %v2553
      %v2562 = vcvt.s32.f32 %v2554
      %v2563 = vcvt.s32.f32 %v2555
      %v2564 = vcvt.s32.f32 %v2556
      %v2565 = vcvt.s32.f32 %v2557
      %v2566 = vcvt.s32.f32 %v2558
      %v2567 = vcvt.s32.f32 %v2559
      %v2568 = vadd.f32 %v2512, %v2560
      %v2569 = vadd.f32 %v2513, %v2561
      %v2570 = vadd.f32 %v2514, %v2562
      %v2571 = vadd.f32 %v2515, %v2563
      %v2572 = vadd.f32 %v2516, %v2564
      %v2573 = vadd.f32 %v2517, %v2565
      %v2574 = vadd.f32 %v2518, %v2566
      %v2575 = vadd.f32 %v2519, %v2567
      %2576 = vset.pattern.permute.xlu0 10
      %2577 = vperm.xlu0 %2576, %v1004
      %v2578 = vpop.permute.xlu0 %2577
      %2579 = vset.pattern.permute.xlu0 10
      %2580 = vperm.xlu0 %2579, %v1005
      %v2581 = vpop.permute.xlu0 %2580
      %2582 = vset.pattern.permute.xlu0 10
      %2583 = vperm.xlu0 %2582, %v1006
      %v2584 = vpop.permute.xlu0 %2583
      %2585 = vset.pattern.permute.xlu0 10
      %2586 = vperm.xlu0 %2585, %v1007
      %v2587 = vpop.permute.xlu0 %2586
      %2588 = vset.pattern.permute.xlu0 10
      %2589 = vperm.xlu0 %2588, %v1008
      %v2590 = vpop.permute.xlu0 %2589
      %2591 = vset.pattern.permute.xlu0 10
      %2592 = vperm.xlu0 %2591, %v1009
      %v2593 = vpop.permute.xlu0 %2592
      %2594 = vset.pattern.permute.xlu0 10
      %2595 = vperm.xlu0 %2594, %v1010
      %v2596 = vpop.permute.xlu0 %2595
      %2597 = vset.pattern.permute.xlu0 10
      %2598 = vperm.xlu0 %2597, %v1011
      %v2599 = vpop.permute.xlu0 %2598
      %vm2600 = vcmp.eq.s32.totalorder %v1164, %v2578
      %vm2601 = vcmp.eq.s32.totalorder %v1164, %v2581
      %vm2602 = vcmp.eq.s32.totalorder %v1164, %v2584
      %vm2603 = vcmp.eq.s32.totalorder %v1164, %v2587
      %vm2604 = vcmp.eq.s32.totalorder %v1164, %v2590
      %vm2605 = vcmp.eq.s32.totalorder %v1164, %v2593
      %vm2606 = vcmp.eq.s32.totalorder %v1164, %v2596
      %vm2607 = vcmp.eq.s32.totalorder %v1164, %v2599
      %v2608 = vsel %vm2600, 1, 0
      %v2609 = vsel %vm2601, 1, 0
      %v2610 = vsel %vm2602, 1, 0
      %v2611 = vsel %vm2603, 1, 0
      %v2612 = vsel %vm2604, 1, 0
      %v2613 = vsel %vm2605, 1, 0
      %v2614 = vsel %vm2606, 1, 0
      %v2615 = vsel %vm2607, 1, 0
      %v2616 = vcvt.s32.f32 %v2608
      %v2617 = vcvt.s32.f32 %v2609
      %v2618 = vcvt.s32.f32 %v2610
      %v2619 = vcvt.s32.f32 %v2611
      %v2620 = vcvt.s32.f32 %v2612
      %v2621 = vcvt.s32.f32 %v2613
      %v2622 = vcvt.s32.f32 %v2614
      %v2623 = vcvt.s32.f32 %v2615
      %v2624 = vadd.f32 %v2568, %v2616
      %v2625 = vadd.f32 %v2569, %v2617
      %v2626 = vadd.f32 %v2570, %v2618
      %v2627 = vadd.f32 %v2571, %v2619
      %v2628 = vadd.f32 %v2572, %v2620
      %v2629 = vadd.f32 %v2573, %v2621
      %v2630 = vadd.f32 %v2574, %v2622
      %v2631 = vadd.f32 %v2575, %v2623
      %2632 = vset.pattern.permute.xlu0 11
      %2633 = vperm.xlu0 %2632, %v1004
      %v2634 = vpop.permute.xlu0 %2633
      %2635 = vset.pattern.permute.xlu0 11
      %2636 = vperm.xlu0 %2635, %v1005
      %v2637 = vpop.permute.xlu0 %2636
      %2638 = vset.pattern.permute.xlu0 11
      %2639 = vperm.xlu0 %2638, %v1006
      %v2640 = vpop.permute.xlu0 %2639
      %2641 = vset.pattern.permute.xlu0 11
      %2642 = vperm.xlu0 %2641, %v1007
      %v2643 = vpop.permute.xlu0 %2642
      %2644 = vset.pattern.permute.xlu0 11
      %2645 = vperm.xlu0 %2644, %v1008
      %v2646 = vpop.permute.xlu0 %2645
      %2647 = vset.pattern.permute.xlu0 11
      %2648 = vperm.xlu0 %2647, %v1009
      %v2649 = vpop.permute.xlu0 %2648
      %2650 = vset.pattern.permute.xlu0 11
      %2651 = vperm.xlu0 %2650, %v1010
      %v2652 = vpop.permute.xlu0 %2651
      %2653 = vset.pattern.permute.xlu0 11
      %2654 = vperm.xlu0 %2653, %v1011
      %v2655 = vpop.permute.xlu0 %2654
      %vm2656 = vcmp.eq.s32.totalorder %v1164, %v2634
      %vm2657 = vcmp.eq.s32.totalorder %v1164, %v2637
      %vm2658 = vcmp.eq.s32.totalorder %v1164, %v2640
      %vm2659 = vcmp.eq.s32.totalorder %v1164, %v2643
      %vm2660 = vcmp.eq.s32.totalorder %v1164, %v2646
      %vm2661 = vcmp.eq.s32.totalorder %v1164, %v2649
      %vm2662 = vcmp.eq.s32.totalorder %v1164, %v2652
      %vm2663 = vcmp.eq.s32.totalorder %v1164, %v2655
      %v2664 = vsel %vm2656, 1, 0
      %v2665 = vsel %vm2657, 1, 0
      %v2666 = vsel %vm2658, 1, 0
      %v2667 = vsel %vm2659, 1, 0
      %v2668 = vsel %vm2660, 1, 0
      %v2669 = vsel %vm2661, 1, 0
      %v2670 = vsel %vm2662, 1, 0
      %v2671 = vsel %vm2663, 1, 0
      %v2672 = vcvt.s32.f32 %v2664
      %v2673 = vcvt.s32.f32 %v2665
      %v2674 = vcvt.s32.f32 %v2666
      %v2675 = vcvt.s32.f32 %v2667
      %v2676 = vcvt.s32.f32 %v2668
      %v2677 = vcvt.s32.f32 %v2669
      %v2678 = vcvt.s32.f32 %v2670
      %v2679 = vcvt.s32.f32 %v2671
      %v2680 = vadd.f32 %v2624, %v2672
      %v2681 = vadd.f32 %v2625, %v2673
      %v2682 = vadd.f32 %v2626, %v2674
      %v2683 = vadd.f32 %v2627, %v2675
      %v2684 = vadd.f32 %v2628, %v2676
      %v2685 = vadd.f32 %v2629, %v2677
      %v2686 = vadd.f32 %v2630, %v2678
      %v2687 = vadd.f32 %v2631, %v2679
      %vm2688 = vcmp.gt.f32.partialorder %v2680, 0.0
      %vm2689 = vcmp.gt.f32.partialorder %v2681, 0.0
      %vm2690 = vcmp.gt.f32.partialorder %v2682, 0.0
      %vm2691 = vcmp.gt.f32.partialorder %v2683, 0.0
      %vm2692 = vcmp.gt.f32.partialorder %v2684, 0.0
      %vm2693 = vcmp.gt.f32.partialorder %v2685, 0.0
      %vm2694 = vcmp.gt.f32.partialorder %v2686, 0.0
      %vm2695 = vcmp.gt.f32.partialorder %v2687, 0.0
      %v2696 = vsel %vm2688, %v2445, -1e+30
      %v2697 = vsel %vm2689, %v2447, -1e+30
      %v2698 = vsel %vm2690, %v2450, -1e+30
      %v2699 = vsel %vm2691, %v2452, -1e+30
      %v2700 = vsel %vm2692, %v2455, -1e+30
      %v2701 = vsel %vm2693, %v2457, -1e+30
      %v2702 = vsel %vm2694, %v2460, -1e+30
      %v2703 = vsel %vm2695, %v2462, -1e+30
      %vm2704 = vcmask 523264
      %v2705 = vsel %vm2704, %v2696, -inf
      %2706 = vmax.xlane.f32.xlu0 %v2705
      %v2707 = vpop.xlane.xlu0 %2706
      %v2708 = vsel %vm2704, %v2697, -inf
      %2709 = vmax.xlane.f32.xlu0 %v2708
      %v2710 = vpop.xlane.xlu0 %2709
      %v2711 = vsel %vm2704, %v2698, -inf
      %2712 = vmax.xlane.f32.xlu0 %v2711
      %v2713 = vpop.xlane.xlu0 %2712
      %v2714 = vsel %vm2704, %v2699, -inf
      %2715 = vmax.xlane.f32.xlu0 %v2714
      %v2716 = vpop.xlane.xlu0 %2715
      %v2717 = vsel %vm2704, %v2700, -inf
      %2718 = vmax.xlane.f32.xlu0 %v2717
      %v2719 = vpop.xlane.xlu0 %2718
      %v2720 = vsel %vm2704, %v2701, -inf
      %2721 = vmax.xlane.f32.xlu0 %v2720
      %v2722 = vpop.xlane.xlu0 %2721
      %v2723 = vsel %vm2704, %v2702, -inf
      %2724 = vmax.xlane.f32.xlu0 %v2723
      %v2725 = vpop.xlane.xlu0 %2724
      %v2726 = vsel %vm2704, %v2703, -inf
      %2727 = vmax.xlane.f32.xlu0 %v2726
      %v2728 = vpop.xlane.xlu0 %2727
      %v2729 = vmax.f32 %v2396, %v2707
      %v2730 = vmax.f32 %v2398, %v2710
      %v2731 = vmax.f32 %v2400, %v2713
      %v2732 = vmax.f32 %v2402, %v2716
      %v2733 = vmax.f32 %v2404, %v2719
      %v2734 = vmax.f32 %v2406, %v2722
      %v2735 = vmax.f32 %v2408, %v2725
      %v2736 = vmax.f32 %v2410, %v2728
      %v2737 = vsub.f32 %v2445, %v2729
      %v2738 = vsub.f32 %v2447, %v2730
      %v2739 = vsub.f32 %v2450, %v2731
      %v2740 = vsub.f32 %v2452, %v2732
      %v2741 = vsub.f32 %v2455, %v2733
      %v2742 = vsub.f32 %v2457, %v2734
      %v2743 = vsub.f32 %v2460, %v2735
      %v2744 = vsub.f32 %v2462, %v2736
      %v2745 = vsel %vm2688, %v2737, -1e+30
      %v2746 = vsel %vm2689, %v2738, -1e+30
      %v2747 = vsel %vm2690, %v2739, -1e+30
      %v2748 = vsel %vm2691, %v2740, -1e+30
      %v2749 = vsel %vm2692, %v2741, -1e+30
      %v2750 = vsel %vm2693, %v2742, -1e+30
      %v2751 = vsel %vm2694, %v2743, -1e+30
      %v2752 = vsel %vm2695, %v2744, -1e+30
      %v2753 = vmul.f32 %v2745, 1.442695
      %v2754 = vpow.pop %v2753
      %v2755 = vmul.f32 %v2746, 1.442695
      %v2756 = vpow.pop %v2755
      %v2757 = vmul.f32 %v2747, 1.442695
      %v2758 = vpow.pop %v2757
      %v2759 = vmul.f32 %v2748, 1.442695
      %v2760 = vpow.pop %v2759
      %v2761 = vmul.f32 %v2749, 1.442695
      %v2762 = vpow.pop %v2761
      %v2763 = vmul.f32 %v2750, 1.442695
      %v2764 = vpow.pop %v2763
      %v2765 = vmul.f32 %v2751, 1.442695
      %v2766 = vpow.pop %v2765
      %v2767 = vmul.f32 %v2752, 1.442695
      %v2768 = vpow.pop %v2767
      %v2769 = vsub.f32 %v2396, %v2729
      %v2770 = vsub.f32 %v2398, %v2730
      %v2771 = vsub.f32 %v2400, %v2731
      %v2772 = vsub.f32 %v2402, %v2732
      %v2773 = vsub.f32 %v2404, %v2733
      %v2774 = vsub.f32 %v2406, %v2734
      %v2775 = vsub.f32 %v2408, %v2735
      %v2776 = vsub.f32 %v2410, %v2736
      %v2777 = vmul.f32 %v2769, 1.442695
      %v2778 = vpow.pop %v2777
      %v2779 = vmul.f32 %v2770, 1.442695
      %v2780 = vpow.pop %v2779
      %v2781 = vmul.f32 %v2771, 1.442695
      %v2782 = vpow.pop %v2781
      %v2783 = vmul.f32 %v2772, 1.442695
      %v2784 = vpow.pop %v2783
      %v2785 = vmul.f32 %v2773, 1.442695
      %v2786 = vpow.pop %v2785
      %v2787 = vmul.f32 %v2774, 1.442695
      %v2788 = vpow.pop %v2787
      %v2789 = vmul.f32 %v2775, 1.442695
      %v2790 = vpow.pop %v2789
      %v2791 = vmul.f32 %v2776, 1.442695
      %v2792 = vpow.pop %v2791
      %v2793 = vmul.f32 %v2680, %v2754
      %v2794 = vmul.f32 %v2681, %v2756
      %v2795 = vmul.f32 %v2682, %v2758
      %v2796 = vmul.f32 %v2683, %v2760
      %v2797 = vmul.f32 %v2684, %v2762
      %v2798 = vmul.f32 %v2685, %v2764
      %v2799 = vmul.f32 %v2686, %v2766
      %v2800 = vmul.f32 %v2687, %v2768
      %v2801 = vsel %vm2704, %v2793, 0.0
      %2802 = vadd.xlane.f32.xlu0 %v2801
      %v2803 = vpop.xlane.xlu0 %2802
      %v2804 = vsel %vm2704, %v2794, 0.0
      %2805 = vadd.xlane.f32.xlu0 %v2804
      %v2806 = vpop.xlane.xlu0 %2805
      %v2807 = vsel %vm2704, %v2795, 0.0
      %2808 = vadd.xlane.f32.xlu0 %v2807
      %v2809 = vpop.xlane.xlu0 %2808
      %v2810 = vsel %vm2704, %v2796, 0.0
      %2811 = vadd.xlane.f32.xlu0 %v2810
      %v2812 = vpop.xlane.xlu0 %2811
      %v2813 = vsel %vm2704, %v2797, 0.0
      %2814 = vadd.xlane.f32.xlu0 %v2813
      %v2815 = vpop.xlane.xlu0 %2814
      %v2816 = vsel %vm2704, %v2798, 0.0
      %2817 = vadd.xlane.f32.xlu0 %v2816
      %v2818 = vpop.xlane.xlu0 %2817
      %v2819 = vsel %vm2704, %v2799, 0.0
      %2820 = vadd.xlane.f32.xlu0 %v2819
      %v2821 = vpop.xlane.xlu0 %2820
      %v2822 = vsel %vm2704, %v2800, 0.0
      %2823 = vadd.xlane.f32.xlu0 %v2822
      %v2824 = vpop.xlane.xlu0 %2823
      %v2825 = vadd.f32 %v2778, %v2803
      %v2826 = vadd.f32 %v2780, %v2806
      %v2827 = vadd.f32 %v2782, %v2809
      %v2828 = vadd.f32 %v2784, %v2812
      %v2829 = vadd.f32 %v2786, %v2815
      %v2830 = vadd.f32 %v2788, %v2818
      %v2831 = vadd.f32 %v2790, %v2821
      %v2832 = vadd.f32 %v2792, %v2824
      %v2833 = vlog2.pop %v2825
      %v2834 = vmul.f32 %v2833, 0.6931472
      %v2835 = vlog2.pop %v2826
      %v2836 = vmul.f32 %v2835, 0.6931472
      %v2837 = vlog2.pop %v2827
      %v2838 = vmul.f32 %v2837, 0.6931472
      %v2839 = vlog2.pop %v2828
      %v2840 = vmul.f32 %v2839, 0.6931472
      %v2841 = vlog2.pop %v2829
      %v2842 = vmul.f32 %v2841, 0.6931472
      %v2843 = vlog2.pop %v2830
      %v2844 = vmul.f32 %v2843, 0.6931472
      %v2845 = vlog2.pop %v2831
      %v2846 = vmul.f32 %v2845, 0.6931472
      %v2847 = vlog2.pop %v2832
      %v2848 = vmul.f32 %v2847, 0.6931472
      %v2849 = vadd.f32 %v2729, %v2834
      %v2850 = vadd.f32 %v2730, %v2836
      %v2851 = vadd.f32 %v2731, %v2838
      %v2852 = vadd.f32 %v2732, %v2840
      %v2853 = vadd.f32 %v2733, %v2842
      %v2854 = vadd.f32 %v2734, %v2844
      %v2855 = vadd.f32 %v2735, %v2846
      %v2856 = vadd.f32 %v2736, %v2848
      %v2857 = vsub.f32 %v2849, %v2396
      %v2858 = vsub.f32 %v2850, %v2398
      %v2859 = vsub.f32 %v2851, %v2400
      %v2860 = vsub.f32 %v2852, %v2402
      %v2861 = vsub.f32 %v2853, %v2404
      %v2862 = vsub.f32 %v2854, %v2406
      %v2863 = vsub.f32 %v2855, %v2408
      %v2864 = vsub.f32 %v2856, %v2410
      %v2865 = vadd.f32 %v2857, %v2858
      %v2866 = vadd.f32 %v2865, %v2859
      %v2867 = vadd.f32 %v2866, %v2860
      %v2868 = vadd.f32 %v2867, %v2861
      %v2869 = vadd.f32 %v2868, %v2862
      %v2870 = vadd.f32 %v2869, %v2863
      %v2871 = vadd.f32 %v2870, %v2864
      %v2872 = vrot.slane %v2871, 4
      %v2873 = vadd.f32 %v2871, %v2872
      %v2874 = vrot.slane %v2873, 2
      %v2875 = vadd.f32 %v2873, %v2874
      %v2876 = vrot.slane %v2875, 1
      %v2877 = vadd.f32 %v2875, %v2876
      %v2878 = vmul.f32 %v2877, 0.015625
      %v2879 = vadd.f32 %v2386, %v2878
      %v2880 = vmul.f32 %v2879, 0.33333334
      %2881 = vst [vmem:[%s314] sm:$0x1] %v2880
      %p2882 = scmp.lt.s32.totalorder %s18, 1
      %s2883 = scalar_select %p2882, %s18, 1
      %s2884 = scalar_lea.vmem %s7, %s2883
      // Predicated region
      $region49: #{cpc_forward.3} parent=47 // pred_check
        %p2885 = pneg %p198
      $region50: #{cpc_forward.3} parent=47 // pred_check_branch
        %2887 = sbr.rel (%p2885) target = $region52
      $region51: #{cpc_forward.3} parent=47 // pred_region
        _
      $region52: #{cpc_forward.3} parent=47 // pred_fallthru
        _
    $region48: #{cpc_forward.3} parent=5 // pred_fallthru
      _
    %p2888 = scmp.le.s32.totalorder 2, %s13
    // Predicated region
    $region53: #{cpc_forward.3} parent=5 // pred_check
      %p2889 = pneg %p2888
    $region54: #{cpc_forward.3} parent=5 // pred_check_branch
      %2891 = sbr.rel (%p2889) target = $region56
    $region55: #{cpc_forward.3} parent=5 // pred_region
      %s2892 = ssub.s32 %s13, 2
      // Predicated region
      $region57: #{cpc_forward.3} parent=55 // pred_check
        %p2893 = pneg %p204
      $region58: #{cpc_forward.3} parent=55 // pred_check_branch
        %2895 = sbr.rel (%p2893) target = $region60
      $region59: #{cpc_forward.3} parent=55 // pred_region
        %p2896 = scmp.lt.s32.totalorder %s19, 1
        %s2897 = scalar_select %p2896, %s19, 1
        %s2898 = scalar_lea.vmem %s7, %s2897
      $region60: #{cpc_forward.3} parent=55 // pred_fallthru
        _
    $region56: #{cpc_forward.3} parent=5 // pred_fallthru
      _
  $region6: #{cpc_forward.3} parent=0 // loop_footer
    %s17 = sadd.s32 1, %s13
  $region7: #{cpc_forward.3} parent=0 // loop_footer_branch
    %12 = sbr.rel target = $region3
  $region8: #{cpc_forward.3} parent=0 // loop_exit
    _

</llo_original>
